<compile_context>
chip_gen: v7x
topology: tpu7x:2x2x1
jax: 0.10.0
libtpu: 0.0.40
codegen_flags: <defaults>
</compile_context>

<pallas_src>
import math

import jax
import jax.numpy as jnp
from jax.experimental import pallas as pl
from jax.experimental.pallas import tpu as pltpu

NHEAD = 4          # fixed by the module (nhead=4)
LN_EPS = 1e-5      # torch LayerNorm / TransformerEncoderLayer default

# packed per-layer vector rows (shape (L, 10, 2H), H-sized vectors live in [:H])
_BQ, _BK, _BV, _BO, _LN1G, _LN1B, _B1, _B2, _LN2G, _LN2B = range(10)
# packed head vector rows (shape (4, max(H, C)))
_HLNG, _HLNB, _HB1, _HB2 = range(4)


# ----------------------------- in-kernel helpers -----------------------------

def _gelu(x):
    # TODO(synk): PyTorch's activation='gelu' / nn.GELU() use the exact erf
    # GELU; tanh approximation used here for Mosaic-safe lowering (~1e-3 rel).
    c = math.sqrt(2.0 / math.pi)
    return 0.5 * x * (1.0 + jnp.tanh(c * (x + 0.044715 * x * x * x)))


def _layernorm(x, gamma, beta):
    mu = jnp.mean(x, axis=-1, keepdims=True)
    var = jnp.mean((x - mu) ** 2, axis=-1, keepdims=True)
    return (x - mu) * jax.lax.rsqrt(var + LN_EPS) * gamma + beta


# --------------------------------- fused kernel -------------------------------

def fused_kernel(x_ref, mask_ref, emb_ref,
                 wqkv_ref, wo_ref, w1_ref, w2_ref, lvecs_ref,
                 hw1_ref, hw2_ref, hvecs_ref,
                 out_ref):
    """Full forward (embed -> L encoder layers -> head) for one batch row."""
    S, V = x_ref.shape[1], x_ref.shape[2]
    H = emb_ref.shape[1]
    L = wqkv_ref.shape[0]
    C = out_ref.shape[2]
    hd = H // NHEAD
    scale = 1.0 / math.sqrt(hd)

    # ---- embedding: argmax over vocab + table lookup as onehot @ table (MXU)
    x = x_ref[0]                               # (S, V) logits
    maxv = jnp.max(x, axis=-1, keepdims=True)
    iota = jax.lax.broadcasted_iota(jnp.int32, (S, V), 1)
    # first-occurrence argmax (matches torch.argmax tie-breaking)
    idx = jnp.min(jnp.where(x == maxv, iota, V), axis=-1, keepdims=True)
    onehot = (iota == idx).astype(jnp.float32)
    h = jnp.dot(onehot, emb_ref[...], preferred_element_type=jnp.float32)  # (S, H)

    mask = mask_ref[0]                         # (1, S) additive key-padding mask

    # ---- encoder layers (post-norm, GELU FFN), static unrolled loop
    for l in range(L):
        wqkv = wqkv_ref[l]                     # (H, 3H)
        wo = wo_ref[l]                         # (H, H)
        w1 = w1_ref[l]                         # (H, 2H)
        w2 = w2_ref[l]                         # (2H, H)
        vec = lvecs_ref[l]                     # (10, 2H) packed biases / LN params

        bq, bk, bv = vec[_BQ:_BQ + 1, :H], vec[_BK:_BK + 1, :H], vec[_BV:_BV + 1, :H]
        bo = vec[_BO:_BO + 1, :H]
        ln1g, ln1b = vec[_LN1G:_LN1G + 1, :H], vec[_LN1B:_LN1B + 1, :H]
        b1 = vec[_B1:_B1 + 1, :]               # (1, 2H)
        b2 = vec[_B2:_B2 + 1, :H]
        ln2g, ln2b = vec[_LN2G:_LN2G + 1, :H], vec[_LN2B:_LN2B + 1, :H]

        # fused QKV projection: one (S,H) x (H,3H) MXU op
        qkv = jnp.dot(h, wqkv, preferred_element_type=jnp.float32)   # (S, 3H)
        q = qkv[:, 0:H] + bq
        k = qkv[:, H:2 * H] + bk
        v = qkv[:, 2 * H:3 * H] + bv

        # per-head attention; output projection folded in as a sum over head
        # slices of wo (avoids concatenate / reshape inside the kernel)
        acc = jnp.zeros((S, H), jnp.float32)
        for hh in range(NHEAD):
            sl = slice(hh * hd, (hh + 1) * hd)
            qh, kh, vh = q[:, sl], k[:, sl], v[:, sl]
            s = jax.lax.dot_general(qh, kh, (((1,), (1,)), ((), ())),
                                    preferred_element_type=jnp.float32) * scale
            s = s + mask                       # broadcast over query rows
            m = jnp.max(s, axis=-1, keepdims=True)
            e = jnp.exp(s - m)
            p = e / jnp.sum(e, axis=-1, keepdims=True)
            oh = jnp.dot(p, vh, preferred_element_type=jnp.float32)   # (S, hd)
            acc = acc + jnp.dot(oh, wo[sl, :], preferred_element_type=jnp.float32)
        attn = acc + bo

        # post-norm residual blocks (norm_first=False default)
        y = _layernorm(h + attn, ln1g, ln1b)
        f = _gelu(jnp.dot(y, w1, preferred_element_type=jnp.float32) + b1)
        f = jnp.dot(f, w2, preferred_element_type=jnp.float32) + b2
        h = _layernorm(y + f, ln2g, ln2b)

    # ---- output head: LayerNorm -> Linear -> GELU -> Linear
    hlng, hlnb = hvecs_ref[_HLNG:_HLNG + 1, :H], hvecs_ref[_HLNB:_HLNB + 1, :H]
    hb1, hb2 = hvecs_ref[_HB1:_HB1 + 1, :H], hvecs_ref[_HB2:_HB2 + 1, :C]
    y = _layernorm(h, hlng, hlnb)
    y = _gelu(jnp.dot(y, hw1_ref[...], preferred_element_type=jnp.float32) + hb1)
    out_ref[0] = jnp.dot(y, hw2_ref[...], preferred_element_type=jnp.float32) + hb2


# ------------------------------ pallas wrapper --------------------------------

def _weight_spec(w):
    # full-array block, constant index map -> fetched once, VMEM-resident
    return pl.BlockSpec(w.shape, lambda b, _n=w.ndim: (0,) * _n)


def coupling_transformer_net(params, x, src_key_padding_mask):
    """x: (B, S, vocab) float logits; src_key_padding_mask: (B, S) bool (True = pad)."""
    B, S, V = x.shape
    H = params["emb"].shape[1]
    C = params["head_w2"].shape[1]

    # finite sentinel instead of -inf (robust softmax even for fully padded rows)
    mask_add = jnp.where(src_key_padding_mask, -1e9, 0.0).astype(jnp.float32)
    mask_add = mask_add.reshape(B, 1, S)

    weight_names = ("emb", "wqkv", "wo", "w1", "w2", "lvecs",
                    "head_w1", "head_w2", "head_vecs")
    weights = [params[n] for n in weight_names]

    in_specs = [pl.BlockSpec((1, S, V), lambda b: (b, 0, 0)),
                pl.BlockSpec((1, 1, S), lambda b: (b, 0, 0))]
    in_specs += [_weight_spec(w) for w in weights]

    return pl.pallas_call(
        fused_kernel,
        out_shape=jax.ShapeDtypeStruct((B, S, C), jnp.float32),
        grid=(B,),
        in_specs=in_specs,
        out_specs=pl.BlockSpec((1, S, C), lambda b: (b, 0, 0)),
        compiler_params=pltpu.CompilerParams(dimension_semantics=("parallel",)),
    )(x, mask_add, *weights)


# ------------------------------ parameter init --------------------------------

def init_params(key, vocab_size, c_out, num_layers, hidden_size):
    H = hidden_size
    keys = jax.random.split(key, 2 + num_layers)

    def dense(k, fan_in, fan_out):
        return jax.random.normal(k, (fan_in, fan_out), jnp.float32) / jnp.sqrt(fan_in)

    def pad_to(v, n):
        return jnp.concatenate([v, jnp.zeros((n - v.shape[0],), jnp.float32)])

    emb = jax.random.normal(keys[0], (vocab_size, H), jnp.float32) * 0.5

    wqkv_l, wo_l, w1_l, w2_l, vecs_l = [], [], [], [], []
    for i in range(num_layers):
        lk = jax.random.split(keys[1 + i], 11)
        wq, wk, wv = dense(lk[0], H, H), dense(lk[1], H, H), dense(lk[2], H, H)
        wqkv_l.append(jnp.concatenate([wq, wk, wv], axis=1))      # (H, 3H)
        wo_l.append(dense(lk[3], H, H))
        w1_l.append(dense(lk[4], H, 2 * H))
        w2_l.append(dense(lk[5], 2 * H, H))

        bq = jax.random.normal(lk[6], (H,), jnp.float32) * 0.1
        bk = jax.random.normal(lk[7], (H,), jnp.float32) * 0.1
        bv = jax.random.normal(lk[8], (H,), jnp.float32) * 0.1
        bo = jax.random.normal(lk[9], (H,), jnp.float32) * 0.1
        b1 = jax.random.normal(lk[10], (2 * H,), jnp.float32) * 0.1
        b2 = jnp.zeros((H,), jnp.float32)
        ln1g = jnp.ones((H,), jnp.float32); ln1b = jnp.zeros((H,), jnp.float32)
        ln2g = jnp.ones((H,), jnp.float32); ln2b = jnp.zeros((H,), jnp.float32)
        rows = [bq, bk, bv, bo, ln1g, ln1b, None, b2, ln2g, ln2b]
        packed = [b1 if r is None else pad_to(r, 2 * H) for r in rows]
        vecs_l.append(jnp.stack(packed))                          # (10, 2H)

    hk = jax.random.split(keys[1 + num_layers], 3)
    HV = max(H, c_out)
    head_vecs = jnp.stack([
        pad_to(jnp.ones((H,), jnp.float32), HV),                   # ln gamma
        pad_to(jnp.zeros((H,), jnp.float32), HV),                  # ln beta
        pad_to(jax.random.normal(hk[2], (H,), jnp.float32) * 0.1, HV),   # b1
        pad_to(jnp.zeros((c_out,), jnp.float32), HV),              # b2
    ])                                                             # (4, HV)

    return {
        "emb": emb,
        "wqkv": jnp.stack(wqkv_l), "wo": jnp.stack(wo_l),
        "w1": jnp.stack(w1_l), "w2": jnp.stack(w2_l),
        "lvecs": jnp.stack(vecs_l),
        "head_w1": dense(hk[0], H, H), "head_w2": dense(hk[1], H, c_out),
        "head_vecs": head_vecs,
    }


# ----------------------------------- main --------------------------------------

if __name__ == "__main__":
    B, S = 2, 8
    VOCAB, C_OUT, NUM_LAYERS, HIDDEN = 16, 16, 2, 32

    key = jax.random.PRNGKey(0)
    kx, kp = jax.random.split(key, 2)

    x = jax.random.normal(kx, (B, S, VOCAB), dtype=jnp.float32)
    # last two sequence positions are padding (True = ignore), like torch's mask
    src_key_padding_mask = jnp.zeros((B, S), dtype=bool).at[:, S - 2:].set(True)

    params = init_params(kp, VOCAB, C_OUT, NUM_LAYERS, HIDDEN)

    out = coupling_transformer_net(params, x, src_key_padding_mask)
    out = jax.block_until_ready(out)

    assert out.shape == (B, S, C_OUT), out.shape
    assert out.dtype == jnp.float32
    assert bool(jnp.all(jnp.isfinite(out)))
    print("KERNEL_OK")
</pallas_src>

<mosaic_0001>
module attributes {stable_mosaic.version = 11 : i64} {
  func.func @fused_kernel(%arg0: i32, %arg1: memref<1x8x16xf32, #tpu.memory_space<vmem>>, %arg2: memref<1x1x8xf32, #tpu.memory_space<vmem>>, %arg3: memref<16x32xf32, #tpu.memory_space<vmem>>, %arg4: memref<2x32x96xf32, #tpu.memory_space<vmem>>, %arg5: memref<2x32x32xf32, #tpu.memory_space<vmem>>, %arg6: memref<2x32x64xf32, #tpu.memory_space<vmem>>, %arg7: memref<2x64x32xf32, #tpu.memory_space<vmem>>, %arg8: memref<2x10x64xf32, #tpu.memory_space<vmem>>, %arg9: memref<32x32xf32, #tpu.memory_space<vmem>>, %arg10: memref<32x16xf32, #tpu.memory_space<vmem>>, %arg11: memref<4x32xf32, #tpu.memory_space<vmem>>, %arg12: memref<1x8x16xf32, #tpu.memory_space<vmem>>) attributes {dimension_semantics = [#tpu.dimension_semantics<parallel>], iteration_bounds = array<i64: 2>, scalar_prefetch = 0 : i64, scratch_operands = 0 : i64, tpu.core_type = #tpu.core_type<tc>, window_params = [{transform_indices = @transform_0, window_bounds = array<i64: 1, 8, 16>}, {transform_indices = @transform_1, window_bounds = array<i64: 1, 1, 8>}, {pipeline_mode = #tpu.pipeline_mode<synchronous>, transform_indices = @transform_2, window_bounds = array<i64: 16, 32>}, {pipeline_mode = #tpu.pipeline_mode<synchronous>, transform_indices = @transform_3, window_bounds = array<i64: 2, 32, 96>}, {pipeline_mode = #tpu.pipeline_mode<synchronous>, transform_indices = @transform_4, window_bounds = array<i64: 2, 32, 32>}, {pipeline_mode = #tpu.pipeline_mode<synchronous>, transform_indices = @transform_5, window_bounds = array<i64: 2, 32, 64>}, {pipeline_mode = #tpu.pipeline_mode<synchronous>, transform_indices = @transform_6, window_bounds = array<i64: 2, 64, 32>}, {pipeline_mode = #tpu.pipeline_mode<synchronous>, transform_indices = @transform_7, window_bounds = array<i64: 2, 10, 64>}, {pipeline_mode = #tpu.pipeline_mode<synchronous>, transform_indices = @transform_8, window_bounds = array<i64: 32, 32>}, {pipeline_mode = #tpu.pipeline_mode<synchronous>, transform_indices = @transform_9, window_bounds = array<i64: 32, 16>}, {pipeline_mode = #tpu.pipeline_mode<synchronous>, transform_indices = @transform_10, window_bounds = array<i64: 4, 32>}, {transform_indices = @transform_11, window_bounds = array<i64: 1, 8, 16>}]} {
    %c0 = arith.constant 0 : index
    %c0_0 = arith.constant 0 : index
    %c0_1 = arith.constant 0 : index
    %0 = vector.load %arg1[%c0, %c0_0, %c0_1] : memref<1x8x16xf32, #tpu.memory_space<vmem>>, vector<1x8x16xf32>
    %1 = vector.shape_cast %0 : vector<1x8x16xf32> to vector<8x16xf32>
    %cst = arith.constant dense<0xFF800000> : vector<8xf32>
    %2 = vector.multi_reduction <maximumf>, %1, %cst [1] : vector<8x16xf32> to vector<8xf32>
    %3 = vector.shape_cast %2 : vector<8xf32> to vector<8x1xf32>
    %4 = tpu.iota {dimensions = array<i32: 1>} : vector<8x16xi32>
    %5 = vector.broadcast %3 : vector<8x1xf32> to vector<8x16xf32>
    %6 = arith.cmpf oeq, %1, %5 : vector<8x16xf32>
    %c16_i32 = arith.constant 16 : i32
    %7 = vector.broadcast %c16_i32 : i32 to vector<8x16xi32>
    %8 = arith.select %6, %4, %7 : vector<8x16xi1>, vector<8x16xi32>
    %cst_2 = arith.constant dense<2147483647> : vector<8xi32>
    %9 = vector.multi_reduction <minsi>, %8, %cst_2 [1] : vector<8x16xi32> to vector<8xi32>
    %10 = vector.shape_cast %9 : vector<8xi32> to vector<8x1xi32>
    %11 = vector.broadcast %10 : vector<8x1xi32> to vector<8x16xi32>
    %12 = arith.cmpi eq, %4, %11 : vector<8x16xi32>
    %13 = arith.extui %12 : vector<8x16xi1> to vector<8x16xi32>
    %14 = arith.sitofp %13 : vector<8x16xi32> to vector<8x16xf32>
    %c0_3 = arith.constant 0 : index
    %c0_4 = arith.constant 0 : index
    %15 = vector.load %arg3[%c0_3, %c0_4] : memref<16x32xf32, #tpu.memory_space<vmem>>, vector<16x32xf32>
    %cst_5 = arith.constant dense<0.000000e+00> : vector<8x32xf32>
    %16 = tpu.matmul %14, %15, %cst_5 {dimension_numbers = #tpu.dot_dimension_numbers<[1], [0], [0], [1], [0, 0, 1, 1], [], []>} : vector<8x16xf32>, vector<16x32xf32>, vector<8x32xf32> -> vector<8x32xf32>
    %c0_6 = arith.constant 0 : index
    %c0_7 = arith.constant 0 : index
    %c0_8 = arith.constant 0 : index
    %17 = vector.load %arg2[%c0_6, %c0_7, %c0_8] : memref<1x1x8xf32, #tpu.memory_space<vmem>>, vector<1x1x8xf32>
    %18 = vector.shape_cast %17 : vector<1x1x8xf32> to vector<1x8xf32>
    %c0_9 = arith.constant 0 : index
    %c0_10 = arith.constant 0 : index
    %c0_11 = arith.constant 0 : index
    %19 = vector.load %arg4[%c0_9, %c0_10, %c0_11] : memref<2x32x96xf32, #tpu.memory_space<vmem>>, vector<1x32x96xf32>
    %20 = vector.shape_cast %19 : vector<1x32x96xf32> to vector<32x96xf32>
    %c0_12 = arith.constant 0 : index
    %c0_13 = arith.constant 0 : index
    %c0_14 = arith.constant 0 : index
    %21 = vector.load %arg5[%c0_12, %c0_13, %c0_14] : memref<2x32x32xf32, #tpu.memory_space<vmem>>, vector<1x32x32xf32>
    %22 = vector.shape_cast %21 : vector<1x32x32xf32> to vector<32x32xf32>
    %c0_15 = arith.constant 0 : index
    %c0_16 = arith.constant 0 : index
    %c0_17 = arith.constant 0 : index
    %23 = vector.load %arg6[%c0_15, %c0_16, %c0_17] : memref<2x32x64xf32, #tpu.memory_space<vmem>>, vector<1x32x64xf32>
    %24 = vector.shape_cast %23 : vector<1x32x64xf32> to vector<32x64xf32>
    %c0_18 = arith.constant 0 : index
    %c0_19 = arith.constant 0 : index
    %c0_20 = arith.constant 0 : index
    %25 = vector.load %arg7[%c0_18, %c0_19, %c0_20] : memref<2x64x32xf32, #tpu.memory_space<vmem>>, vector<1x64x32xf32>
    %26 = vector.shape_cast %25 : vector<1x64x32xf32> to vector<64x32xf32>
    %c0_21 = arith.constant 0 : index
    %c0_22 = arith.constant 0 : index
    %c0_23 = arith.constant 0 : index
    %27 = vector.load %arg8[%c0_21, %c0_22, %c0_23] : memref<2x10x64xf32, #tpu.memory_space<vmem>>, vector<1x10x64xf32>
    %28 = vector.shape_cast %27 : vector<1x10x64xf32> to vector<10x64xf32>
    %29 = vector.extract_strided_slice %28 {offsets = [0, 0], sizes = [1, 32], strides = [1, 1]} : vector<10x64xf32> to vector<1x32xf32>
    %30 = vector.extract_strided_slice %28 {offsets = [1, 0], sizes = [1, 32], strides = [1, 1]} : vector<10x64xf32> to vector<1x32xf32>
    %31 = vector.extract_strided_slice %28 {offsets = [2, 0], sizes = [1, 32], strides = [1, 1]} : vector<10x64xf32> to vector<1x32xf32>
    %32 = vector.extract_strided_slice %28 {offsets = [3, 0], sizes = [1, 32], strides = [1, 1]} : vector<10x64xf32> to vector<1x32xf32>
    %33 = vector.extract_strided_slice %28 {offsets = [4, 0], sizes = [1, 32], strides = [1, 1]} : vector<10x64xf32> to vector<1x32xf32>
    %34 = vector.extract_strided_slice %28 {offsets = [5, 0], sizes = [1, 32], strides = [1, 1]} : vector<10x64xf32> to vector<1x32xf32>
    %35 = vector.extract_strided_slice %28 {offsets = [6, 0], sizes = [1, 64], strides = [1, 1]} : vector<10x64xf32> to vector<1x64xf32>
    %36 = vector.extract_strided_slice %28 {offsets = [7, 0], sizes = [1, 32], strides = [1, 1]} : vector<10x64xf32> to vector<1x32xf32>
    %37 = vector.extract_strided_slice %28 {offsets = [8, 0], sizes = [1, 32], strides = [1, 1]} : vector<10x64xf32> to vector<1x32xf32>
    %38 = vector.extract_strided_slice %28 {offsets = [9, 0], sizes = [1, 32], strides = [1, 1]} : vector<10x64xf32> to vector<1x32xf32>
    %cst_24 = arith.constant dense<0.000000e+00> : vector<8x96xf32>
    %39 = tpu.matmul %16, %20, %cst_24 {dimension_numbers = #tpu.dot_dimension_numbers<[1], [0], [0], [1], [0, 0, 1, 1], [], []>} : vector<8x32xf32>, vector<32x96xf32>, vector<8x96xf32> -> vector<8x96xf32>
    %40 = vector.extract_strided_slice %39 {offsets = [0, 0], sizes = [8, 32], strides = [1, 1]} : vector<8x96xf32> to vector<8x32xf32>
    %41 = vector.broadcast %29 : vector<1x32xf32> to vector<8x32xf32>
    %42 = arith.addf %40, %41 : vector<8x32xf32>
    %43 = vector.extract_strided_slice %39 {offsets = [0, 32], sizes = [8, 32], strides = [1, 1]} : vector<8x96xf32> to vector<8x32xf32>
    %44 = vector.broadcast %30 : vector<1x32xf32> to vector<8x32xf32>
    %45 = arith.addf %43, %44 : vector<8x32xf32>
    %46 = vector.extract_strided_slice %39 {offsets = [0, 64], sizes = [8, 32], strides = [1, 1]} : vector<8x96xf32> to vector<8x32xf32>
    %47 = vector.broadcast %31 : vector<1x32xf32> to vector<8x32xf32>
    %48 = arith.addf %46, %47 : vector<8x32xf32>
    %cst_25 = arith.constant 0.000000e+00 : f32
    %49 = vector.broadcast %cst_25 : f32 to vector<8x32xf32>
    %50 = vector.extract_strided_slice %42 {offsets = [0, 0], sizes = [8, 8], strides = [1, 1]} : vector<8x32xf32> to vector<8x8xf32>
    %51 = vector.extract_strided_slice %45 {offsets = [0, 0], sizes = [8, 8], strides = [1, 1]} : vector<8x32xf32> to vector<8x8xf32>
    %52 = vector.extract_strided_slice %48 {offsets = [0, 0], sizes = [8, 8], strides = [1, 1]} : vector<8x32xf32> to vector<8x8xf32>
    %cst_26 = arith.constant dense<0.000000e+00> : vector<8x8xf32>
    %53 = tpu.matmul %50, %51, %cst_26 {dimension_numbers = #tpu.dot_dimension_numbers<[1], [1], [0], [0], [0, 0, 1, 0], [], []>} : vector<8x8xf32>, vector<8x8xf32>, vector<8x8xf32> -> vector<8x8xf32>
    %cst_27 = arith.constant 0.353553385 : f32
    %54 = vector.broadcast %cst_27 : f32 to vector<8x8xf32>
    %55 = arith.mulf %53, %54 : vector<8x8xf32>
    %56 = vector.broadcast %18 : vector<1x8xf32> to vector<8x8xf32>
    %57 = arith.addf %55, %56 : vector<8x8xf32>
    %cst_28 = arith.constant dense<0xFF800000> : vector<8xf32>
    %58 = vector.multi_reduction <maximumf>, %57, %cst_28 [1] : vector<8x8xf32> to vector<8xf32>
    %59 = vector.shape_cast %58 : vector<8xf32> to vector<8x1xf32>
    %60 = vector.broadcast %59 : vector<8x1xf32> to vector<8x8xf32>
    %61 = arith.subf %57, %60 : vector<8x8xf32>
    %62 = math.exp %61 : vector<8x8xf32>
    %cst_29 = arith.constant dense<0.000000e+00> : vector<8xf32>
    %63 = vector.multi_reduction <add>, %62, %cst_29 [1] : vector<8x8xf32> to vector<8xf32>
    %64 = vector.shape_cast %63 : vector<8xf32> to vector<8x1xf32>
    %65 = vector.broadcast %64 : vector<8x1xf32> to vector<8x8xf32>
    %66 = arith.divf %62, %65 : vector<8x8xf32>
    %cst_30 = arith.constant dense<0.000000e+00> : vector<8x8xf32>
    %67 = tpu.matmul %66, %52, %cst_30 {dimension_numbers = #tpu.dot_dimension_numbers<[1], [0], [0], [1], [0, 0, 1, 1], [], []>} : vector<8x8xf32>, vector<8x8xf32>, vector<8x8xf32> -> vector<8x8xf32>
    %68 = vector.extract_strided_slice %22 {offsets = [0, 0], sizes = [8, 32], strides = [1, 1]} : vector<32x32xf32> to vector<8x32xf32>
    %cst_31 = arith.constant dense<0.000000e+00> : vector<8x32xf32>
    %69 = tpu.matmul %67, %68, %cst_31 {dimension_numbers = #tpu.dot_dimension_numbers<[1], [0], [0], [1], [0, 0, 1, 1], [], []>} : vector<8x8xf32>, vector<8x32xf32>, vector<8x32xf32> -> vector<8x32xf32>
    %70 = arith.addf %49, %69 : vector<8x32xf32>
    %71 = vector.extract_strided_slice %42 {offsets = [0, 8], sizes = [8, 8], strides = [1, 1]} : vector<8x32xf32> to vector<8x8xf32>
    %72 = vector.extract_strided_slice %45 {offsets = [0, 8], sizes = [8, 8], strides = [1, 1]} : vector<8x32xf32> to vector<8x8xf32>
    %73 = vector.extract_strided_slice %48 {offsets = [0, 8], sizes = [8, 8], strides = [1, 1]} : vector<8x32xf32> to vector<8x8xf32>
    %cst_32 = arith.constant dense<0.000000e+00> : vector<8x8xf32>
    %74 = tpu.matmul %71, %72, %cst_32 {dimension_numbers = #tpu.dot_dimension_numbers<[1], [1], [0], [0], [0, 0, 1, 0], [], []>} : vector<8x8xf32>, vector<8x8xf32>, vector<8x8xf32> -> vector<8x8xf32>
    %cst_33 = arith.constant 0.353553385 : f32
    %75 = vector.broadcast %cst_33 : f32 to vector<8x8xf32>
    %76 = arith.mulf %74, %75 : vector<8x8xf32>
    %77 = vector.broadcast %18 : vector<1x8xf32> to vector<8x8xf32>
    %78 = arith.addf %76, %77 : vector<8x8xf32>
    %cst_34 = arith.constant dense<0xFF800000> : vector<8xf32>
    %79 = vector.multi_reduction <maximumf>, %78, %cst_34 [1] : vector<8x8xf32> to vector<8xf32>
    %80 = vector.shape_cast %79 : vector<8xf32> to vector<8x1xf32>
    %81 = vector.broadcast %80 : vector<8x1xf32> to vector<8x8xf32>
    %82 = arith.subf %78, %81 : vector<8x8xf32>
    %83 = math.exp %82 : vector<8x8xf32>
    %cst_35 = arith.constant dense<0.000000e+00> : vector<8xf32>
    %84 = vector.multi_reduction <add>, %83, %cst_35 [1] : vector<8x8xf32> to vector<8xf32>
    %85 = vector.shape_cast %84 : vector<8xf32> to vector<8x1xf32>
    %86 = vector.broadcast %85 : vector<8x1xf32> to vector<8x8xf32>
    %87 = arith.divf %83, %86 : vector<8x8xf32>
    %cst_36 = arith.constant dense<0.000000e+00> : vector<8x8xf32>
    %88 = tpu.matmul %87, %73, %cst_36 {dimension_numbers = #tpu.dot_dimension_numbers<[1], [0], [0], [1], [0, 0, 1, 1], [], []>} : vector<8x8xf32>, vector<8x8xf32>, vector<8x8xf32> -> vector<8x8xf32>
    %89 = vector.extract_strided_slice %22 {offsets = [8, 0], sizes = [8, 32], strides = [1, 1]} : vector<32x32xf32> to vector<8x32xf32>
    %cst_37 = arith.constant dense<0.000000e+00> : vector<8x32xf32>
    %90 = tpu.matmul %88, %89, %cst_37 {dimension_numbers = #tpu.dot_dimension_numbers<[1], [0], [0], [1], [0, 0, 1, 1], [], []>} : vector<8x8xf32>, vector<8x32xf32>, vector<8x32xf32> -> vector<8x32xf32>
    %91 = arith.addf %70, %90 : vector<8x32xf32>
    %92 = vector.extract_strided_slice %42 {offsets = [0, 16], sizes = [8, 8], strides = [1, 1]} : vector<8x32xf32> to vector<8x8xf32>
    %93 = vector.extract_strided_slice %45 {offsets = [0, 16], sizes = [8, 8], strides = [1, 1]} : vector<8x32xf32> to vector<8x8xf32>
    %94 = vector.extract_strided_slice %48 {offsets = [0, 16], sizes = [8, 8], strides = [1, 1]} : vector<8x32xf32> to vector<8x8xf32>
    %cst_38 = arith.constant dense<0.000000e+00> : vector<8x8xf32>
    %95 = tpu.matmul %92, %93, %cst_38 {dimension_numbers = #tpu.dot_dimension_numbers<[1], [1], [0], [0], [0, 0, 1, 0], [], []>} : vector<8x8xf32>, vector<8x8xf32>, vector<8x8xf32> -> vector<8x8xf32>
    %cst_39 = arith.constant 0.353553385 : f32
    %96 = vector.broadcast %cst_39 : f32 to vector<8x8xf32>
    %97 = arith.mulf %95, %96 : vector<8x8xf32>
    %98 = vector.broadcast %18 : vector<1x8xf32> to vector<8x8xf32>
    %99 = arith.addf %97, %98 : vector<8x8xf32>
    %cst_40 = arith.constant dense<0xFF800000> : vector<8xf32>
    %100 = vector.multi_reduction <maximumf>, %99, %cst_40 [1] : vector<8x8xf32> to vector<8xf32>
    %101 = vector.shape_cast %100 : vector<8xf32> to vector<8x1xf32>
    %102 = vector.broadcast %101 : vector<8x1xf32> to vector<8x8xf32>
    %103 = arith.subf %99, %102 : vector<8x8xf32>
    %104 = math.exp %103 : vector<8x8xf32>
    %cst_41 = arith.constant dense<0.000000e+00> : vector<8xf32>
    %105 = vector.multi_reduction <add>, %104, %cst_41 [1] : vector<8x8xf32> to vector<8xf32>
    %106 = vector.shape_cast %105 : vector<8xf32> to vector<8x1xf32>
    %107 = vector.broadcast %106 : vector<8x1xf32> to vector<8x8xf32>
    %108 = arith.divf %104, %107 : vector<8x8xf32>
    %cst_42 = arith.constant dense<0.000000e+00> : vector<8x8xf32>
    %109 = tpu.matmul %108, %94, %cst_42 {dimension_numbers = #tpu.dot_dimension_numbers<[1], [0], [0], [1], [0, 0, 1, 1], [], []>} : vector<8x8xf32>, vector<8x8xf32>, vector<8x8xf32> -> vector<8x8xf32>
    %110 = vector.extract_strided_slice %22 {offsets = [16, 0], sizes = [8, 32], strides = [1, 1]} : vector<32x32xf32> to vector<8x32xf32>
    %cst_43 = arith.constant dense<0.000000e+00> : vector<8x32xf32>
    %111 = tpu.matmul %109, %110, %cst_43 {dimension_numbers = #tpu.dot_dimension_numbers<[1], [0], [0], [1], [0, 0, 1, 1], [], []>} : vector<8x8xf32>, vector<8x32xf32>, vector<8x32xf32> -> vector<8x32xf32>
    %112 = arith.addf %91, %111 : vector<8x32xf32>
    %113 = vector.extract_strided_slice %42 {offsets = [0, 24], sizes = [8, 8], strides = [1, 1]} : vector<8x32xf32> to vector<8x8xf32>
    %114 = vector.extract_strided_slice %45 {offsets = [0, 24], sizes = [8, 8], strides = [1, 1]} : vector<8x32xf32> to vector<8x8xf32>
    %115 = vector.extract_strided_slice %48 {offsets = [0, 24], sizes = [8, 8], strides = [1, 1]} : vector<8x32xf32> to vector<8x8xf32>
    %cst_44 = arith.constant dense<0.000000e+00> : vector<8x8xf32>
    %116 = tpu.matmul %113, %114, %cst_44 {dimension_numbers = #tpu.dot_dimension_numbers<[1], [1], [0], [0], [0, 0, 1, 0], [], []>} : vector<8x8xf32>, vector<8x8xf32>, vector<8x8xf32> -> vector<8x8xf32>
    %cst_45 = arith.constant 0.353553385 : f32
    %117 = vector.broadcast %cst_45 : f32 to vector<8x8xf32>
    %118 = arith.mulf %116, %117 : vector<8x8xf32>
    %119 = vector.broadcast %18 : vector<1x8xf32> to vector<8x8xf32>
    %120 = arith.addf %118, %119 : vector<8x8xf32>
    %cst_46 = arith.constant dense<0xFF800000> : vector<8xf32>
    %121 = vector.multi_reduction <maximumf>, %120, %cst_46 [1] : vector<8x8xf32> to vector<8xf32>
    %122 = vector.shape_cast %121 : vector<8xf32> to vector<8x1xf32>
    %123 = vector.broadcast %122 : vector<8x1xf32> to vector<8x8xf32>
    %124 = arith.subf %120, %123 : vector<8x8xf32>
    %125 = math.exp %124 : vector<8x8xf32>
    %cst_47 = arith.constant dense<0.000000e+00> : vector<8xf32>
    %126 = vector.multi_reduction <add>, %125, %cst_47 [1] : vector<8x8xf32> to vector<8xf32>
    %127 = vector.shape_cast %126 : vector<8xf32> to vector<8x1xf32>
    %128 = vector.broadcast %127 : vector<8x1xf32> to vector<8x8xf32>
    %129 = arith.divf %125, %128 : vector<8x8xf32>
    %cst_48 = arith.constant dense<0.000000e+00> : vector<8x8xf32>
    %130 = tpu.matmul %129, %115, %cst_48 {dimension_numbers = #tpu.dot_dimension_numbers<[1], [0], [0], [1], [0, 0, 1, 1], [], []>} : vector<8x8xf32>, vector<8x8xf32>, vector<8x8xf32> -> vector<8x8xf32>
    %131 = vector.extract_strided_slice %22 {offsets = [24, 0], sizes = [8, 32], strides = [1, 1]} : vector<32x32xf32> to vector<8x32xf32>
    %cst_49 = arith.constant dense<0.000000e+00> : vector<8x32xf32>
    %132 = tpu.matmul %130, %131, %cst_49 {dimension_numbers = #tpu.dot_dimension_numbers<[1], [0], [0], [1], [0, 0, 1, 1], [], []>} : vector<8x8xf32>, vector<8x32xf32>, vector<8x32xf32> -> vector<8x32xf32>
    %133 = arith.addf %112, %132 : vector<8x32xf32>
    %134 = vector.broadcast %32 : vector<1x32xf32> to vector<8x32xf32>
    %135 = arith.addf %133, %134 : vector<8x32xf32>
    %136 = arith.addf %16, %135 : vector<8x32xf32>
    %cst_50 = arith.constant dense<0.000000e+00> : vector<8xf32>
    %137 = vector.multi_reduction <add>, %136, %cst_50 [1] : vector<8x32xf32> to vector<8xf32>
    %138 = vector.shape_cast %137 : vector<8xf32> to vector<8x1xf32>
    %cst_51 = arith.constant 3.200000e+01 : f32
    %139 = vector.broadcast %cst_51 : f32 to vector<8x1xf32>
    %140 = arith.divf %138, %139 : vector<8x1xf32>
    %141 = vector.broadcast %140 : vector<8x1xf32> to vector<8x32xf32>
    %142 = arith.subf %136, %141 : vector<8x32xf32>
    %143 = arith.mulf %142, %142 : vector<8x32xf32>
    %cst_52 = arith.constant dense<0.000000e+00> : vector<8xf32>
    %144 = vector.multi_reduction <add>, %143, %cst_52 [1] : vector<8x32xf32> to vector<8xf32>
    %145 = vector.shape_cast %144 : vector<8xf32> to vector<8x1xf32>
    %cst_53 = arith.constant 3.200000e+01 : f32
    %146 = vector.broadcast %cst_53 : f32 to vector<8x1xf32>
    %147 = arith.divf %145, %146 : vector<8x1xf32>
    %148 = vector.broadcast %140 : vector<8x1xf32> to vector<8x32xf32>
    %149 = arith.subf %136, %148 : vector<8x32xf32>
    %cst_54 = arith.constant 9.99999974E-6 : f32
    %150 = vector.broadcast %cst_54 : f32 to vector<8x1xf32>
    %151 = arith.addf %147, %150 : vector<8x1xf32>
    %152 = math.rsqrt %151 : vector<8x1xf32>
    %153 = vector.broadcast %152 : vector<8x1xf32> to vector<8x32xf32>
    %154 = arith.mulf %149, %153 : vector<8x32xf32>
    %155 = vector.broadcast %33 : vector<1x32xf32> to vector<8x32xf32>
    %156 = arith.mulf %154, %155 : vector<8x32xf32>
    %157 = vector.broadcast %34 : vector<1x32xf32> to vector<8x32xf32>
    %158 = arith.addf %156, %157 : vector<8x32xf32>
    %cst_55 = arith.constant dense<0.000000e+00> : vector<8x64xf32>
    %159 = tpu.matmul %158, %24, %cst_55 {dimension_numbers = #tpu.dot_dimension_numbers<[1], [0], [0], [1], [0, 0, 1, 1], [], []>} : vector<8x32xf32>, vector<32x64xf32>, vector<8x64xf32> -> vector<8x64xf32>
    %160 = vector.broadcast %35 : vector<1x64xf32> to vector<8x64xf32>
    %161 = arith.addf %159, %160 : vector<8x64xf32>
    %cst_56 = arith.constant 5.000000e-01 : f32
    %162 = vector.broadcast %cst_56 : f32 to vector<8x64xf32>
    %163 = arith.mulf %162, %161 : vector<8x64xf32>
    %cst_57 = arith.constant 4.471500e-02 : f32
    %164 = vector.broadcast %cst_57 : f32 to vector<8x64xf32>
    %165 = arith.mulf %164, %161 : vector<8x64xf32>
    %166 = arith.mulf %165, %161 : vector<8x64xf32>
    %167 = arith.mulf %166, %161 : vector<8x64xf32>
    %168 = arith.addf %161, %167 : vector<8x64xf32>
    %cst_58 = arith.constant 0.797884583 : f32
    %169 = vector.broadcast %cst_58 : f32 to vector<8x64xf32>
    %170 = arith.mulf %169, %168 : vector<8x64xf32>
    %171 = math.tanh %170 : vector<8x64xf32>
    %cst_59 = arith.constant 1.000000e+00 : f32
    %172 = vector.broadcast %cst_59 : f32 to vector<8x64xf32>
    %173 = arith.addf %172, %171 : vector<8x64xf32>
    %174 = arith.mulf %163, %173 : vector<8x64xf32>
    %cst_60 = arith.constant dense<0.000000e+00> : vector<8x32xf32>
    %175 = tpu.matmul %174, %26, %cst_60 {dimension_numbers = #tpu.dot_dimension_numbers<[1], [0], [0], [1], [0, 0, 1, 1], [], []>} : vector<8x64xf32>, vector<64x32xf32>, vector<8x32xf32> -> vector<8x32xf32>
    %176 = vector.broadcast %36 : vector<1x32xf32> to vector<8x32xf32>
    %177 = arith.addf %175, %176 : vector<8x32xf32>
    %178 = arith.addf %158, %177 : vector<8x32xf32>
    %cst_61 = arith.constant dense<0.000000e+00> : vector<8xf32>
    %179 = vector.multi_reduction <add>, %178, %cst_61 [1] : vector<8x32xf32> to vector<8xf32>
    %180 = vector.shape_cast %179 : vector<8xf32> to vector<8x1xf32>
    %cst_62 = arith.constant 3.200000e+01 : f32
    %181 = vector.broadcast %cst_62 : f32 to vector<8x1xf32>
    %182 = arith.divf %180, %181 : vector<8x1xf32>
    %183 = vector.broadcast %182 : vector<8x1xf32> to vector<8x32xf32>
    %184 = arith.subf %178, %183 : vector<8x32xf32>
    %185 = arith.mulf %184, %184 : vector<8x32xf32>
    %cst_63 = arith.constant dense<0.000000e+00> : vector<8xf32>
    %186 = vector.multi_reduction <add>, %185, %cst_63 [1] : vector<8x32xf32> to vector<8xf32>
    %187 = vector.shape_cast %186 : vector<8xf32> to vector<8x1xf32>
    %cst_64 = arith.constant 3.200000e+01 : f32
    %188 = vector.broadcast %cst_64 : f32 to vector<8x1xf32>
    %189 = arith.divf %187, %188 : vector<8x1xf32>
    %190 = vector.broadcast %182 : vector<8x1xf32> to vector<8x32xf32>
    %191 = arith.subf %178, %190 : vector<8x32xf32>
    %cst_65 = arith.constant 9.99999974E-6 : f32
    %192 = vector.broadcast %cst_65 : f32 to vector<8x1xf32>
    %193 = arith.addf %189, %192 : vector<8x1xf32>
    %194 = math.rsqrt %193 : vector<8x1xf32>
    %195 = vector.broadcast %194 : vector<8x1xf32> to vector<8x32xf32>
    %196 = arith.mulf %191, %195 : vector<8x32xf32>
    %197 = vector.broadcast %37 : vector<1x32xf32> to vector<8x32xf32>
    %198 = arith.mulf %196, %197 : vector<8x32xf32>
    %199 = vector.broadcast %38 : vector<1x32xf32> to vector<8x32xf32>
    %200 = arith.addf %198, %199 : vector<8x32xf32>
    %c1 = arith.constant 1 : index
    %c0_66 = arith.constant 0 : index
    %c0_67 = arith.constant 0 : index
    %201 = vector.load %arg4[%c1, %c0_66, %c0_67] : memref<2x32x96xf32, #tpu.memory_space<vmem>>, vector<1x32x96xf32>
    %202 = vector.shape_cast %201 : vector<1x32x96xf32> to vector<32x96xf32>
    %c1_68 = arith.constant 1 : index
    %c0_69 = arith.constant 0 : index
    %c0_70 = arith.constant 0 : index
    %203 = vector.load %arg5[%c1_68, %c0_69, %c0_70] : memref<2x32x32xf32, #tpu.memory_space<vmem>>, vector<1x32x32xf32>
    %204 = vector.shape_cast %203 : vector<1x32x32xf32> to vector<32x32xf32>
    %c1_71 = arith.constant 1 : index
    %c0_72 = arith.constant 0 : index
    %c0_73 = arith.constant 0 : index
    %205 = vector.load %arg6[%c1_71, %c0_72, %c0_73] : memref<2x32x64xf32, #tpu.memory_space<vmem>>, vector<1x32x64xf32>
    %206 = vector.shape_cast %205 : vector<1x32x64xf32> to vector<32x64xf32>
    %c1_74 = arith.constant 1 : index
    %c0_75 = arith.constant 0 : index
    %c0_76 = arith.constant 0 : index
    %207 = vector.load %arg7[%c1_74, %c0_75, %c0_76] : memref<2x64x32xf32, #tpu.memory_space<vmem>>, vector<1x64x32xf32>
    %208 = vector.shape_cast %207 : vector<1x64x32xf32> to vector<64x32xf32>
    %c1_77 = arith.constant 1 : index
    %c0_78 = arith.constant 0 : index
    %c0_79 = arith.constant 0 : index
    %209 = vector.load %arg8[%c1_77, %c0_78, %c0_79] : memref<2x10x64xf32, #tpu.memory_space<vmem>>, vector<1x10x64xf32>
    %210 = vector.shape_cast %209 : vector<1x10x64xf32> to vector<10x64xf32>
    %211 = vector.extract_strided_slice %210 {offsets = [0, 0], sizes = [1, 32], strides = [1, 1]} : vector<10x64xf32> to vector<1x32xf32>
    %212 = vector.extract_strided_slice %210 {offsets = [1, 0], sizes = [1, 32], strides = [1, 1]} : vector<10x64xf32> to vector<1x32xf32>
    %213 = vector.extract_strided_slice %210 {offsets = [2, 0], sizes = [1, 32], strides = [1, 1]} : vector<10x64xf32> to vector<1x32xf32>
    %214 = vector.extract_strided_slice %210 {offsets = [3, 0], sizes = [1, 32], strides = [1, 1]} : vector<10x64xf32> to vector<1x32xf32>
    %215 = vector.extract_strided_slice %210 {offsets = [4, 0], sizes = [1, 32], strides = [1, 1]} : vector<10x64xf32> to vector<1x32xf32>
    %216 = vector.extract_strided_slice %210 {offsets = [5, 0], sizes = [1, 32], strides = [1, 1]} : vector<10x64xf32> to vector<1x32xf32>
    %217 = vector.extract_strided_slice %210 {offsets = [6, 0], sizes = [1, 64], strides = [1, 1]} : vector<10x64xf32> to vector<1x64xf32>
    %218 = vector.extract_strided_slice %210 {offsets = [7, 0], sizes = [1, 32], strides = [1, 1]} : vector<10x64xf32> to vector<1x32xf32>
    %219 = vector.extract_strided_slice %210 {offsets = [8, 0], sizes = [1, 32], strides = [1, 1]} : vector<10x64xf32> to vector<1x32xf32>
    %220 = vector.extract_strided_slice %210 {offsets = [9, 0], sizes = [1, 32], strides = [1, 1]} : vector<10x64xf32> to vector<1x32xf32>
    %cst_80 = arith.constant dense<0.000000e+00> : vector<8x96xf32>
    %221 = tpu.matmul %200, %202, %cst_80 {dimension_numbers = #tpu.dot_dimension_numbers<[1], [0], [0], [1], [0, 0, 1, 1], [], []>} : vector<8x32xf32>, vector<32x96xf32>, vector<8x96xf32> -> vector<8x96xf32>
    %222 = vector.extract_strided_slice %221 {offsets = [0, 0], sizes = [8, 32], strides = [1, 1]} : vector<8x96xf32> to vector<8x32xf32>
    %223 = vector.broadcast %211 : vector<1x32xf32> to vector<8x32xf32>
    %224 = arith.addf %222, %223 : vector<8x32xf32>
    %225 = vector.extract_strided_slice %221 {offsets = [0, 32], sizes = [8, 32], strides = [1, 1]} : vector<8x96xf32> to vector<8x32xf32>
    %226 = vector.broadcast %212 : vector<1x32xf32> to vector<8x32xf32>
    %227 = arith.addf %225, %226 : vector<8x32xf32>
    %228 = vector.extract_strided_slice %221 {offsets = [0, 64], sizes = [8, 32], strides = [1, 1]} : vector<8x96xf32> to vector<8x32xf32>
    %229 = vector.broadcast %213 : vector<1x32xf32> to vector<8x32xf32>
    %230 = arith.addf %228, %229 : vector<8x32xf32>
    %cst_81 = arith.constant 0.000000e+00 : f32
    %231 = vector.broadcast %cst_81 : f32 to vector<8x32xf32>
    %232 = vector.extract_strided_slice %224 {offsets = [0, 0], sizes = [8, 8], strides = [1, 1]} : vector<8x32xf32> to vector<8x8xf32>
    %233 = vector.extract_strided_slice %227 {offsets = [0, 0], sizes = [8, 8], strides = [1, 1]} : vector<8x32xf32> to vector<8x8xf32>
    %234 = vector.extract_strided_slice %230 {offsets = [0, 0], sizes = [8, 8], strides = [1, 1]} : vector<8x32xf32> to vector<8x8xf32>
    %cst_82 = arith.constant dense<0.000000e+00> : vector<8x8xf32>
    %235 = tpu.matmul %232, %233, %cst_82 {dimension_numbers = #tpu.dot_dimension_numbers<[1], [1], [0], [0], [0, 0, 1, 0], [], []>} : vector<8x8xf32>, vector<8x8xf32>, vector<8x8xf32> -> vector<8x8xf32>
    %cst_83 = arith.constant 0.353553385 : f32
    %236 = vector.broadcast %cst_83 : f32 to vector<8x8xf32>
    %237 = arith.mulf %235, %236 : vector<8x8xf32>
    %238 = vector.broadcast %18 : vector<1x8xf32> to vector<8x8xf32>
    %239 = arith.addf %237, %238 : vector<8x8xf32>
    %cst_84 = arith.constant dense<0xFF800000> : vector<8xf32>
    %240 = vector.multi_reduction <maximumf>, %239, %cst_84 [1] : vector<8x8xf32> to vector<8xf32>
    %241 = vector.shape_cast %240 : vector<8xf32> to vector<8x1xf32>
    %242 = vector.broadcast %241 : vector<8x1xf32> to vector<8x8xf32>
    %243 = arith.subf %239, %242 : vector<8x8xf32>
    %244 = math.exp %243 : vector<8x8xf32>
    %cst_85 = arith.constant dense<0.000000e+00> : vector<8xf32>
    %245 = vector.multi_reduction <add>, %244, %cst_85 [1] : vector<8x8xf32> to vector<8xf32>
    %246 = vector.shape_cast %245 : vector<8xf32> to vector<8x1xf32>
    %247 = vector.broadcast %246 : vector<8x1xf32> to vector<8x8xf32>
    %248 = arith.divf %244, %247 : vector<8x8xf32>
    %cst_86 = arith.constant dense<0.000000e+00> : vector<8x8xf32>
    %249 = tpu.matmul %248, %234, %cst_86 {dimension_numbers = #tpu.dot_dimension_numbers<[1], [0], [0], [1], [0, 0, 1, 1], [], []>} : vector<8x8xf32>, vector<8x8xf32>, vector<8x8xf32> -> vector<8x8xf32>
    %250 = vector.extract_strided_slice %204 {offsets = [0, 0], sizes = [8, 32], strides = [1, 1]} : vector<32x32xf32> to vector<8x32xf32>
    %cst_87 = arith.constant dense<0.000000e+00> : vector<8x32xf32>
    %251 = tpu.matmul %249, %250, %cst_87 {dimension_numbers = #tpu.dot_dimension_numbers<[1], [0], [0], [1], [0, 0, 1, 1], [], []>} : vector<8x8xf32>, vector<8x32xf32>, vector<8x32xf32> -> vector<8x32xf32>
    %252 = arith.addf %231, %251 : vector<8x32xf32>
    %253 = vector.extract_strided_slice %224 {offsets = [0, 8], sizes = [8, 8], strides = [1, 1]} : vector<8x32xf32> to vector<8x8xf32>
    %254 = vector.extract_strided_slice %227 {offsets = [0, 8], sizes = [8, 8], strides = [1, 1]} : vector<8x32xf32> to vector<8x8xf32>
    %255 = vector.extract_strided_slice %230 {offsets = [0, 8], sizes = [8, 8], strides = [1, 1]} : vector<8x32xf32> to vector<8x8xf32>
    %cst_88 = arith.constant dense<0.000000e+00> : vector<8x8xf32>
    %256 = tpu.matmul %253, %254, %cst_88 {dimension_numbers = #tpu.dot_dimension_numbers<[1], [1], [0], [0], [0, 0, 1, 0], [], []>} : vector<8x8xf32>, vector<8x8xf32>, vector<8x8xf32> -> vector<8x8xf32>
    %cst_89 = arith.constant 0.353553385 : f32
    %257 = vector.broadcast %cst_89 : f32 to vector<8x8xf32>
    %258 = arith.mulf %256, %257 : vector<8x8xf32>
    %259 = vector.broadcast %18 : vector<1x8xf32> to vector<8x8xf32>
    %260 = arith.addf %258, %259 : vector<8x8xf32>
    %cst_90 = arith.constant dense<0xFF800000> : vector<8xf32>
    %261 = vector.multi_reduction <maximumf>, %260, %cst_90 [1] : vector<8x8xf32> to vector<8xf32>
    %262 = vector.shape_cast %261 : vector<8xf32> to vector<8x1xf32>
    %263 = vector.broadcast %262 : vector<8x1xf32> to vector<8x8xf32>
    %264 = arith.subf %260, %263 : vector<8x8xf32>
    %265 = math.exp %264 : vector<8x8xf32>
    %cst_91 = arith.constant dense<0.000000e+00> : vector<8xf32>
    %266 = vector.multi_reduction <add>, %265, %cst_91 [1] : vector<8x8xf32> to vector<8xf32>
    %267 = vector.shape_cast %266 : vector<8xf32> to vector<8x1xf32>
    %268 = vector.broadcast %267 : vector<8x1xf32> to vector<8x8xf32>
    %269 = arith.divf %265, %268 : vector<8x8xf32>
    %cst_92 = arith.constant dense<0.000000e+00> : vector<8x8xf32>
    %270 = tpu.matmul %269, %255, %cst_92 {dimension_numbers = #tpu.dot_dimension_numbers<[1], [0], [0], [1], [0, 0, 1, 1], [], []>} : vector<8x8xf32>, vector<8x8xf32>, vector<8x8xf32> -> vector<8x8xf32>
    %271 = vector.extract_strided_slice %204 {offsets = [8, 0], sizes = [8, 32], strides = [1, 1]} : vector<32x32xf32> to vector<8x32xf32>
    %cst_93 = arith.constant dense<0.000000e+00> : vector<8x32xf32>
    %272 = tpu.matmul %270, %271, %cst_93 {dimension_numbers = #tpu.dot_dimension_numbers<[1], [0], [0], [1], [0, 0, 1, 1], [], []>} : vector<8x8xf32>, vector<8x32xf32>, vector<8x32xf32> -> vector<8x32xf32>
    %273 = arith.addf %252, %272 : vector<8x32xf32>
    %274 = vector.extract_strided_slice %224 {offsets = [0, 16], sizes = [8, 8], strides = [1, 1]} : vector<8x32xf32> to vector<8x8xf32>
    %275 = vector.extract_strided_slice %227 {offsets = [0, 16], sizes = [8, 8], strides = [1, 1]} : vector<8x32xf32> to vector<8x8xf32>
    %276 = vector.extract_strided_slice %230 {offsets = [0, 16], sizes = [8, 8], strides = [1, 1]} : vector<8x32xf32> to vector<8x8xf32>
    %cst_94 = arith.constant dense<0.000000e+00> : vector<8x8xf32>
    %277 = tpu.matmul %274, %275, %cst_94 {dimension_numbers = #tpu.dot_dimension_numbers<[1], [1], [0], [0], [0, 0, 1, 0], [], []>} : vector<8x8xf32>, vector<8x8xf32>, vector<8x8xf32> -> vector<8x8xf32>
    %cst_95 = arith.constant 0.353553385 : f32
    %278 = vector.broadcast %cst_95 : f32 to vector<8x8xf32>
    %279 = arith.mulf %277, %278 : vector<8x8xf32>
    %280 = vector.broadcast %18 : vector<1x8xf32> to vector<8x8xf32>
    %281 = arith.addf %279, %280 : vector<8x8xf32>
    %cst_96 = arith.constant dense<0xFF800000> : vector<8xf32>
    %282 = vector.multi_reduction <maximumf>, %281, %cst_96 [1] : vector<8x8xf32> to vector<8xf32>
    %283 = vector.shape_cast %282 : vector<8xf32> to vector<8x1xf32>
    %284 = vector.broadcast %283 : vector<8x1xf32> to vector<8x8xf32>
    %285 = arith.subf %281, %284 : vector<8x8xf32>
    %286 = math.exp %285 : vector<8x8xf32>
    %cst_97 = arith.constant dense<0.000000e+00> : vector<8xf32>
    %287 = vector.multi_reduction <add>, %286, %cst_97 [1] : vector<8x8xf32> to vector<8xf32>
    %288 = vector.shape_cast %287 : vector<8xf32> to vector<8x1xf32>
    %289 = vector.broadcast %288 : vector<8x1xf32> to vector<8x8xf32>
    %290 = arith.divf %286, %289 : vector<8x8xf32>
    %cst_98 = arith.constant dense<0.000000e+00> : vector<8x8xf32>
    %291 = tpu.matmul %290, %276, %cst_98 {dimension_numbers = #tpu.dot_dimension_numbers<[1], [0], [0], [1], [0, 0, 1, 1], [], []>} : vector<8x8xf32>, vector<8x8xf32>, vector<8x8xf32> -> vector<8x8xf32>
    %292 = vector.extract_strided_slice %204 {offsets = [16, 0], sizes = [8, 32], strides = [1, 1]} : vector<32x32xf32> to vector<8x32xf32>
    %cst_99 = arith.constant dense<0.000000e+00> : vector<8x32xf32>
    %293 = tpu.matmul %291, %292, %cst_99 {dimension_numbers = #tpu.dot_dimension_numbers<[1], [0], [0], [1], [0, 0, 1, 1], [], []>} : vector<8x8xf32>, vector<8x32xf32>, vector<8x32xf32> -> vector<8x32xf32>
    %294 = arith.addf %273, %293 : vector<8x32xf32>
    %295 = vector.extract_strided_slice %224 {offsets = [0, 24], sizes = [8, 8], strides = [1, 1]} : vector<8x32xf32> to vector<8x8xf32>
    %296 = vector.extract_strided_slice %227 {offsets = [0, 24], sizes = [8, 8], strides = [1, 1]} : vector<8x32xf32> to vector<8x8xf32>
    %297 = vector.extract_strided_slice %230 {offsets = [0, 24], sizes = [8, 8], strides = [1, 1]} : vector<8x32xf32> to vector<8x8xf32>
    %cst_100 = arith.constant dense<0.000000e+00> : vector<8x8xf32>
    %298 = tpu.matmul %295, %296, %cst_100 {dimension_numbers = #tpu.dot_dimension_numbers<[1], [1], [0], [0], [0, 0, 1, 0], [], []>} : vector<8x8xf32>, vector<8x8xf32>, vector<8x8xf32> -> vector<8x8xf32>
    %cst_101 = arith.constant 0.353553385 : f32
    %299 = vector.broadcast %cst_101 : f32 to vector<8x8xf32>
    %300 = arith.mulf %298, %299 : vector<8x8xf32>
    %301 = vector.broadcast %18 : vector<1x8xf32> to vector<8x8xf32>
    %302 = arith.addf %300, %301 : vector<8x8xf32>
    %cst_102 = arith.constant dense<0xFF800000> : vector<8xf32>
    %303 = vector.multi_reduction <maximumf>, %302, %cst_102 [1] : vector<8x8xf32> to vector<8xf32>
    %304 = vector.shape_cast %303 : vector<8xf32> to vector<8x1xf32>
    %305 = vector.broadcast %304 : vector<8x1xf32> to vector<8x8xf32>
    %306 = arith.subf %302, %305 : vector<8x8xf32>
    %307 = math.exp %306 : vector<8x8xf32>
    %cst_103 = arith.constant dense<0.000000e+00> : vector<8xf32>
    %308 = vector.multi_reduction <add>, %307, %cst_103 [1] : vector<8x8xf32> to vector<8xf32>
    %309 = vector.shape_cast %308 : vector<8xf32> to vector<8x1xf32>
    %310 = vector.broadcast %309 : vector<8x1xf32> to vector<8x8xf32>
    %311 = arith.divf %307, %310 : vector<8x8xf32>
    %cst_104 = arith.constant dense<0.000000e+00> : vector<8x8xf32>
    %312 = tpu.matmul %311, %297, %cst_104 {dimension_numbers = #tpu.dot_dimension_numbers<[1], [0], [0], [1], [0, 0, 1, 1], [], []>} : vector<8x8xf32>, vector<8x8xf32>, vector<8x8xf32> -> vector<8x8xf32>
    %313 = vector.extract_strided_slice %204 {offsets = [24, 0], sizes = [8, 32], strides = [1, 1]} : vector<32x32xf32> to vector<8x32xf32>
    %cst_105 = arith.constant dense<0.000000e+00> : vector<8x32xf32>
    %314 = tpu.matmul %312, %313, %cst_105 {dimension_numbers = #tpu.dot_dimension_numbers<[1], [0], [0], [1], [0, 0, 1, 1], [], []>} : vector<8x8xf32>, vector<8x32xf32>, vector<8x32xf32> -> vector<8x32xf32>
    %315 = arith.addf %294, %314 : vector<8x32xf32>
    %316 = vector.broadcast %214 : vector<1x32xf32> to vector<8x32xf32>
    %317 = arith.addf %315, %316 : vector<8x32xf32>
    %318 = arith.addf %200, %317 : vector<8x32xf32>
    %cst_106 = arith.constant dense<0.000000e+00> : vector<8xf32>
    %319 = vector.multi_reduction <add>, %318, %cst_106 [1] : vector<8x32xf32> to vector<8xf32>
    %320 = vector.shape_cast %319 : vector<8xf32> to vector<8x1xf32>
    %cst_107 = arith.constant 3.200000e+01 : f32
    %321 = vector.broadcast %cst_107 : f32 to vector<8x1xf32>
    %322 = arith.divf %320, %321 : vector<8x1xf32>
    %323 = vector.broadcast %322 : vector<8x1xf32> to vector<8x32xf32>
    %324 = arith.subf %318, %323 : vector<8x32xf32>
    %325 = arith.mulf %324, %324 : vector<8x32xf32>
    %cst_108 = arith.constant dense<0.000000e+00> : vector<8xf32>
    %326 = vector.multi_reduction <add>, %325, %cst_108 [1] : vector<8x32xf32> to vector<8xf32>
    %327 = vector.shape_cast %326 : vector<8xf32> to vector<8x1xf32>
    %cst_109 = arith.constant 3.200000e+01 : f32
    %328 = vector.broadcast %cst_109 : f32 to vector<8x1xf32>
    %329 = arith.divf %327, %328 : vector<8x1xf32>
    %330 = vector.broadcast %322 : vector<8x1xf32> to vector<8x32xf32>
    %331 = arith.subf %318, %330 : vector<8x32xf32>
    %cst_110 = arith.constant 9.99999974E-6 : f32
    %332 = vector.broadcast %cst_110 : f32 to vector<8x1xf32>
    %333 = arith.addf %329, %332 : vector<8x1xf32>
    %334 = math.rsqrt %333 : vector<8x1xf32>
    %335 = vector.broadcast %334 : vector<8x1xf32> to vector<8x32xf32>
    %336 = arith.mulf %331, %335 : vector<8x32xf32>
    %337 = vector.broadcast %215 : vector<1x32xf32> to vector<8x32xf32>
    %338 = arith.mulf %336, %337 : vector<8x32xf32>
    %339 = vector.broadcast %216 : vector<1x32xf32> to vector<8x32xf32>
    %340 = arith.addf %338, %339 : vector<8x32xf32>
    %cst_111 = arith.constant dense<0.000000e+00> : vector<8x64xf32>
    %341 = tpu.matmul %340, %206, %cst_111 {dimension_numbers = #tpu.dot_dimension_numbers<[1], [0], [0], [1], [0, 0, 1, 1], [], []>} : vector<8x32xf32>, vector<32x64xf32>, vector<8x64xf32> -> vector<8x64xf32>
    %342 = vector.broadcast %217 : vector<1x64xf32> to vector<8x64xf32>
    %343 = arith.addf %341, %342 : vector<8x64xf32>
    %cst_112 = arith.constant 5.000000e-01 : f32
    %344 = vector.broadcast %cst_112 : f32 to vector<8x64xf32>
    %345 = arith.mulf %344, %343 : vector<8x64xf32>
    %cst_113 = arith.constant 4.471500e-02 : f32
    %346 = vector.broadcast %cst_113 : f32 to vector<8x64xf32>
    %347 = arith.mulf %346, %343 : vector<8x64xf32>
    %348 = arith.mulf %347, %343 : vector<8x64xf32>
    %349 = arith.mulf %348, %343 : vector<8x64xf32>
    %350 = arith.addf %343, %349 : vector<8x64xf32>
    %cst_114 = arith.constant 0.797884583 : f32
    %351 = vector.broadcast %cst_114 : f32 to vector<8x64xf32>
    %352 = arith.mulf %351, %350 : vector<8x64xf32>
    %353 = math.tanh %352 : vector<8x64xf32>
    %cst_115 = arith.constant 1.000000e+00 : f32
    %354 = vector.broadcast %cst_115 : f32 to vector<8x64xf32>
    %355 = arith.addf %354, %353 : vector<8x64xf32>
    %356 = arith.mulf %345, %355 : vector<8x64xf32>
    %cst_116 = arith.constant dense<0.000000e+00> : vector<8x32xf32>
    %357 = tpu.matmul %356, %208, %cst_116 {dimension_numbers = #tpu.dot_dimension_numbers<[1], [0], [0], [1], [0, 0, 1, 1], [], []>} : vector<8x64xf32>, vector<64x32xf32>, vector<8x32xf32> -> vector<8x32xf32>
    %358 = vector.broadcast %218 : vector<1x32xf32> to vector<8x32xf32>
    %359 = arith.addf %357, %358 : vector<8x32xf32>
    %360 = arith.addf %340, %359 : vector<8x32xf32>
    %cst_117 = arith.constant dense<0.000000e+00> : vector<8xf32>
    %361 = vector.multi_reduction <add>, %360, %cst_117 [1] : vector<8x32xf32> to vector<8xf32>
    %362 = vector.shape_cast %361 : vector<8xf32> to vector<8x1xf32>
    %cst_118 = arith.constant 3.200000e+01 : f32
    %363 = vector.broadcast %cst_118 : f32 to vector<8x1xf32>
    %364 = arith.divf %362, %363 : vector<8x1xf32>
    %365 = vector.broadcast %364 : vector<8x1xf32> to vector<8x32xf32>
    %366 = arith.subf %360, %365 : vector<8x32xf32>
    %367 = arith.mulf %366, %366 : vector<8x32xf32>
    %cst_119 = arith.constant dense<0.000000e+00> : vector<8xf32>
    %368 = vector.multi_reduction <add>, %367, %cst_119 [1] : vector<8x32xf32> to vector<8xf32>
    %369 = vector.shape_cast %368 : vector<8xf32> to vector<8x1xf32>
    %cst_120 = arith.constant 3.200000e+01 : f32
    %370 = vector.broadcast %cst_120 : f32 to vector<8x1xf32>
    %371 = arith.divf %369, %370 : vector<8x1xf32>
    %372 = vector.broadcast %364 : vector<8x1xf32> to vector<8x32xf32>
    %373 = arith.subf %360, %372 : vector<8x32xf32>
    %cst_121 = arith.constant 9.99999974E-6 : f32
    %374 = vector.broadcast %cst_121 : f32 to vector<8x1xf32>
    %375 = arith.addf %371, %374 : vector<8x1xf32>
    %376 = math.rsqrt %375 : vector<8x1xf32>
    %377 = vector.broadcast %376 : vector<8x1xf32> to vector<8x32xf32>
    %378 = arith.mulf %373, %377 : vector<8x32xf32>
    %379 = vector.broadcast %219 : vector<1x32xf32> to vector<8x32xf32>
    %380 = arith.mulf %378, %379 : vector<8x32xf32>
    %381 = vector.broadcast %220 : vector<1x32xf32> to vector<8x32xf32>
    %382 = arith.addf %380, %381 : vector<8x32xf32>
    %c0_122 = arith.constant 0 : index
    %c0_123 = arith.constant 0 : index
    %383 = vector.load %arg11[%c0_122, %c0_123] : memref<4x32xf32, #tpu.memory_space<vmem>>, vector<1x32xf32>
    %c1_124 = arith.constant 1 : index
    %c0_125 = arith.constant 0 : index
    %384 = vector.load %arg11[%c1_124, %c0_125] : memref<4x32xf32, #tpu.memory_space<vmem>>, vector<1x32xf32>
    %c2 = arith.constant 2 : index
    %c0_126 = arith.constant 0 : index
    %385 = vector.load %arg11[%c2, %c0_126] : memref<4x32xf32, #tpu.memory_space<vmem>>, vector<1x32xf32>
    %c3 = arith.constant 3 : index
    %c0_127 = arith.constant 0 : index
    %386 = vector.load %arg11[%c3, %c0_127] : memref<4x32xf32, #tpu.memory_space<vmem>>, vector<1x16xf32>
    %cst_128 = arith.constant dense<0.000000e+00> : vector<8xf32>
    %387 = vector.multi_reduction <add>, %382, %cst_128 [1] : vector<8x32xf32> to vector<8xf32>
    %388 = vector.shape_cast %387 : vector<8xf32> to vector<8x1xf32>
    %cst_129 = arith.constant 3.200000e+01 : f32
    %389 = vector.broadcast %cst_129 : f32 to vector<8x1xf32>
    %390 = arith.divf %388, %389 : vector<8x1xf32>
    %391 = vector.broadcast %390 : vector<8x1xf32> to vector<8x32xf32>
    %392 = arith.subf %382, %391 : vector<8x32xf32>
    %393 = arith.mulf %392, %392 : vector<8x32xf32>
    %cst_130 = arith.constant dense<0.000000e+00> : vector<8xf32>
    %394 = vector.multi_reduction <add>, %393, %cst_130 [1] : vector<8x32xf32> to vector<8xf32>
    %395 = vector.shape_cast %394 : vector<8xf32> to vector<8x1xf32>
    %cst_131 = arith.constant 3.200000e+01 : f32
    %396 = vector.broadcast %cst_131 : f32 to vector<8x1xf32>
    %397 = arith.divf %395, %396 : vector<8x1xf32>
    %398 = vector.broadcast %390 : vector<8x1xf32> to vector<8x32xf32>
    %399 = arith.subf %382, %398 : vector<8x32xf32>
    %cst_132 = arith.constant 9.99999974E-6 : f32
    %400 = vector.broadcast %cst_132 : f32 to vector<8x1xf32>
    %401 = arith.addf %397, %400 : vector<8x1xf32>
    %402 = math.rsqrt %401 : vector<8x1xf32>
    %403 = vector.broadcast %402 : vector<8x1xf32> to vector<8x32xf32>
    %404 = arith.mulf %399, %403 : vector<8x32xf32>
    %405 = vector.broadcast %383 : vector<1x32xf32> to vector<8x32xf32>
    %406 = arith.mulf %404, %405 : vector<8x32xf32>
    %407 = vector.broadcast %384 : vector<1x32xf32> to vector<8x32xf32>
    %408 = arith.addf %406, %407 : vector<8x32xf32>
    %c0_133 = arith.constant 0 : index
    %c0_134 = arith.constant 0 : index
    %409 = vector.load %arg9[%c0_133, %c0_134] : memref<32x32xf32, #tpu.memory_space<vmem>>, vector<32x32xf32>
    %cst_135 = arith.constant dense<0.000000e+00> : vector<8x32xf32>
    %410 = tpu.matmul %408, %409, %cst_135 {dimension_numbers = #tpu.dot_dimension_numbers<[1], [0], [0], [1], [0, 0, 1, 1], [], []>} : vector<8x32xf32>, vector<32x32xf32>, vector<8x32xf32> -> vector<8x32xf32>
    %411 = vector.broadcast %385 : vector<1x32xf32> to vector<8x32xf32>
    %412 = arith.addf %410, %411 : vector<8x32xf32>
    %cst_136 = arith.constant 5.000000e-01 : f32
    %413 = vector.broadcast %cst_136 : f32 to vector<8x32xf32>
    %414 = arith.mulf %413, %412 : vector<8x32xf32>
    %cst_137 = arith.constant 4.471500e-02 : f32
    %415 = vector.broadcast %cst_137 : f32 to vector<8x32xf32>
    %416 = arith.mulf %415, %412 : vector<8x32xf32>
    %417 = arith.mulf %416, %412 : vector<8x32xf32>
    %418 = arith.mulf %417, %412 : vector<8x32xf32>
    %419 = arith.addf %412, %418 : vector<8x32xf32>
    %cst_138 = arith.constant 0.797884583 : f32
    %420 = vector.broadcast %cst_138 : f32 to vector<8x32xf32>
    %421 = arith.mulf %420, %419 : vector<8x32xf32>
    %422 = math.tanh %421 : vector<8x32xf32>
    %cst_139 = arith.constant 1.000000e+00 : f32
    %423 = vector.broadcast %cst_139 : f32 to vector<8x32xf32>
    %424 = arith.addf %423, %422 : vector<8x32xf32>
    %425 = arith.mulf %414, %424 : vector<8x32xf32>
    %c0_140 = arith.constant 0 : index
    %c0_141 = arith.constant 0 : index
    %426 = vector.load %arg10[%c0_140, %c0_141] : memref<32x16xf32, #tpu.memory_space<vmem>>, vector<32x16xf32>
    %cst_142 = arith.constant dense<0.000000e+00> : vector<8x16xf32>
    %427 = tpu.matmul %425, %426, %cst_142 {dimension_numbers = #tpu.dot_dimension_numbers<[1], [0], [0], [1], [0, 0, 1, 1], [], []>} : vector<8x32xf32>, vector<32x16xf32>, vector<8x16xf32> -> vector<8x16xf32>
    %428 = vector.broadcast %386 : vector<1x16xf32> to vector<8x16xf32>
    %429 = arith.addf %427, %428 : vector<8x16xf32>
    %c0_143 = arith.constant 0 : index
    %c0_144 = arith.constant 0 : index
    %c0_145 = arith.constant 0 : index
    %430 = vector.load %arg12[%c0_143, %c0_144, %c0_145] : memref<1x8x16xf32, #tpu.memory_space<vmem>>, vector<1x8x16xf32>
    %431 = vector.shape_cast %430 : vector<1x8x16xf32> to vector<8x16xf32>
    %432 = vector.shape_cast %429 : vector<8x16xf32> to vector<1x8x16xf32>
    tpu.vector_store %arg12[%c0_143, %c0_144, %c0_145], %432 {strides = array<i32>} : memref<1x8x16xf32, #tpu.memory_space<vmem>>, vector<1x8x16xf32>,
    return
  }
  func.func @transform_0(%arg0: i32) -> (i32, i32, i32) {
    %c0_i32 = arith.constant 0 : i32
    %c0_i32_0 = arith.constant 0 : i32
    %c0_i32_1 = arith.constant 0 : i32
    return %arg0, %c0_i32, %c0_i32_0 : i32, i32, i32
  }
  func.func @transform_1(%arg0: i32) -> (i32, i32, i32) {
    %c0_i32 = arith.constant 0 : i32
    %c0_i32_0 = arith.constant 0 : i32
    %c0_i32_1 = arith.constant 0 : i32
    return %arg0, %c0_i32, %c0_i32_0 : i32, i32, i32
  }
  func.func @transform_2(%arg0: i32) -> (i32, i32) {
    %c0_i32 = arith.constant 0 : i32
    %c0_i32_0 = arith.constant 0 : i32
    %c0_i32_1 = arith.constant 0 : i32
    return %c0_i32, %c0_i32_0 : i32, i32
  }
  func.func @transform_3(%arg0: i32) -> (i32, i32, i32) {
    %c0_i32 = arith.constant 0 : i32
    %c0_i32_0 = arith.constant 0 : i32
    %c0_i32_1 = arith.constant 0 : i32
    %c0_i32_2 = arith.constant 0 : i32
    return %c0_i32, %c0_i32_0, %c0_i32_1 : i32, i32, i32
  }
  func.func @transform_4(%arg0: i32) -> (i32, i32, i32) {
    %c0_i32 = arith.constant 0 : i32
    %c0_i32_0 = arith.constant 0 : i32
    %c0_i32_1 = arith.constant 0 : i32
    %c0_i32_2 = arith.constant 0 : i32
    return %c0_i32, %c0_i32_0, %c0_i32_1 : i32, i32, i32
  }
  func.func @transform_5(%arg0: i32) -> (i32, i32, i32) {
    %c0_i32 = arith.constant 0 : i32
    %c0_i32_0 = arith.constant 0 : i32
    %c0_i32_1 = arith.constant 0 : i32
    %c0_i32_2 = arith.constant 0 : i32
    return %c0_i32, %c0_i32_0, %c0_i32_1 : i32, i32, i32
  }
  func.func @transform_6(%arg0: i32) -> (i32, i32, i32) {
    %c0_i32 = arith.constant 0 : i32
    %c0_i32_0 = arith.constant 0 : i32
    %c0_i32_1 = arith.constant 0 : i32
    %c0_i32_2 = arith.constant 0 : i32
    return %c0_i32, %c0_i32_0, %c0_i32_1 : i32, i32, i32
  }
  func.func @transform_7(%arg0: i32) -> (i32, i32, i32) {
    %c0_i32 = arith.constant 0 : i32
    %c0_i32_0 = arith.constant 0 : i32
    %c0_i32_1 = arith.constant 0 : i32
    %c0_i32_2 = arith.constant 0 : i32
    return %c0_i32, %c0_i32_0, %c0_i32_1 : i32, i32, i32
  }
  func.func @transform_8(%arg0: i32) -> (i32, i32) {
    %c0_i32 = arith.constant 0 : i32
    %c0_i32_0 = arith.constant 0 : i32
    %c0_i32_1 = arith.constant 0 : i32
    return %c0_i32, %c0_i32_0 : i32, i32
  }
  func.func @transform_9(%arg0: i32) -> (i32, i32) {
    %c0_i32 = arith.constant 0 : i32
    %c0_i32_0 = arith.constant 0 : i32
    %c0_i32_1 = arith.constant 0 : i32
    return %c0_i32, %c0_i32_0 : i32, i32
  }
  func.func @transform_10(%arg0: i32) -> (i32, i32) {
    %c0_i32 = arith.constant 0 : i32
    %c0_i32_0 = arith.constant 0 : i32
    %c0_i32_1 = arith.constant 0 : i32
    return %c0_i32, %c0_i32_0 : i32, i32
  }
  func.func @transform_11(%arg0: i32) -> (i32, i32, i32) {
    %c0_i32 = arith.constant 0 : i32
    %c0_i32_0 = arith.constant 0 : i32
    %c0_i32_1 = arith.constant 0 : i32
    return %arg0, %c0_i32, %c0_i32_0 : i32, i32, i32
  }
}

</mosaic_0001>

<llo_original>
// kernel: tpu_custom_call.1
$region0: #{tpu_custom_call.1}
  #allocation0 [shape = 'u32[]', space=smem, size = 0x4, offset = 0x4, fixed_abs, tag = 'smem constant byte address 0x4 - core index']
  #allocation1 [shape = 'u32[144,128]{1,0:T(1,128)}', space=vmem, size = 0x12000, scoped, tag = 'internal scratch']
  %s0 = inlined_call_operand.hbm [shape: f32[2,8,16], index: 0, kind: input, shape index: {}]
  %s1 = inlined_call_operand.vmem [shape: f32[2,1,8], index: 1, kind: input, shape index: {}]
  %s2 = inlined_call_operand.hbm [shape: f32[16,32], index: 2, kind: input, shape index: {}]
  %s3 = inlined_call_operand.vmem [shape: f32[2,32,96], index: 3, kind: input, shape index: {}]
  %s4 = inlined_call_operand.vmem [shape: f32[2,32,32], index: 4, kind: input, shape index: {}]
  %s5 = inlined_call_operand.vmem [shape: f32[2,32,64], index: 5, kind: input, shape index: {}]
  %s6 = inlined_call_operand.vmem [shape: f32[2,64,32], index: 6, kind: input, shape index: {}]
  %s7 = inlined_call_operand.vmem [shape: f32[2,10,64], index: 7, kind: input, shape index: {}]
  %s8 = inlined_call_operand.vmem [shape: f32[32,32], index: 8, kind: input, shape index: {}]
  %s9 = inlined_call_operand.vmem [shape: f32[32,16], index: 9, kind: input, shape index: {}]
  %s10 = inlined_call_operand.vmem [shape: f32[4,32], index: 10, kind: input, shape index: {}]
  %s11 = inlined_call_operand.hbm [shape: f32[2,8,16], index: 11, kind: output, shape index: {}]
  %s12 = sld [smem:[#allocation0]]
  $region85: #{tpu_custom_call.1} parent=0
    _
  %s14 = ssub.s32 1, %s12
  %s15 = scalar_select 0, %s14, %s12
  $region1: #{tpu_custom_call.1} parent=0
    #allocation2 [shape = 'u8[8192]{0}', space=vmem, size = 0x2000, scoped, tag = 'input window, operand 0']
    #allocation3 [shape = 's32[2]{0}', space=sflag, size = 0x8, scoped, tag = 'scoped memory for tpu_custom_call.1']
    #allocation4 [shape = 's32[2]{0}', space=sflag, size = 0x8, scoped, tag = 'scoped memory for tpu_custom_call.1']
    #allocation5 [shape = 'u8[8192]{0}', space=vmem, size = 0x2000, scoped, tag = 'input window, operand 2, single buffered']
    #allocation6 [shape = 's32[1]{0}', space=sflag, size = 0x4, scoped, tag = 'scoped memory for tpu_custom_call.1']
    #allocation7 [shape = 'u8[8192]{0}', space=vmem, size = 0x2000, scoped, tag = 'output window, operand 0']
    %16 = vsyncpa [#allocation3], 0
    %s17 = scalar_lea.sflag [#allocation3], 1
    %18 = vsyncpa %s17, 0
    %19 = vsyncpa [#allocation6], 0
    %20 = vsyncpa [#allocation4], 0
    %s21 = scalar_lea.sflag [#allocation4], 1
    %22 = vsyncpa %s21, 0
    loop: start=0, step=1, limit=4
    $region2: #{tpu_custom_call.1} parent=1 // loop_pre_header
      _
    $region3: #{tpu_custom_call.1} parent=1 // loop_header
      %s24 = sphi 0, %s28
      %p25 = scmp.ge.s32.totalorder %s24, 4
      %s34 = sphi 0, %s36
      %s37 = sphi 0, %s34
      %s38 = sphi 0, %s37
      %s54 = sphi 0, %s38
      %s60 = sphi 0, %s62
      %s63 = sphi 0, %s60
      %s64 = sphi 0, %s63
      %s80 = sphi 0, %s64
      %s84 = sphi 0, %s84
      %s86 = sphi 0, %s84
      %s87 = sphi 0, %s86
      %s101 = sphi 0, %s87
      %s105 = sphi 0, %s105
      %s107 = sphi 0, %s105
      %s108 = sphi 0, %s107
      %s122 = sphi 0, %s108
      %s126 = sphi 0, %s126
      %s128 = sphi 0, %s126
      %s129 = sphi 0, %s128
      %s143 = sphi 0, %s129
      %s147 = sphi 0, %s147
      %s149 = sphi 0, %s147
      %s150 = sphi 0, %s149
      %s164 = sphi 0, %s150
      %s168 = sphi 0, %s168
      %s170 = sphi 0, %s168
      %s171 = sphi 0, %s170
      %s185 = sphi 0, %s171
      %s189 = sphi 0, %s189
      %s191 = sphi 0, %s189
      %s192 = sphi 0, %s191
      %s206 = sphi 0, %s192
      %s210 = sphi 0, %s210
      %s212 = sphi 0, %s210
      %s213 = sphi 0, %s212
      %s227 = sphi 0, %s213
      %s231 = sphi 0, %s231
      %s233 = sphi 0, %s231
      %s234 = sphi 0, %s233
      %s248 = sphi 0, %s234
      %s252 = sphi 0, %s252
      %s254 = sphi 0, %s252
      %s255 = sphi 0, %s254
      %s269 = sphi 0, %s255
      %s275 = sphi 0, %s277
      %s278 = sphi 0, %s275
      %s279 = sphi 0, %s278
      %s295 = sphi 0, %s279
    $region4: #{tpu_custom_call.1} parent=1 // loop_header_branch
      %27 = sbr.rel (%p25) target = $region8
    $region5: #{tpu_custom_call.1} parent=1 // loop_body
      %s29 = ssub.s32 %s24, 1
      %s30 = ssub.s32 %s24, 2
      %s31 = sadd.s32 %s24, 1
      %s32 = ssub.s32 %s24, %s31
      %p33 = scmp.eq.s32.totalorder %s32, 0
      %s35 = sadd.s32 %s34, 1
      %s36 = scalar_select %p33, %s34, %s35
      %p39 = pneg %p33
      %p40 = scmp.eq.s32.totalorder %s24, 1
      %p41 = por %p39, %p40
      %p42 = scmp.ne.s32.totalorder %s34, %s37
      %p43 = scmp.eq.s32.totalorder %s24, 0
      %p44 = por %p42, %p43
      %p45 = scmp.ne.s32.totalorder %s34, %s37
      %p46 = scmp.eq.s32.totalorder %s29, 1
      %p47 = por %p45, %p46
      %p48 = scmp.ne.s32.totalorder %s37, %s38
      %p49 = scmp.eq.s32.totalorder %s29, 0
      %p50 = por %p48, %p49
      %p51 = scmp.ne.s32.totalorder %s37, %s38
      %p52 = scmp.eq.s32.totalorder %s30, 1
      %p53 = por %p51, %p52
      %p55 = scmp.ne.s32.totalorder %s38, %s54
      %p56 = scmp.eq.s32.totalorder %s30, 0
      %p57 = por %p55, %p56
      %s58 = ssub.s32 %s24, %s31
      %p59 = scmp.eq.s32.totalorder %s58, 0
      %s61 = sadd.s32 %s60, 1
      %s62 = scalar_select %p59, %s60, %s61
      %p65 = pneg %p59
      %p66 = scmp.eq.s32.totalorder %s24, 1
      %p67 = por %p65, %p66
      %p68 = scmp.ne.s32.totalorder %s60, %s63
      %p69 = scmp.eq.s32.totalorder %s24, 0
      %p70 = por %p68, %p69
      %p71 = scmp.ne.s32.totalorder %s60, %s63
      %p72 = scmp.eq.s32.totalorder %s29, 1
      %p73 = por %p71, %p72
      %p74 = scmp.ne.s32.totalorder %s63, %s64
      %p75 = scmp.eq.s32.totalorder %s29, 0
      %p76 = por %p74, %p75
      %p77 = scmp.ne.s32.totalorder %s63, %s64
      %p78 = scmp.eq.s32.totalorder %s30, 1
      %p79 = por %p77, %p78
      %p81 = scmp.ne.s32.totalorder %s64, %s80
      %p82 = scmp.eq.s32.totalorder %s30, 0
      %p83 = por %p81, %p82
      %s85 = sadd.s32 %s84, 1
      %p88 = scmp.eq.s32.totalorder %s24, 1
      %p89 = scmp.ne.s32.totalorder %s84, %s86
      %p90 = scmp.eq.s32.totalorder %s24, 0
      %p91 = por %p89, %p90
      %p92 = scmp.ne.s32.totalorder %s84, %s86
      %p93 = scmp.eq.s32.totalorder %s29, 1
      %p94 = por %p92, %p93
      %p95 = scmp.ne.s32.totalorder %s86, %s87
      %p96 = scmp.eq.s32.totalorder %s29, 0
      %p97 = por %p95, %p96
      %p98 = scmp.ne.s32.totalorder %s86, %s87
      %p99 = scmp.eq.s32.totalorder %s30, 1
      %p100 = por %p98, %p99
      %p102 = scmp.ne.s32.totalorder %s87, %s101
      %p103 = scmp.eq.s32.totalorder %s30, 0
      %p104 = por %p102, %p103
      %s106 = sadd.s32 %s105, 1
      %p109 = scmp.eq.s32.totalorder %s24, 1
      %p110 = scmp.ne.s32.totalorder %s105, %s107
      %p111 = scmp.eq.s32.totalorder %s24, 0
      %p112 = por %p110, %p111
      %p113 = scmp.ne.s32.totalorder %s105, %s107
      %p114 = scmp.eq.s32.totalorder %s29, 1
      %p115 = por %p113, %p114
      %p116 = scmp.ne.s32.totalorder %s107, %s108
      %p117 = scmp.eq.s32.totalorder %s29, 0
      %p118 = por %p116, %p117
      %p119 = scmp.ne.s32.totalorder %s107, %s108
      %p120 = scmp.eq.s32.totalorder %s30, 1
      %p121 = por %p119, %p120
      %p123 = scmp.ne.s32.totalorder %s108, %s122
      %p124 = scmp.eq.s32.totalorder %s30, 0
      %p125 = por %p123, %p124
      %s127 = sadd.s32 %s126, 1
      %p130 = scmp.eq.s32.totalorder %s24, 1
      %p131 = scmp.ne.s32.totalorder %s126, %s128
      %p132 = scmp.eq.s32.totalorder %s24, 0
      %p133 = por %p131, %p132
      %p134 = scmp.ne.s32.totalorder %s126, %s128
      %p135 = scmp.eq.s32.totalorder %s29, 1
      %p136 = por %p134, %p135
      %p137 = scmp.ne.s32.totalorder %s128, %s129
      %p138 = scmp.eq.s32.totalorder %s29, 0
      %p139 = por %p137, %p138
      %p140 = scmp.ne.s32.totalorder %s128, %s129
      %p141 = scmp.eq.s32.totalorder %s30, 1
      %p142 = por %p140, %p141
      %p144 = scmp.ne.s32.totalorder %s129, %s143
      %p145 = scmp.eq.s32.totalorder %s30, 0
      %p146 = por %p144, %p145
      %s148 = sadd.s32 %s147, 1
      %p151 = scmp.eq.s32.totalorder %s24, 1
      %p152 = scmp.ne.s32.totalorder %s147, %s149
      %p153 = scmp.eq.s32.totalorder %s24, 0
      %p154 = por %p152, %p153
      %p155 = scmp.ne.s32.totalorder %s147, %s149
      %p156 = scmp.eq.s32.totalorder %s29, 1
      %p157 = por %p155, %p156
      %p158 = scmp.ne.s32.totalorder %s149, %s150
      %p159 = scmp.eq.s32.totalorder %s29, 0
      %p160 = por %p158, %p159
      %p161 = scmp.ne.s32.totalorder %s149, %s150
      %p162 = scmp.eq.s32.totalorder %s30, 1
      %p163 = por %p161, %p162
      %p165 = scmp.ne.s32.totalorder %s150, %s164
      %p166 = scmp.eq.s32.totalorder %s30, 0
      %p167 = por %p165, %p166
      %s169 = sadd.s32 %s168, 1
      %p172 = scmp.eq.s32.totalorder %s24, 1
      %p173 = scmp.ne.s32.totalorder %s168, %s170
      %p174 = scmp.eq.s32.totalorder %s24, 0
      %p175 = por %p173, %p174
      %p176 = scmp.ne.s32.totalorder %s168, %s170
      %p177 = scmp.eq.s32.totalorder %s29, 1
      %p178 = por %p176, %p177
      %p179 = scmp.ne.s32.totalorder %s170, %s171
      %p180 = scmp.eq.s32.totalorder %s29, 0
      %p181 = por %p179, %p180
      %p182 = scmp.ne.s32.totalorder %s170, %s171
      %p183 = scmp.eq.s32.totalorder %s30, 1
      %p184 = por %p182, %p183
      %p186 = scmp.ne.s32.totalorder %s171, %s185
      %p187 = scmp.eq.s32.totalorder %s30, 0
      %p188 = por %p186, %p187
      %s190 = sadd.s32 %s189, 1
      %p193 = scmp.eq.s32.totalorder %s24, 1
      %p194 = scmp.ne.s32.totalorder %s189, %s191
      %p195 = scmp.eq.s32.totalorder %s24, 0
      %p196 = por %p194, %p195
      %p197 = scmp.ne.s32.totalorder %s189, %s191
      %p198 = scmp.eq.s32.totalorder %s29, 1
      %p199 = por %p197, %p198
      %p200 = scmp.ne.s32.totalorder %s191, %s192
      %p201 = scmp.eq.s32.totalorder %s29, 0
      %p202 = por %p200, %p201
      %p203 = scmp.ne.s32.totalorder %s191, %s192
      %p204 = scmp.eq.s32.totalorder %s30, 1
      %p205 = por %p203, %p204
      %p207 = scmp.ne.s32.totalorder %s192, %s206
      %p208 = scmp.eq.s32.totalorder %s30, 0
      %p209 = por %p207, %p208
      %s211 = sadd.s32 %s210, 1
      %p214 = scmp.eq.s32.totalorder %s24, 1
      %p215 = scmp.ne.s32.totalorder %s210, %s212
      %p216 = scmp.eq.s32.totalorder %s24, 0
      %p217 = por %p215, %p216
      %p218 = scmp.ne.s32.totalorder %s210, %s212
      %p219 = scmp.eq.s32.totalorder %s29, 1
      %p220 = por %p218, %p219
      %p221 = scmp.ne.s32.totalorder %s212, %s213
      %p222 = scmp.eq.s32.totalorder %s29, 0
      %p223 = por %p221, %p222
      %p224 = scmp.ne.s32.totalorder %s212, %s213
      %p225 = scmp.eq.s32.totalorder %s30, 1
      %p226 = por %p224, %p225
      %p228 = scmp.ne.s32.totalorder %s213, %s227
      %p229 = scmp.eq.s32.totalorder %s30, 0
      %p230 = por %p228, %p229
      %s232 = sadd.s32 %s231, 1
      %p235 = scmp.eq.s32.totalorder %s24, 1
      %p236 = scmp.ne.s32.totalorder %s231, %s233
      %p237 = scmp.eq.s32.totalorder %s24, 0
      %p238 = por %p236, %p237
      %p239 = scmp.ne.s32.totalorder %s231, %s233
      %p240 = scmp.eq.s32.totalorder %s29, 1
      %p241 = por %p239, %p240
      %p242 = scmp.ne.s32.totalorder %s233, %s234
      %p243 = scmp.eq.s32.totalorder %s29, 0
      %p244 = por %p242, %p243
      %p245 = scmp.ne.s32.totalorder %s233, %s234
      %p246 = scmp.eq.s32.totalorder %s30, 1
      %p247 = por %p245, %p246
      %p249 = scmp.ne.s32.totalorder %s234, %s248
      %p250 = scmp.eq.s32.totalorder %s30, 0
      %p251 = por %p249, %p250
      %s253 = sadd.s32 %s252, 1
      %p256 = scmp.eq.s32.totalorder %s24, 1
      %p257 = scmp.ne.s32.totalorder %s252, %s254
      %p258 = scmp.eq.s32.totalorder %s24, 0
      %p259 = por %p257, %p258
      %p260 = scmp.ne.s32.totalorder %s252, %s254
      %p261 = scmp.eq.s32.totalorder %s29, 1
      %p262 = por %p260, %p261
      %p263 = scmp.ne.s32.totalorder %s254, %s255
      %p264 = scmp.eq.s32.totalorder %s29, 0
      %p265 = por %p263, %p264
      %p266 = scmp.ne.s32.totalorder %s254, %s255
      %p267 = scmp.eq.s32.totalorder %s30, 1
      %p268 = por %p266, %p267
      %p270 = scmp.ne.s32.totalorder %s255, %s269
      %p271 = scmp.eq.s32.totalorder %s30, 0
      %p272 = por %p270, %p271
      %s273 = ssub.s32 %s24, %s31
      %p274 = scmp.eq.s32.totalorder %s273, 0
      %s276 = sadd.s32 %s275, 1
      %s277 = scalar_select %p274, %s275, %s276
      %p280 = pneg %p274
      %p281 = scmp.eq.s32.totalorder %s24, 1
      %p282 = por %p280, %p281
      %p283 = scmp.ne.s32.totalorder %s275, %s278
      %p284 = scmp.eq.s32.totalorder %s24, 0
      %p285 = por %p283, %p284
      %p286 = scmp.ne.s32.totalorder %s275, %s278
      %p287 = scmp.eq.s32.totalorder %s29, 1
      %p288 = por %p286, %p287
      %p289 = scmp.ne.s32.totalorder %s278, %s279
      %p290 = scmp.eq.s32.totalorder %s29, 0
      %p291 = por %p289, %p290
      %p292 = scmp.ne.s32.totalorder %s278, %s279
      %p293 = scmp.eq.s32.totalorder %s30, 1
      %p294 = por %p292, %p293
      %p296 = scmp.ne.s32.totalorder %s279, %s295
      %p297 = scmp.eq.s32.totalorder %s30, 0
      %p298 = por %p296, %p297
      %p299 = scmp.le.s32.totalorder 1, %s24
      %p300 = scmp.lt.s32.totalorder %s24, 3
      %p301 = pnand %p299, %p300
      %p302 = pneg %p301
      // Predicated region
      $region9: #{tpu_custom_call.1} parent=5 // pred_check
        _
      $region10: #{tpu_custom_call.1} parent=5 // pred_check_branch
        %304 = sbr.rel (%p301) target = $region12
      $region11: #{tpu_custom_call.1} parent=5 // pred_region
        %s305 = ssub.s32 %s24, 1
        // Predicated region
        $region13: #{tpu_custom_call.1} parent=11 // pred_check
          %p306 = pneg %p97
        $region14: #{tpu_custom_call.1} parent=11 // pred_check_branch
          %308 = sbr.rel (%p306) target = $region16
        $region15: #{tpu_custom_call.1} parent=11 // pred_region
          %s310 = ssub.s32 256, 256
          %311 = vsyncadd [#allocation6], %s310
          %s312 = sshll.u32 [#allocation5], 4
          %s313 = int_to_ptr.vmem [resolvable:$true] %s312
          %318 = dma.hbm_to_vmem [thread:$0]  %s2, 256, %s313, [#allocation6], 128, 128, 8
        $region16: #{tpu_custom_call.1} parent=11 // pred_fallthru
          _
        // Predicated region
        $region17: #{tpu_custom_call.1} parent=11 // pred_check
          %p319 = pneg %p118
        $region18: #{tpu_custom_call.1} parent=11 // pred_check_branch
          %321 = sbr.rel (%p319) target = $region20
        $region19: #{tpu_custom_call.1} parent=11 // pred_region
          _
        $region20: #{tpu_custom_call.1} parent=11 // pred_fallthru
          _
        // Predicated region
        $region21: #{tpu_custom_call.1} parent=11 // pred_check
          %p322 = pneg %p139
        $region22: #{tpu_custom_call.1} parent=11 // pred_check_branch
          %324 = sbr.rel (%p322) target = $region24
        $region23: #{tpu_custom_call.1} parent=11 // pred_region
          _
        $region24: #{tpu_custom_call.1} parent=11 // pred_fallthru
          _
        // Predicated region
        $region25: #{tpu_custom_call.1} parent=11 // pred_check
          %p325 = pneg %p160
        $region26: #{tpu_custom_call.1} parent=11 // pred_check_branch
          %327 = sbr.rel (%p325) target = $region28
        $region27: #{tpu_custom_call.1} parent=11 // pred_region
          _
        $region28: #{tpu_custom_call.1} parent=11 // pred_fallthru
          _
        // Predicated region
        $region29: #{tpu_custom_call.1} parent=11 // pred_check
          %p328 = pneg %p181
        $region30: #{tpu_custom_call.1} parent=11 // pred_check_branch
          %330 = sbr.rel (%p328) target = $region32
        $region31: #{tpu_custom_call.1} parent=11 // pred_region
          _
        $region32: #{tpu_custom_call.1} parent=11 // pred_fallthru
          _
        // Predicated region
        $region33: #{tpu_custom_call.1} parent=11 // pred_check
          %p331 = pneg %p202
        $region34: #{tpu_custom_call.1} parent=11 // pred_check_branch
          %333 = sbr.rel (%p331) target = $region36
        $region35: #{tpu_custom_call.1} parent=11 // pred_region
          _
        $region36: #{tpu_custom_call.1} parent=11 // pred_fallthru
          _
        // Predicated region
        $region37: #{tpu_custom_call.1} parent=11 // pred_check
          %p334 = pneg %p223
        $region38: #{tpu_custom_call.1} parent=11 // pred_check_branch
          %336 = sbr.rel (%p334) target = $region40
        $region39: #{tpu_custom_call.1} parent=11 // pred_region
          _
        $region40: #{tpu_custom_call.1} parent=11 // pred_fallthru
          _
        // Predicated region
        $region41: #{tpu_custom_call.1} parent=11 // pred_check
          %p337 = pneg %p244
        $region42: #{tpu_custom_call.1} parent=11 // pred_check_branch
          %339 = sbr.rel (%p337) target = $region44
        $region43: #{tpu_custom_call.1} parent=11 // pred_region
          _
        $region44: #{tpu_custom_call.1} parent=11 // pred_fallthru
          _
        // Predicated region
        $region45: #{tpu_custom_call.1} parent=11 // pred_check
          %p340 = pneg %p265
        $region46: #{tpu_custom_call.1} parent=11 // pred_check_branch
          %342 = sbr.rel (%p340) target = $region48
        $region47: #{tpu_custom_call.1} parent=11 // pred_region
          _
        $region48: #{tpu_custom_call.1} parent=11 // pred_fallthru
          _
      $region12: #{tpu_custom_call.1} parent=5 // pred_fallthru
        _
      %p343 = scmp.lt.s32.totalorder %s24, 2
      // Predicated region
      $region49: #{tpu_custom_call.1} parent=5 // pred_check
        %p344 = pneg %p343
      $region50: #{tpu_custom_call.1} parent=5 // pred_check_branch
        %346 = sbr.rel (%p344) target = $region52
      $region51: #{tpu_custom_call.1} parent=5 // pred_region
        // Predicated region
        $region53: #{tpu_custom_call.1} parent=51 // pred_check
          %p347 = pneg %p44
        $region54: #{tpu_custom_call.1} parent=51 // pred_check_branch
          %349 = sbr.rel (%p347) target = $region56
        $region55: #{tpu_custom_call.1} parent=51 // pred_region
          %s350 = sand.u32 %s34, 1
          %s351 = scalar_lea.sflag [#allocation3], %s350
          %s352 = sand.u32 %s34, 1
          %s353 = smul.addr %s352, 8
          %s354 = scalar_lea.vmem [#allocation2], %s353
          %s356 = ssub.s32 128, 128
          %357 = vsyncadd %s351, %s356
          %s358 = smul.addr %s24, 128
          %s359 = scalar_lea.hbm %s0, %s358
          %s361 = sshll.u32 %s354, 4
          %s362 = int_to_ptr.vmem [resolvable:$true] %s361
          %364 = dma.hbm_to_vmem [thread:$0]  %s359, 128, %s362, %s351
        $region56: #{tpu_custom_call.1} parent=51 // pred_fallthru
          _
        // Predicated region
        $region57: #{tpu_custom_call.1} parent=51 // pred_check
          %p365 = pneg %p70
        $region58: #{tpu_custom_call.1} parent=51 // pred_check_branch
          %367 = sbr.rel (%p365) target = $region60
        $region59: #{tpu_custom_call.1} parent=51 // pred_region
          %p368 = scmp.lt.s32.totalorder %s24, 1
          %s369 = scalar_select %p368, %s24, 1
          %s370 = scalar_lea.vmem %s1, %s369
        $region60: #{tpu_custom_call.1} parent=51 // pred_fallthru
          _
      $region52: #{tpu_custom_call.1} parent=5 // pred_fallthru
        _
      %p371 = scmp.le.s32.totalorder 1, %s24
      %p372 = scmp.lt.s32.totalorder %s24, 3
      %p373 = pnand %p371, %p372
      %p374 = pneg %p373
      // Predicated region
      $region61: #{tpu_custom_call.1} parent=5 // pred_check
        _
      $region62: #{tpu_custom_call.1} parent=5 // pred_check_branch
        %376 = sbr.rel (%p373) target = $region64
      $region63: #{tpu_custom_call.1} parent=5 // pred_region
        %s377 = ssub.s32 %s24, 1
        %s378 = sand.u32 %s37, 1
        %s379 = scalar_lea.sflag [#allocation3], %s378
        %s380 = sand.u32 %s37, 1
        %s381 = smul.addr %s380, 8
        %s382 = scalar_lea.vmem [#allocation2], %s381
        // Predicated region
        $region65: #{tpu_custom_call.1} parent=63 // pred_check
          %p383 = pneg %p50
        $region66: #{tpu_custom_call.1} parent=63 // pred_check_branch
          %385 = sbr.rel (%p383) target = $region68
        $region67: #{tpu_custom_call.1} parent=63 // pred_region
          %386 = dma.done %s379, 128
        $region68: #{tpu_custom_call.1} parent=63 // pred_fallthru
          _
        // Predicated region
        $region69: #{tpu_custom_call.1} parent=63 // pred_check
          %p387 = pneg %p97
        $region70: #{tpu_custom_call.1} parent=63 // pred_check_branch
          %389 = sbr.rel (%p387) target = $region72
        $region71: #{tpu_custom_call.1} parent=63 // pred_region
          %390 = dma.done [#allocation6], 256
        $region72: #{tpu_custom_call.1} parent=63 // pred_fallthru
          _
        %s391 = sand.u32 %s37, 1
        %s392 = scalar_lea.sflag [#allocation3], %s391
        %s393 = sand.u32 %s37, 1
        %s394 = smul.addr %s393, 8
        %s395 = scalar_lea.vmem [#allocation2], %s394
        %p396 = pneg %p50
        %p397 = pneg %p47
        %p398 = scmp.lt.s32.totalorder %s29, 1
        %s399 = scalar_select %p398, %s29, 1
        %s400 = scalar_lea.vmem %s1, %s399
        %p401 = pneg %p76
        %p402 = pneg %p73
        %p403 = pneg %p97
        %p404 = pneg %p94
        %p405 = pneg %p118
        %p406 = pneg %p115
        %p407 = pneg %p139
        %p408 = pneg %p136
        %p409 = pneg %p160
        %p410 = pneg %p157
        %p411 = pneg %p181
        %p412 = pneg %p178
        %p413 = pneg %p202
        %p414 = pneg %p199
        %p415 = pneg %p223
        %p416 = pneg %p220
        %p417 = pneg %p244
        %p418 = pneg %p241
        %p419 = pneg %p265
        %p420 = pneg %p262
        %p421 = pneg %p291
        %p422 = pneg %p288
        %s423 = sand.u32 %s278, 1
        %s424 = scalar_lea.sflag [#allocation4], %s423
        %s425 = sand.u32 %s278, 1
        %s426 = smul.addr %s425, 8
        %s427 = scalar_lea.vmem [#allocation7], %s426
        %p428 = scmp.lt.s32.totalorder %s29, 1
        %s429 = scalar_select %p428, %s29, 1
        %s430 = scalar_lea.vmem %s1, %s429
        %v431 = vld [vmem:[%s382] sm:$0xff]
        %vm432 = vcmask 130048
        %v433 = vsel %vm432, %v431, -inf
        %434 = vmax.xlane.f32.xlu0 %v433
        %v435 = vpop.xlane.xlu0 %434
        %v436 = vlaneseq
        %v437 = vand.u32 %v436, 127
        %vm438 = vcmp.eq.f32.partialorder %v431, %v435
        %v439 = vsel %vm438, %v437, 16
        %v440 = vsel %vm432, %v439, 2147483647
        %v441 = vand.u32 %v440, 65535
        %v442 = vshra.s32 %v440, 16
        %v443 = vcvt.s32.f32 %v441
        %v444 = vcvt.s32.f32 %v442
        %445 = vmin.xlane.f32.xlu0 %v444
        %v446 = vpop.xlane.xlu0 %445
        %vm447 = vcmp.eq.f32.partialorder %v444, %v446
        %v448 = vsel %vm447, %v443, inf
        %449 = vmin.xlane.f32.xlu0 %v448
        %v450 = vpop.xlane.xlu0 %449
        %v451 = vcvt.f32.s32 %v450
        %v452 = vcvt.f32.s32 %v446
        %v453 = vshll.u32 %v452, 16
        %v454 = vadd.s32 %v453, %v451
        %vm455 = vcmp.eq.s32.totalorder %v437, %v454
        %v456 = vsel %vm455, 1, 0
        %v457 = vcvt.s32.f32 %v456
        %v458 = vld [vmem:[#allocation5] sm:$0xff]
        %v459 = vld [vmem:[#allocation5 + $0x8] sm:$0xff]
        %v461 = vsel %vm432, %v457, 0
        %463 = vmatprep.subr.mxu0 0.0
        %464 = vmatpush1.msra.mxu0 %v458
        %465 = vmatprep.subr.mxu0 0.0
        %466 = vmatpush1.msra.mxu0 %v459
        %467 = vmatprep.subr.mxu0 0.0
        %468 = vmatpush1.msra.mxu0 0.0
        %469 = vmatprep.subr.mxu0 0.0
        %470 = vmatpush1.msra.mxu0 0.0
        %471 = vmatprep.subr.mxu0 0.0
        %472 = vmatpush1.msra.mxu0 0.0
        %473 = vmatprep.subr.mxu0 0.0
        %474 = vmatpush1.msra.mxu0 0.0
        %475 = vmatprep.subr.mxu0 0.0
        %476 = vmatpush1.msra.mxu0 0.0
        %477 = vmatprep.subr.mxu0 0.0
        %478 = vmatpush1.msra.mxu0 0.0
        %479 = vmatprep.subr.mxu0 0.0
        %480 = vmatpush1.msra.mxu0 0.0
        %481 = vmatprep.subr.mxu0 0.0
        %482 = vmatpush1.msra.mxu0 0.0
        %483 = vmatprep.subr.mxu0 0.0
        %484 = vmatpush1.msra.mxu0 0.0
        %485 = vmatprep.subr.mxu0 0.0
        %486 = vmatpush1.msra.mxu0 0.0
        %487 = vmatprep.subr.mxu0 0.0
        %488 = vmatpush1.msra.mxu0 0.0
        %489 = vmatprep.subr.mxu0 0.0
        %490 = vmatpush1.msra.mxu0 0.0
        %491 = vmatprep.subr.mxu0 0.0
        %492 = vmatpush1.msra.mxu0 0.0
        %493 = vmatprep.subr.mxu0 0.0
        %494 = vmatpush1.msra.mxu0 0.0
        %495 = vmatprep.subr.mxu0 0.0
        %496 = vmatpush1.msra.mxu0 0.0
        %497 = vmatprep.subr.mxu0 0.0
        %498 = vmatpush1.msra.mxu0 0.0
        %499 = vmatprep.subr.mxu0 0.0
        %500 = vmatpush1.msra.mxu0 0.0
        %501 = vmatprep.subr.mxu0 0.0
        %502 = vmatpush1.msra.mxu0 0.0
        %503 = vmatprep.subr.mxu0 0.0
        %504 = vmatpush1.msra.mxu0 0.0
        %505 = vmatprep.subr.mxu0 0.0
        %506 = vmatpush1.msra.mxu0 0.0
        %507 = vmatprep.subr.mxu0 0.0
        %508 = vmatpush1.msra.mxu0 0.0
        %509 = vmatprep.subr.mxu0 0.0
        %510 = vmatpush1.msra.mxu0 0.0
        %511 = vmatprep.subr.mxu0 0.0
        %512 = vmatpush1.msra.mxu0 0.0
        %513 = vmatprep.subr.mxu0 0.0
        %514 = vmatpush1.msra.mxu0 0.0
        %515 = vmatprep.subr.mxu0 0.0
        %516 = vmatpush1.msra.mxu0 0.0
        %517 = vmatprep.subr.mxu0 0.0
        %518 = vmatpush1.msra.mxu0 0.0
        %519 = vmatprep.subr.mxu0 0.0
        %520 = vmatpush1.msra.mxu0 0.0
        %521 = vmatprep.subr.mxu0 0.0
        %522 = vmatpush1.msra.mxu0 0.0
        %523 = vmatprep.subr.mxu0 0.0
        %524 = vmatpush1.msra.mxu0 0.0
        %525 = vmatprep.subr.mxu0 0.0
        %526 = vmatpush1.msra.mxu0 0.0
        %527 = vmatprep.mubr.f32.mxu0 0.0
        %528 = vmatmul.mubr.f32.gmra.mrb[0].mxu0 %v461
        %v529 = vpop.f32.mrb[0].mxu0
        %v530 = vadd.f32 0.0, %v529
        %v531 = vpop.f32.mrb[0].mxu0
        %532 = vdwg.mxu0
        %v533 = vld [vmem:[%s430] sm:$0x1]
        %v534 = vld [vmem:[%s3] sm:$0xff]
        %v535 = vld [vmem:[%s3 + $0x8] sm:$0xff]
        %v536 = vld [vmem:[%s3 + $0x10] sm:$0xff]
        %v537 = vld [vmem:[%s3 + $0x18] sm:$0xff]
        %v538 = vld [vmem:[%s4] sm:$0xff]
        %v539 = vld [vmem:[%s4 + $0x8] sm:$0xff]
        %v540 = vld [vmem:[%s4 + $0x10] sm:$0xff]
        %v541 = vld [vmem:[%s4 + $0x18] sm:$0xff]
        %v542 = vld [vmem:[%s5] sm:$0xff]
        %v543 = vld [vmem:[%s5 + $0x8] sm:$0xff]
        %v544 = vld [vmem:[%s5 + $0x10] sm:$0xff]
        %v545 = vld [vmem:[%s5 + $0x18] sm:$0xff]
        %v546 = vld [vmem:[%s6] sm:$0xff]
        %v547 = vld [vmem:[%s6 + $0x8] sm:$0xff]
        %v548 = vld [vmem:[%s6 + $0x10] sm:$0xff]
        %v549 = vld [vmem:[%s6 + $0x18] sm:$0xff]
        %v550 = vld [vmem:[%s6 + $0x20] sm:$0xff]
        %v551 = vld [vmem:[%s6 + $0x28] sm:$0xff]
        %v552 = vld [vmem:[%s6 + $0x30] sm:$0xff]
        %v553 = vld [vmem:[%s6 + $0x38] sm:$0xff]
        %v554 = vld [vmem:[%s7] sm:$0xff]
        %v555 = vld [vmem:[%s7 + $0x8] sm:$0x3]
        %vm556 = vcmask 261120
        %v558 = vsel %vm556, %v530, 0
        %560 = vmatprep.subr.mxu0 0.0
        %561 = vmatpush1.msra.mxu0 %v534
        %562 = vmatprep.subr.mxu0 0.0
        %563 = vmatpush1.msra.mxu0 %v535
        %564 = vmatprep.subr.mxu0 0.0
        %565 = vmatpush1.msra.mxu0 %v536
        %566 = vmatprep.subr.mxu0 0.0
        %567 = vmatpush1.msra.mxu0 %v537
        %568 = vmatprep.subr.mxu0 0.0
        %569 = vmatpush1.msra.mxu0 0.0
        %570 = vmatprep.subr.mxu0 0.0
        %571 = vmatpush1.msra.mxu0 0.0
        %572 = vmatprep.subr.mxu0 0.0
        %573 = vmatpush1.msra.mxu0 0.0
        %574 = vmatprep.subr.mxu0 0.0
        %575 = vmatpush1.msra.mxu0 0.0
        %576 = vmatprep.subr.mxu0 0.0
        %577 = vmatpush1.msra.mxu0 0.0
        %578 = vmatprep.subr.mxu0 0.0
        %579 = vmatpush1.msra.mxu0 0.0
        %580 = vmatprep.subr.mxu0 0.0
        %581 = vmatpush1.msra.mxu0 0.0
        %582 = vmatprep.subr.mxu0 0.0
        %583 = vmatpush1.msra.mxu0 0.0
        %584 = vmatprep.subr.mxu0 0.0
        %585 = vmatpush1.msra.mxu0 0.0
        %586 = vmatprep.subr.mxu0 0.0
        %587 = vmatpush1.msra.mxu0 0.0
        %588 = vmatprep.subr.mxu0 0.0
        %589 = vmatpush1.msra.mxu0 0.0
        %590 = vmatprep.subr.mxu0 0.0
        %591 = vmatpush1.msra.mxu0 0.0
        %592 = vmatprep.subr.mxu0 0.0
        %593 = vmatpush1.msra.mxu0 0.0
        %594 = vmatprep.subr.mxu0 0.0
        %595 = vmatpush1.msra.mxu0 0.0
        %596 = vmatprep.subr.mxu0 0.0
        %597 = vmatpush1.msra.mxu0 0.0
        %598 = vmatprep.subr.mxu0 0.0
        %599 = vmatpush1.msra.mxu0 0.0
        %600 = vmatprep.subr.mxu0 0.0
        %601 = vmatpush1.msra.mxu0 0.0
        %602 = vmatprep.subr.mxu0 0.0
        %603 = vmatpush1.msra.mxu0 0.0
        %604 = vmatprep.subr.mxu0 0.0
        %605 = vmatpush1.msra.mxu0 0.0
        %606 = vmatprep.subr.mxu0 0.0
        %607 = vmatpush1.msra.mxu0 0.0
        %608 = vmatprep.subr.mxu0 0.0
        %609 = vmatpush1.msra.mxu0 0.0
        %610 = vmatprep.subr.mxu0 0.0
        %611 = vmatpush1.msra.mxu0 0.0
        %612 = vmatprep.subr.mxu0 0.0
        %613 = vmatpush1.msra.mxu0 0.0
        %614 = vmatprep.subr.mxu0 0.0
        %615 = vmatpush1.msra.mxu0 0.0
        %616 = vmatprep.subr.mxu0 0.0
        %617 = vmatpush1.msra.mxu0 0.0
        %618 = vmatprep.subr.mxu0 0.0
        %619 = vmatpush1.msra.mxu0 0.0
        %620 = vmatprep.subr.mxu0 0.0
        %621 = vmatpush1.msra.mxu0 0.0
        %622 = vmatprep.subr.mxu0 0.0
        %623 = vmatpush1.msra.mxu0 0.0
        %624 = vmatprep.mubr.f32.mxu0 0.0
        %625 = vmatmul.mubr.f32.gmra.mrb[0].mxu0 %v558
        %v626 = vpop.f32.mrb[0].mxu0
        %v627 = vadd.f32 0.0, %v626
        %v628 = vpop.f32.mrb[0].mxu0
        %629 = vdwg.mxu0
        %v630 = vlaneseq
        %v631 = vshrl.u32 %v630, 7
        %v632 = vsub.s32 0, %v631
        %v633 = vrot.slane %v554, %v632
        %v634 = vadd.f32 %v627, %v633
        %v635 = vlaneseq
        %v636 = vshrl.u32 %v635, 7
        %v637 = vsub.s32 1, %v636
        %v638 = vrot.slane %v554, %v637
        %640 = vrot.lane.b32.xlu0 %v638, 32
        %v641 = vpop.permute.xlu0 %640
        %v643 = vadd.f32 %v627, %v641
        %v644 = vlaneseq
        %v645 = vshrl.u32 %v644, 7
        %v646 = vsub.s32 2, %v645
        %v647 = vrot.slane %v554, %v646
        %649 = vrot.lane.b32.xlu0 %v647, 64
        %v650 = vpop.permute.xlu0 %649
        %v652 = vadd.f32 %v627, %v650
        %654 = vrot.lane.b32.xlu0 %v643, 96
        %v655 = vpop.permute.xlu0 %654
        %vm656 = vcmask 64512
        %v658 = vsel %vm656, %v634, 0
        %v660 = vsel %vm656, %v655, 0
        %662 = vmatprep.subr.mxu0 0.0
        %663 = vmatpush1.xpose.msra.mxu0 %v660
        %664 = vmatprep.subr.mxu0 0.0
        %665 = vmatpush1.xpose.msra.mxu0 0.0
        %666 = vmatprep.subr.mxu0 0.0
        %667 = vmatpush1.xpose.msra.mxu0 0.0
        %668 = vmatprep.subr.mxu0 0.0
        %669 = vmatpush1.xpose.msra.mxu0 0.0
        %670 = vmatprep.subr.mxu0 0.0
        %671 = vmatpush1.xpose.msra.mxu0 0.0
        %672 = vmatprep.subr.mxu0 0.0
        %673 = vmatpush1.xpose.msra.mxu0 0.0
        %674 = vmatprep.subr.mxu0 0.0
        %675 = vmatpush1.xpose.msra.mxu0 0.0
        %676 = vmatprep.subr.mxu0 0.0
        %677 = vmatpush1.xpose.msra.mxu0 0.0
        %678 = vmatprep.subr.mxu0 0.0
        %679 = vmatpush1.xpose.msra.mxu0 0.0
        %680 = vmatprep.subr.mxu0 0.0
        %681 = vmatpush1.xpose.msra.mxu0 0.0
        %682 = vmatprep.subr.mxu0 0.0
        %683 = vmatpush1.xpose.msra.mxu0 0.0
        %684 = vmatprep.subr.mxu0 0.0
        %685 = vmatpush1.xpose.msra.mxu0 0.0
        %686 = vmatprep.subr.mxu0 0.0
        %687 = vmatpush1.xpose.msra.mxu0 0.0
        %688 = vmatprep.subr.mxu0 0.0
        %689 = vmatpush1.xpose.msra.mxu0 0.0
        %690 = vmatprep.subr.mxu0 0.0
        %691 = vmatpush1.xpose.msra.mxu0 0.0
        %692 = vmatprep.subr.mxu0 0.0
        %693 = vmatpush1.xpose.msra.mxu0 0.0
        %694 = vmatprep.subr.mxu0 0.0
        %695 = vmatpush1.xpose.msra.mxu0 0.0
        %696 = vmatprep.subr.mxu0 0.0
        %697 = vmatpush1.xpose.msra.mxu0 0.0
        %698 = vmatprep.subr.mxu0 0.0
        %699 = vmatpush1.xpose.msra.mxu0 0.0
        %700 = vmatprep.subr.mxu0 0.0
        %701 = vmatpush1.xpose.msra.mxu0 0.0
        %702 = vmatprep.subr.mxu0 0.0
        %703 = vmatpush1.xpose.msra.mxu0 0.0
        %704 = vmatprep.subr.mxu0 0.0
        %705 = vmatpush1.xpose.msra.mxu0 0.0
        %706 = vmatprep.subr.mxu0 0.0
        %707 = vmatpush1.xpose.msra.mxu0 0.0
        %708 = vmatprep.subr.mxu0 0.0
        %709 = vmatpush1.xpose.msra.mxu0 0.0
        %710 = vmatprep.subr.mxu0 0.0
        %711 = vmatpush1.xpose.msra.mxu0 0.0
        %712 = vmatprep.subr.mxu0 0.0
        %713 = vmatpush1.xpose.msra.mxu0 0.0
        %714 = vmatprep.subr.mxu0 0.0
        %715 = vmatpush1.xpose.msra.mxu0 0.0
        %716 = vmatprep.subr.mxu0 0.0
        %717 = vmatpush1.xpose.msra.mxu0 0.0
        %718 = vmatprep.subr.mxu0 0.0
        %719 = vmatpush1.xpose.msra.mxu0 0.0
        %720 = vmatprep.subr.mxu0 0.0
        %721 = vmatpush1.xpose.msra.mxu0 0.0
        %722 = vmatprep.subr.mxu0 0.0
        %723 = vmatpush1.xpose.msra.mxu0 0.0
        %724 = vmatprep.subr.mxu0 0.0
        %725 = vmatpush1.xpose.msra.mxu0 0.0
        %726 = vmatprep.mubr.f32.mxu0 0.0
        %727 = vmatmul.mubr.f32.gmra.mrb[0].mxu0 %v658
        %v728 = vpop.f32.mrb[0].mxu0
        %v729 = vadd.f32 0.0, %v728
        %v730 = vpop.f32.mrb[0].mxu0
        %731 = vdwg.mxu0
        %v732 = vmul.f32 %v729, 0.35355338
        %v734 = vlaneseq
        %v735 = vshrl.u32 %v734, 7
        %v736 = vsub.s32 0, %v735
        %v737 = vrot.slane %v533, %v736
        %v739 = vadd.f32 %v732, %v737
        %v740 = vsel %vm656, %v739, -inf
        %741 = vmax.xlane.f32.xlu0 %v740
        %v742 = vpop.xlane.xlu0 %741
        %v743 = vsub.f32 %v739, %v742
        %v744 = vmul.f32 %v743, 1.442695
        %v745 = vpow.pop %v744
        %v746 = vsel %vm656, %v745, 0.0
        %747 = vadd.xlane.f32.xlu0 %v746
        %v748 = vpop.xlane.xlu0 %747
        %v749 = vrcp.pop %v748
        %v750 = vmul.f32 %v745, %v749
        %752 = vrot.lane.b32.xlu0 %v652, 64
        %v753 = vpop.permute.xlu0 %752
        %v756 = vsel %vm656, %v750, 0
        %758 = vmatprep.subr.mxu0 0.0
        %759 = vmatpush1.msra.mxu0 %v753
        %760 = vmatprep.subr.mxu0 0.0
        %761 = vmatpush1.msra.mxu0 0.0
        %762 = vmatprep.subr.mxu0 0.0
        %763 = vmatpush1.msra.mxu0 0.0
        %764 = vmatprep.subr.mxu0 0.0
        %765 = vmatpush1.msra.mxu0 0.0
        %766 = vmatprep.subr.mxu0 0.0
        %767 = vmatpush1.msra.mxu0 0.0
        %768 = vmatprep.subr.mxu0 0.0
        %769 = vmatpush1.msra.mxu0 0.0
        %770 = vmatprep.subr.mxu0 0.0
        %771 = vmatpush1.msra.mxu0 0.0
        %772 = vmatprep.subr.mxu0 0.0
        %773 = vmatpush1.msra.mxu0 0.0
        %774 = vmatprep.subr.mxu0 0.0
        %775 = vmatpush1.msra.mxu0 0.0
        %776 = vmatprep.subr.mxu0 0.0
        %777 = vmatpush1.msra.mxu0 0.0
        %778 = vmatprep.subr.mxu0 0.0
        %779 = vmatpush1.msra.mxu0 0.0
        %780 = vmatprep.subr.mxu0 0.0
        %781 = vmatpush1.msra.mxu0 0.0
        %782 = vmatprep.subr.mxu0 0.0
        %783 = vmatpush1.msra.mxu0 0.0
        %784 = vmatprep.subr.mxu0 0.0
        %785 = vmatpush1.msra.mxu0 0.0
        %786 = vmatprep.subr.mxu0 0.0
        %787 = vmatpush1.msra.mxu0 0.0
        %788 = vmatprep.subr.mxu0 0.0
        %789 = vmatpush1.msra.mxu0 0.0
        %790 = vmatprep.subr.mxu0 0.0
        %791 = vmatpush1.msra.mxu0 0.0
        %792 = vmatprep.subr.mxu0 0.0
        %793 = vmatpush1.msra.mxu0 0.0
        %794 = vmatprep.subr.mxu0 0.0
        %795 = vmatpush1.msra.mxu0 0.0
        %796 = vmatprep.subr.mxu0 0.0
        %797 = vmatpush1.msra.mxu0 0.0
        %798 = vmatprep.subr.mxu0 0.0
        %799 = vmatpush1.msra.mxu0 0.0
        %800 = vmatprep.subr.mxu0 0.0
        %801 = vmatpush1.msra.mxu0 0.0
        %802 = vmatprep.subr.mxu0 0.0
        %803 = vmatpush1.msra.mxu0 0.0
        %804 = vmatprep.subr.mxu0 0.0
        %805 = vmatpush1.msra.mxu0 0.0
        %806 = vmatprep.subr.mxu0 0.0
        %807 = vmatpush1.msra.mxu0 0.0
        %808 = vmatprep.subr.mxu0 0.0
        %809 = vmatpush1.msra.mxu0 0.0
        %810 = vmatprep.subr.mxu0 0.0
        %811 = vmatpush1.msra.mxu0 0.0
        %812 = vmatprep.subr.mxu0 0.0
        %813 = vmatpush1.msra.mxu0 0.0
        %814 = vmatprep.subr.mxu0 0.0
        %815 = vmatpush1.msra.mxu0 0.0
        %816 = vmatprep.subr.mxu0 0.0
        %817 = vmatpush1.msra.mxu0 0.0
        %818 = vmatprep.subr.mxu0 0.0
        %819 = vmatpush1.msra.mxu0 0.0
        %820 = vmatprep.subr.mxu0 0.0
        %821 = vmatpush1.msra.mxu0 0.0
        %822 = vmatprep.mubr.f32.mxu0 0.0
        %823 = vmatmul.mubr.f32.gmra.mrb[0].mxu0 %v756
        %v824 = vpop.f32.mrb[0].mxu0
        %v825 = vadd.f32 0.0, %v824
        %v826 = vpop.f32.mrb[0].mxu0
        %827 = vdwg.mxu0
        %828 = vrot.lane.b32.xlu0 %v634, 120
        %v829 = vpop.permute.xlu0 %828
        %830 = vrot.lane.b32.xlu0 %v643, 88
        %v831 = vpop.permute.xlu0 %830
        %v832 = vsel %vm656, %v829, 0
        %v834 = vsel %vm656, %v831, 0
        %836 = vmatprep.subr.mxu0 0.0
        %837 = vmatpush1.xpose.msra.mxu0 %v834
        %838 = vmatprep.subr.mxu0 0.0
        %839 = vmatpush1.xpose.msra.mxu0 0.0
        %840 = vmatprep.subr.mxu0 0.0
        %841 = vmatpush1.xpose.msra.mxu0 0.0
        %842 = vmatprep.subr.mxu0 0.0
        %843 = vmatpush1.xpose.msra.mxu0 0.0
        %844 = vmatprep.subr.mxu0 0.0
        %845 = vmatpush1.xpose.msra.mxu0 0.0
        %846 = vmatprep.subr.mxu0 0.0
        %847 = vmatpush1.xpose.msra.mxu0 0.0
        %848 = vmatprep.subr.mxu0 0.0
        %849 = vmatpush1.xpose.msra.mxu0 0.0
        %850 = vmatprep.subr.mxu0 0.0
        %851 = vmatpush1.xpose.msra.mxu0 0.0
        %852 = vmatprep.subr.mxu0 0.0
        %853 = vmatpush1.xpose.msra.mxu0 0.0
        %854 = vmatprep.subr.mxu0 0.0
        %855 = vmatpush1.xpose.msra.mxu0 0.0
        %856 = vmatprep.subr.mxu0 0.0
        %857 = vmatpush1.xpose.msra.mxu0 0.0
        %858 = vmatprep.subr.mxu0 0.0
        %859 = vmatpush1.xpose.msra.mxu0 0.0
        %860 = vmatprep.subr.mxu0 0.0
        %861 = vmatpush1.xpose.msra.mxu0 0.0
        %862 = vmatprep.subr.mxu0 0.0
        %863 = vmatpush1.xpose.msra.mxu0 0.0
        %864 = vmatprep.subr.mxu0 0.0
        %865 = vmatpush1.xpose.msra.mxu0 0.0
        %866 = vmatprep.subr.mxu0 0.0
        %867 = vmatpush1.xpose.msra.mxu0 0.0
        %868 = vmatprep.subr.mxu0 0.0
        %869 = vmatpush1.xpose.msra.mxu0 0.0
        %870 = vmatprep.subr.mxu0 0.0
        %871 = vmatpush1.xpose.msra.mxu0 0.0
        %872 = vmatprep.subr.mxu0 0.0
        %873 = vmatpush1.xpose.msra.mxu0 0.0
        %874 = vmatprep.subr.mxu0 0.0
        %875 = vmatpush1.xpose.msra.mxu0 0.0
        %876 = vmatprep.subr.mxu0 0.0
        %877 = vmatpush1.xpose.msra.mxu0 0.0
        %878 = vmatprep.subr.mxu0 0.0
        %879 = vmatpush1.xpose.msra.mxu0 0.0
        %880 = vmatprep.subr.mxu0 0.0
        %881 = vmatpush1.xpose.msra.mxu0 0.0
        %882 = vmatprep.subr.mxu0 0.0
        %883 = vmatpush1.xpose.msra.mxu0 0.0
        %884 = vmatprep.subr.mxu0 0.0
        %885 = vmatpush1.xpose.msra.mxu0 0.0
        %886 = vmatprep.subr.mxu0 0.0
        %887 = vmatpush1.xpose.msra.mxu0 0.0
        %888 = vmatprep.subr.mxu0 0.0
        %889 = vmatpush1.xpose.msra.mxu0 0.0
        %890 = vmatprep.subr.mxu0 0.0
        %891 = vmatpush1.xpose.msra.mxu0 0.0
        %892 = vmatprep.subr.mxu0 0.0
        %893 = vmatpush1.xpose.msra.mxu0 0.0
        %894 = vmatprep.subr.mxu0 0.0
        %895 = vmatpush1.xpose.msra.mxu0 0.0
        %896 = vmatprep.subr.mxu0 0.0
        %897 = vmatpush1.xpose.msra.mxu0 0.0
        %898 = vmatprep.subr.mxu0 0.0
        %899 = vmatpush1.xpose.msra.mxu0 0.0
        %900 = vmatprep.mubr.f32.mxu0 0.0
        %901 = vmatmul.mubr.f32.gmra.mrb[0].mxu0 %v832
        %v902 = vpop.f32.mrb[0].mxu0
        %v903 = vadd.f32 0.0, %v902
        %v904 = vpop.f32.mrb[0].mxu0
        %905 = vdwg.mxu0
        %v906 = vmul.f32 %v903, 0.35355338
        %v907 = vadd.f32 %v906, %v737
        %v908 = vsel %vm656, %v907, -inf
        %909 = vmax.xlane.f32.xlu0 %v908
        %v910 = vpop.xlane.xlu0 %909
        %v911 = vsub.f32 %v907, %v910
        %v912 = vmul.f32 %v911, 1.442695
        %v913 = vpow.pop %v912
        %v914 = vsel %vm656, %v913, 0.0
        %915 = vadd.xlane.f32.xlu0 %v914
        %v916 = vpop.xlane.xlu0 %915
        %v917 = vrcp.pop %v916
        %v918 = vmul.f32 %v913, %v917
        %919 = vrot.lane.b32.xlu0 %v652, 56
        %v920 = vpop.permute.xlu0 %919
        %v923 = vsel %vm656, %v918, 0
        %925 = vmatprep.subr.mxu0 0.0
        %926 = vmatpush1.msra.mxu0 %v920
        %927 = vmatprep.subr.mxu0 0.0
        %928 = vmatpush1.msra.mxu0 0.0
        %929 = vmatprep.subr.mxu0 0.0
        %930 = vmatpush1.msra.mxu0 0.0
        %931 = vmatprep.subr.mxu0 0.0
        %932 = vmatpush1.msra.mxu0 0.0
        %933 = vmatprep.subr.mxu0 0.0
        %934 = vmatpush1.msra.mxu0 0.0
        %935 = vmatprep.subr.mxu0 0.0
        %936 = vmatpush1.msra.mxu0 0.0
        %937 = vmatprep.subr.mxu0 0.0
        %938 = vmatpush1.msra.mxu0 0.0
        %939 = vmatprep.subr.mxu0 0.0
        %940 = vmatpush1.msra.mxu0 0.0
        %941 = vmatprep.subr.mxu0 0.0
        %942 = vmatpush1.msra.mxu0 0.0
        %943 = vmatprep.subr.mxu0 0.0
        %944 = vmatpush1.msra.mxu0 0.0
        %945 = vmatprep.subr.mxu0 0.0
        %946 = vmatpush1.msra.mxu0 0.0
        %947 = vmatprep.subr.mxu0 0.0
        %948 = vmatpush1.msra.mxu0 0.0
        %949 = vmatprep.subr.mxu0 0.0
        %950 = vmatpush1.msra.mxu0 0.0
        %951 = vmatprep.subr.mxu0 0.0
        %952 = vmatpush1.msra.mxu0 0.0
        %953 = vmatprep.subr.mxu0 0.0
        %954 = vmatpush1.msra.mxu0 0.0
        %955 = vmatprep.subr.mxu0 0.0
        %956 = vmatpush1.msra.mxu0 0.0
        %957 = vmatprep.subr.mxu0 0.0
        %958 = vmatpush1.msra.mxu0 0.0
        %959 = vmatprep.subr.mxu0 0.0
        %960 = vmatpush1.msra.mxu0 0.0
        %961 = vmatprep.subr.mxu0 0.0
        %962 = vmatpush1.msra.mxu0 0.0
        %963 = vmatprep.subr.mxu0 0.0
        %964 = vmatpush1.msra.mxu0 0.0
        %965 = vmatprep.subr.mxu0 0.0
        %966 = vmatpush1.msra.mxu0 0.0
        %967 = vmatprep.subr.mxu0 0.0
        %968 = vmatpush1.msra.mxu0 0.0
        %969 = vmatprep.subr.mxu0 0.0
        %970 = vmatpush1.msra.mxu0 0.0
        %971 = vmatprep.subr.mxu0 0.0
        %972 = vmatpush1.msra.mxu0 0.0
        %973 = vmatprep.subr.mxu0 0.0
        %974 = vmatpush1.msra.mxu0 0.0
        %975 = vmatprep.subr.mxu0 0.0
        %976 = vmatpush1.msra.mxu0 0.0
        %977 = vmatprep.subr.mxu0 0.0
        %978 = vmatpush1.msra.mxu0 0.0
        %979 = vmatprep.subr.mxu0 0.0
        %980 = vmatpush1.msra.mxu0 0.0
        %981 = vmatprep.subr.mxu0 0.0
        %982 = vmatpush1.msra.mxu0 0.0
        %983 = vmatprep.subr.mxu0 0.0
        %984 = vmatpush1.msra.mxu0 0.0
        %985 = vmatprep.subr.mxu0 0.0
        %986 = vmatpush1.msra.mxu0 0.0
        %987 = vmatprep.subr.mxu0 0.0
        %988 = vmatpush1.msra.mxu0 0.0
        %989 = vmatprep.mubr.f32.mxu0 0.0
        %990 = vmatmul.mubr.f32.gmra.mrb[0].mxu0 %v923
        %v991 = vpop.f32.mrb[0].mxu0
        %v992 = vadd.f32 0.0, %v991
        %v993 = vpop.f32.mrb[0].mxu0
        %994 = vdwg.mxu0
        %v996 = vsel %vm656, %v992, 0
        %998 = vmatprep.subr.mxu0 0.0
        %999 = vmatpush1.msra.mxu0 %v539
        %1000 = vmatprep.subr.mxu0 0.0
        %1001 = vmatpush1.msra.mxu0 0.0
        %1002 = vmatprep.subr.mxu0 0.0
        %1003 = vmatpush1.msra.mxu0 0.0
        %1004 = vmatprep.subr.mxu0 0.0
        %1005 = vmatpush1.msra.mxu0 0.0
        %1006 = vmatprep.subr.mxu0 0.0
        %1007 = vmatpush1.msra.mxu0 0.0
        %1008 = vmatprep.subr.mxu0 0.0
        %1009 = vmatpush1.msra.mxu0 0.0
        %1010 = vmatprep.subr.mxu0 0.0
        %1011 = vmatpush1.msra.mxu0 0.0
        %1012 = vmatprep.subr.mxu0 0.0
        %1013 = vmatpush1.msra.mxu0 0.0
        %1014 = vmatprep.subr.mxu0 0.0
        %1015 = vmatpush1.msra.mxu0 0.0
        %1016 = vmatprep.subr.mxu0 0.0
        %1017 = vmatpush1.msra.mxu0 0.0
        %1018 = vmatprep.subr.mxu0 0.0
        %1019 = vmatpush1.msra.mxu0 0.0
        %1020 = vmatprep.subr.mxu0 0.0
        %1021 = vmatpush1.msra.mxu0 0.0
        %1022 = vmatprep.subr.mxu0 0.0
        %1023 = vmatpush1.msra.mxu0 0.0
        %1024 = vmatprep.subr.mxu0 0.0
        %1025 = vmatpush1.msra.mxu0 0.0
        %1026 = vmatprep.subr.mxu0 0.0
        %1027 = vmatpush1.msra.mxu0 0.0
        %1028 = vmatprep.subr.mxu0 0.0
        %1029 = vmatpush1.msra.mxu0 0.0
        %1030 = vmatprep.subr.mxu0 0.0
        %1031 = vmatpush1.msra.mxu0 0.0
        %1032 = vmatprep.subr.mxu0 0.0
        %1033 = vmatpush1.msra.mxu0 0.0
        %1034 = vmatprep.subr.mxu0 0.0
        %1035 = vmatpush1.msra.mxu0 0.0
        %1036 = vmatprep.subr.mxu0 0.0
        %1037 = vmatpush1.msra.mxu0 0.0
        %1038 = vmatprep.subr.mxu0 0.0
        %1039 = vmatpush1.msra.mxu0 0.0
        %1040 = vmatprep.subr.mxu0 0.0
        %1041 = vmatpush1.msra.mxu0 0.0
        %1042 = vmatprep.subr.mxu0 0.0
        %1043 = vmatpush1.msra.mxu0 0.0
        %1044 = vmatprep.subr.mxu0 0.0
        %1045 = vmatpush1.msra.mxu0 0.0
        %1046 = vmatprep.subr.mxu0 0.0
        %1047 = vmatpush1.msra.mxu0 0.0
        %1048 = vmatprep.subr.mxu0 0.0
        %1049 = vmatpush1.msra.mxu0 0.0
        %1050 = vmatprep.subr.mxu0 0.0
        %1051 = vmatpush1.msra.mxu0 0.0
        %1052 = vmatprep.subr.mxu0 0.0
        %1053 = vmatpush1.msra.mxu0 0.0
        %1054 = vmatprep.subr.mxu0 0.0
        %1055 = vmatpush1.msra.mxu0 0.0
        %1056 = vmatprep.subr.mxu0 0.0
        %1057 = vmatpush1.msra.mxu0 0.0
        %1058 = vmatprep.subr.mxu0 0.0
        %1059 = vmatpush1.msra.mxu0 0.0
        %1060 = vmatprep.subr.mxu0 0.0
        %1061 = vmatpush1.msra.mxu0 0.0
        %1062 = vmatprep.mubr.f32.mxu0 0.0
        %1063 = vmatmul.mubr.f32.gmra.mrb[0].mxu0 %v996
        %v1064 = vpop.f32.mrb[0].mxu0
        %v1065 = vadd.f32 0.0, %v1064
        %v1066 = vpop.f32.mrb[0].mxu0
        %1067 = vdwg.mxu0
        %v1069 = vsel %vm656, %v825, 0
        %1071 = vmatprep.subr.mxu0 0.0
        %1072 = vmatpush1.msra.mxu0 %v538
        %1073 = vmatprep.subr.mxu0 0.0
        %1074 = vmatpush1.msra.mxu0 0.0
        %1075 = vmatprep.subr.mxu0 0.0
        %1076 = vmatpush1.msra.mxu0 0.0
        %1077 = vmatprep.subr.mxu0 0.0
        %1078 = vmatpush1.msra.mxu0 0.0
        %1079 = vmatprep.subr.mxu0 0.0
        %1080 = vmatpush1.msra.mxu0 0.0
        %1081 = vmatprep.subr.mxu0 0.0
        %1082 = vmatpush1.msra.mxu0 0.0
        %1083 = vmatprep.subr.mxu0 0.0
        %1084 = vmatpush1.msra.mxu0 0.0
        %1085 = vmatprep.subr.mxu0 0.0
        %1086 = vmatpush1.msra.mxu0 0.0
        %1087 = vmatprep.subr.mxu0 0.0
        %1088 = vmatpush1.msra.mxu0 0.0
        %1089 = vmatprep.subr.mxu0 0.0
        %1090 = vmatpush1.msra.mxu0 0.0
        %1091 = vmatprep.subr.mxu0 0.0
        %1092 = vmatpush1.msra.mxu0 0.0
        %1093 = vmatprep.subr.mxu0 0.0
        %1094 = vmatpush1.msra.mxu0 0.0
        %1095 = vmatprep.subr.mxu0 0.0
        %1096 = vmatpush1.msra.mxu0 0.0
        %1097 = vmatprep.subr.mxu0 0.0
        %1098 = vmatpush1.msra.mxu0 0.0
        %1099 = vmatprep.subr.mxu0 0.0
        %1100 = vmatpush1.msra.mxu0 0.0
        %1101 = vmatprep.subr.mxu0 0.0
        %1102 = vmatpush1.msra.mxu0 0.0
        %1103 = vmatprep.subr.mxu0 0.0
        %1104 = vmatpush1.msra.mxu0 0.0
        %1105 = vmatprep.subr.mxu0 0.0
        %1106 = vmatpush1.msra.mxu0 0.0
        %1107 = vmatprep.subr.mxu0 0.0
        %1108 = vmatpush1.msra.mxu0 0.0
        %1109 = vmatprep.subr.mxu0 0.0
        %1110 = vmatpush1.msra.mxu0 0.0
        %1111 = vmatprep.subr.mxu0 0.0
        %1112 = vmatpush1.msra.mxu0 0.0
        %1113 = vmatprep.subr.mxu0 0.0
        %1114 = vmatpush1.msra.mxu0 0.0
        %1115 = vmatprep.subr.mxu0 0.0
        %1116 = vmatpush1.msra.mxu0 0.0
        %1117 = vmatprep.subr.mxu0 0.0
        %1118 = vmatpush1.msra.mxu0 0.0
        %1119 = vmatprep.subr.mxu0 0.0
        %1120 = vmatpush1.msra.mxu0 0.0
        %1121 = vmatprep.subr.mxu0 0.0
        %1122 = vmatpush1.msra.mxu0 0.0
        %1123 = vmatprep.subr.mxu0 0.0
        %1124 = vmatpush1.msra.mxu0 0.0
        %1125 = vmatprep.subr.mxu0 0.0
        %1126 = vmatpush1.msra.mxu0 0.0
        %1127 = vmatprep.subr.mxu0 0.0
        %1128 = vmatpush1.msra.mxu0 0.0
        %1129 = vmatprep.subr.mxu0 0.0
        %1130 = vmatpush1.msra.mxu0 0.0
        %1131 = vmatprep.subr.mxu0 0.0
        %1132 = vmatpush1.msra.mxu0 0.0
        %1133 = vmatprep.subr.mxu0 0.0
        %1134 = vmatpush1.msra.mxu0 0.0
        %1135 = vmatprep.mubr.f32.mxu0 0.0
        %1136 = vmatmul.mubr.f32.gmra.mrb[0].mxu0 %v1069
        %v1137 = vpop.f32.mrb[0].mxu0
        %v1138 = vadd.f32 %v1065, %v1137
        %v1139 = vpop.f32.mrb[0].mxu0
        %1140 = vdwg.mxu0
        %1141 = vrot.lane.b32.xlu0 %v634, 112
        %v1142 = vpop.permute.xlu0 %1141
        %1143 = vrot.lane.b32.xlu0 %v643, 80
        %v1144 = vpop.permute.xlu0 %1143
        %v1145 = vsel %vm656, %v1142, 0
        %v1147 = vsel %vm656, %v1144, 0
        %1149 = vmatprep.subr.mxu0 0.0
        %1150 = vmatpush1.xpose.msra.mxu0 %v1147
        %1151 = vmatprep.subr.mxu0 0.0
        %1152 = vmatpush1.xpose.msra.mxu0 0.0
        %1153 = vmatprep.subr.mxu0 0.0
        %1154 = vmatpush1.xpose.msra.mxu0 0.0
        %1155 = vmatprep.subr.mxu0 0.0
        %1156 = vmatpush1.xpose.msra.mxu0 0.0
        %1157 = vmatprep.subr.mxu0 0.0
        %1158 = vmatpush1.xpose.msra.mxu0 0.0
        %1159 = vmatprep.subr.mxu0 0.0
        %1160 = vmatpush1.xpose.msra.mxu0 0.0
        %1161 = vmatprep.subr.mxu0 0.0
        %1162 = vmatpush1.xpose.msra.mxu0 0.0
        %1163 = vmatprep.subr.mxu0 0.0
        %1164 = vmatpush1.xpose.msra.mxu0 0.0
        %1165 = vmatprep.subr.mxu0 0.0
        %1166 = vmatpush1.xpose.msra.mxu0 0.0
        %1167 = vmatprep.subr.mxu0 0.0
        %1168 = vmatpush1.xpose.msra.mxu0 0.0
        %1169 = vmatprep.subr.mxu0 0.0
        %1170 = vmatpush1.xpose.msra.mxu0 0.0
        %1171 = vmatprep.subr.mxu0 0.0
        %1172 = vmatpush1.xpose.msra.mxu0 0.0
        %1173 = vmatprep.subr.mxu0 0.0
        %1174 = vmatpush1.xpose.msra.mxu0 0.0
        %1175 = vmatprep.subr.mxu0 0.0
        %1176 = vmatpush1.xpose.msra.mxu0 0.0
        %1177 = vmatprep.subr.mxu0 0.0
        %1178 = vmatpush1.xpose.msra.mxu0 0.0
        %1179 = vmatprep.subr.mxu0 0.0
        %1180 = vmatpush1.xpose.msra.mxu0 0.0
        %1181 = vmatprep.subr.mxu0 0.0
        %1182 = vmatpush1.xpose.msra.mxu0 0.0
        %1183 = vmatprep.subr.mxu0 0.0
        %1184 = vmatpush1.xpose.msra.mxu0 0.0
        %1185 = vmatprep.subr.mxu0 0.0
        %1186 = vmatpush1.xpose.msra.mxu0 0.0
        %1187 = vmatprep.subr.mxu0 0.0
        %1188 = vmatpush1.xpose.msra.mxu0 0.0
        %1189 = vmatprep.subr.mxu0 0.0
        %1190 = vmatpush1.xpose.msra.mxu0 0.0
        %1191 = vmatprep.subr.mxu0 0.0
        %1192 = vmatpush1.xpose.msra.mxu0 0.0
        %1193 = vmatprep.subr.mxu0 0.0
        %1194 = vmatpush1.xpose.msra.mxu0 0.0
        %1195 = vmatprep.subr.mxu0 0.0
        %1196 = vmatpush1.xpose.msra.mxu0 0.0
        %1197 = vmatprep.subr.mxu0 0.0
        %1198 = vmatpush1.xpose.msra.mxu0 0.0
        %1199 = vmatprep.subr.mxu0 0.0
        %1200 = vmatpush1.xpose.msra.mxu0 0.0
        %1201 = vmatprep.subr.mxu0 0.0
        %1202 = vmatpush1.xpose.msra.mxu0 0.0
        %1203 = vmatprep.subr.mxu0 0.0
        %1204 = vmatpush1.xpose.msra.mxu0 0.0
        %1205 = vmatprep.subr.mxu0 0.0
        %1206 = vmatpush1.xpose.msra.mxu0 0.0
        %1207 = vmatprep.subr.mxu0 0.0
        %1208 = vmatpush1.xpose.msra.mxu0 0.0
        %1209 = vmatprep.subr.mxu0 0.0
        %1210 = vmatpush1.xpose.msra.mxu0 0.0
        %1211 = vmatprep.subr.mxu0 0.0
        %1212 = vmatpush1.xpose.msra.mxu0 0.0
        %1213 = vmatprep.mubr.f32.mxu0 0.0
        %1214 = vmatmul.mubr.f32.gmra.mrb[0].mxu0 %v1145
        %v1215 = vpop.f32.mrb[0].mxu0
        %v1216 = vadd.f32 0.0, %v1215
        %v1217 = vpop.f32.mrb[0].mxu0
        %1218 = vdwg.mxu0
        %v1219 = vmul.f32 %v1216, 0.35355338
        %v1220 = vadd.f32 %v1219, %v737
        %v1221 = vsel %vm656, %v1220, -inf
        %1222 = vmax.xlane.f32.xlu0 %v1221
        %v1223 = vpop.xlane.xlu0 %1222
        %v1224 = vsub.f32 %v1220, %v1223
        %v1225 = vmul.f32 %v1224, 1.442695
        %v1226 = vpow.pop %v1225
        %v1227 = vsel %vm656, %v1226, 0.0
        %1228 = vadd.xlane.f32.xlu0 %v1227
        %v1229 = vpop.xlane.xlu0 %1228
        %v1230 = vrcp.pop %v1229
        %v1231 = vmul.f32 %v1226, %v1230
        %1232 = vrot.lane.b32.xlu0 %v652, 48
        %v1233 = vpop.permute.xlu0 %1232
        %v1236 = vsel %vm656, %v1231, 0
        %1238 = vmatprep.subr.mxu0 0.0
        %1239 = vmatpush1.msra.mxu0 %v1233
        %1240 = vmatprep.subr.mxu0 0.0
        %1241 = vmatpush1.msra.mxu0 0.0
        %1242 = vmatprep.subr.mxu0 0.0
        %1243 = vmatpush1.msra.mxu0 0.0
        %1244 = vmatprep.subr.mxu0 0.0
        %1245 = vmatpush1.msra.mxu0 0.0
        %1246 = vmatprep.subr.mxu0 0.0
        %1247 = vmatpush1.msra.mxu0 0.0
        %1248 = vmatprep.subr.mxu0 0.0
        %1249 = vmatpush1.msra.mxu0 0.0
        %1250 = vmatprep.subr.mxu0 0.0
        %1251 = vmatpush1.msra.mxu0 0.0
        %1252 = vmatprep.subr.mxu0 0.0
        %1253 = vmatpush1.msra.mxu0 0.0
        %1254 = vmatprep.subr.mxu0 0.0
        %1255 = vmatpush1.msra.mxu0 0.0
        %1256 = vmatprep.subr.mxu0 0.0
        %1257 = vmatpush1.msra.mxu0 0.0
        %1258 = vmatprep.subr.mxu0 0.0
        %1259 = vmatpush1.msra.mxu0 0.0
        %1260 = vmatprep.subr.mxu0 0.0
        %1261 = vmatpush1.msra.mxu0 0.0
        %1262 = vmatprep.subr.mxu0 0.0
        %1263 = vmatpush1.msra.mxu0 0.0
        %1264 = vmatprep.subr.mxu0 0.0
        %1265 = vmatpush1.msra.mxu0 0.0
        %1266 = vmatprep.subr.mxu0 0.0
        %1267 = vmatpush1.msra.mxu0 0.0
        %1268 = vmatprep.subr.mxu0 0.0
        %1269 = vmatpush1.msra.mxu0 0.0
        %1270 = vmatprep.subr.mxu0 0.0
        %1271 = vmatpush1.msra.mxu0 0.0
        %1272 = vmatprep.subr.mxu0 0.0
        %1273 = vmatpush1.msra.mxu0 0.0
        %1274 = vmatprep.subr.mxu0 0.0
        %1275 = vmatpush1.msra.mxu0 0.0
        %1276 = vmatprep.subr.mxu0 0.0
        %1277 = vmatpush1.msra.mxu0 0.0
        %1278 = vmatprep.subr.mxu0 0.0
        %1279 = vmatpush1.msra.mxu0 0.0
        %1280 = vmatprep.subr.mxu0 0.0
        %1281 = vmatpush1.msra.mxu0 0.0
        %1282 = vmatprep.subr.mxu0 0.0
        %1283 = vmatpush1.msra.mxu0 0.0
        %1284 = vmatprep.subr.mxu0 0.0
        %1285 = vmatpush1.msra.mxu0 0.0
        %1286 = vmatprep.subr.mxu0 0.0
        %1287 = vmatpush1.msra.mxu0 0.0
        %1288 = vmatprep.subr.mxu0 0.0
        %1289 = vmatpush1.msra.mxu0 0.0
        %1290 = vmatprep.subr.mxu0 0.0
        %1291 = vmatpush1.msra.mxu0 0.0
        %1292 = vmatprep.subr.mxu0 0.0
        %1293 = vmatpush1.msra.mxu0 0.0
        %1294 = vmatprep.subr.mxu0 0.0
        %1295 = vmatpush1.msra.mxu0 0.0
        %1296 = vmatprep.subr.mxu0 0.0
        %1297 = vmatpush1.msra.mxu0 0.0
        %1298 = vmatprep.subr.mxu0 0.0
        %1299 = vmatpush1.msra.mxu0 0.0
        %1300 = vmatprep.subr.mxu0 0.0
        %1301 = vmatpush1.msra.mxu0 0.0
        %1302 = vmatprep.mubr.f32.mxu0 0.0
        %1303 = vmatmul.mubr.f32.gmra.mrb[0].mxu0 %v1236
        %v1304 = vpop.f32.mrb[0].mxu0
        %v1305 = vadd.f32 0.0, %v1304
        %v1306 = vpop.f32.mrb[0].mxu0
        %1307 = vdwg.mxu0
        %v1309 = vsel %vm656, %v1305, 0
        %1311 = vmatprep.subr.mxu0 0.0
        %1312 = vmatpush1.msra.mxu0 %v540
        %1313 = vmatprep.subr.mxu0 0.0
        %1314 = vmatpush1.msra.mxu0 0.0
        %1315 = vmatprep.subr.mxu0 0.0
        %1316 = vmatpush1.msra.mxu0 0.0
        %1317 = vmatprep.subr.mxu0 0.0
        %1318 = vmatpush1.msra.mxu0 0.0
        %1319 = vmatprep.subr.mxu0 0.0
        %1320 = vmatpush1.msra.mxu0 0.0
        %1321 = vmatprep.subr.mxu0 0.0
        %1322 = vmatpush1.msra.mxu0 0.0
        %1323 = vmatprep.subr.mxu0 0.0
        %1324 = vmatpush1.msra.mxu0 0.0
        %1325 = vmatprep.subr.mxu0 0.0
        %1326 = vmatpush1.msra.mxu0 0.0
        %1327 = vmatprep.subr.mxu0 0.0
        %1328 = vmatpush1.msra.mxu0 0.0
        %1329 = vmatprep.subr.mxu0 0.0
        %1330 = vmatpush1.msra.mxu0 0.0
        %1331 = vmatprep.subr.mxu0 0.0
        %1332 = vmatpush1.msra.mxu0 0.0
        %1333 = vmatprep.subr.mxu0 0.0
        %1334 = vmatpush1.msra.mxu0 0.0
        %1335 = vmatprep.subr.mxu0 0.0
        %1336 = vmatpush1.msra.mxu0 0.0
        %1337 = vmatprep.subr.mxu0 0.0
        %1338 = vmatpush1.msra.mxu0 0.0
        %1339 = vmatprep.subr.mxu0 0.0
        %1340 = vmatpush1.msra.mxu0 0.0
        %1341 = vmatprep.subr.mxu0 0.0
        %1342 = vmatpush1.msra.mxu0 0.0
        %1343 = vmatprep.subr.mxu0 0.0
        %1344 = vmatpush1.msra.mxu0 0.0
        %1345 = vmatprep.subr.mxu0 0.0
        %1346 = vmatpush1.msra.mxu0 0.0
        %1347 = vmatprep.subr.mxu0 0.0
        %1348 = vmatpush1.msra.mxu0 0.0
        %1349 = vmatprep.subr.mxu0 0.0
        %1350 = vmatpush1.msra.mxu0 0.0
        %1351 = vmatprep.subr.mxu0 0.0
        %1352 = vmatpush1.msra.mxu0 0.0
        %1353 = vmatprep.subr.mxu0 0.0
        %1354 = vmatpush1.msra.mxu0 0.0
        %1355 = vmatprep.subr.mxu0 0.0
        %1356 = vmatpush1.msra.mxu0 0.0
        %1357 = vmatprep.subr.mxu0 0.0
        %1358 = vmatpush1.msra.mxu0 0.0
        %1359 = vmatprep.subr.mxu0 0.0
        %1360 = vmatpush1.msra.mxu0 0.0
        %1361 = vmatprep.subr.mxu0 0.0
        %1362 = vmatpush1.msra.mxu0 0.0
        %1363 = vmatprep.subr.mxu0 0.0
        %1364 = vmatpush1.msra.mxu0 0.0
        %1365 = vmatprep.subr.mxu0 0.0
        %1366 = vmatpush1.msra.mxu0 0.0
        %1367 = vmatprep.subr.mxu0 0.0
        %1368 = vmatpush1.msra.mxu0 0.0
        %1369 = vmatprep.subr.mxu0 0.0
        %1370 = vmatpush1.msra.mxu0 0.0
        %1371 = vmatprep.subr.mxu0 0.0
        %1372 = vmatpush1.msra.mxu0 0.0
        %1373 = vmatprep.subr.mxu0 0.0
        %1374 = vmatpush1.msra.mxu0 0.0
        %1375 = vmatprep.mubr.f32.mxu0 0.0
        %1376 = vmatmul.mubr.f32.gmra.mrb[0].mxu0 %v1309
        %v1377 = vpop.f32.mrb[0].mxu0
        %v1378 = vadd.f32 0.0, %v1377
        %v1379 = vpop.f32.mrb[0].mxu0
        %1380 = vdwg.mxu0
        %v1381 = vadd.f32 %v1138, %v1378
        %1382 = vrot.lane.b32.xlu0 %v634, 104
        %v1383 = vpop.permute.xlu0 %1382
        %1384 = vrot.lane.b32.xlu0 %v643, 72
        %v1385 = vpop.permute.xlu0 %1384
        %v1386 = vsel %vm656, %v1383, 0
        %v1388 = vsel %vm656, %v1385, 0
        %1390 = vmatprep.subr.mxu0 0.0
        %1391 = vmatpush1.xpose.msra.mxu0 %v1388
        %1392 = vmatprep.subr.mxu0 0.0
        %1393 = vmatpush1.xpose.msra.mxu0 0.0
        %1394 = vmatprep.subr.mxu0 0.0
        %1395 = vmatpush1.xpose.msra.mxu0 0.0
        %1396 = vmatprep.subr.mxu0 0.0
        %1397 = vmatpush1.xpose.msra.mxu0 0.0
        %1398 = vmatprep.subr.mxu0 0.0
        %1399 = vmatpush1.xpose.msra.mxu0 0.0
        %1400 = vmatprep.subr.mxu0 0.0
        %1401 = vmatpush1.xpose.msra.mxu0 0.0
        %1402 = vmatprep.subr.mxu0 0.0
        %1403 = vmatpush1.xpose.msra.mxu0 0.0
        %1404 = vmatprep.subr.mxu0 0.0
        %1405 = vmatpush1.xpose.msra.mxu0 0.0
        %1406 = vmatprep.subr.mxu0 0.0
        %1407 = vmatpush1.xpose.msra.mxu0 0.0
        %1408 = vmatprep.subr.mxu0 0.0
        %1409 = vmatpush1.xpose.msra.mxu0 0.0
        %1410 = vmatprep.subr.mxu0 0.0
        %1411 = vmatpush1.xpose.msra.mxu0 0.0
        %1412 = vmatprep.subr.mxu0 0.0
        %1413 = vmatpush1.xpose.msra.mxu0 0.0
        %1414 = vmatprep.subr.mxu0 0.0
        %1415 = vmatpush1.xpose.msra.mxu0 0.0
        %1416 = vmatprep.subr.mxu0 0.0
        %1417 = vmatpush1.xpose.msra.mxu0 0.0
        %1418 = vmatprep.subr.mxu0 0.0
        %1419 = vmatpush1.xpose.msra.mxu0 0.0
        %1420 = vmatprep.subr.mxu0 0.0
        %1421 = vmatpush1.xpose.msra.mxu0 0.0
        %1422 = vmatprep.subr.mxu0 0.0
        %1423 = vmatpush1.xpose.msra.mxu0 0.0
        %1424 = vmatprep.subr.mxu0 0.0
        %1425 = vmatpush1.xpose.msra.mxu0 0.0
        %1426 = vmatprep.subr.mxu0 0.0
        %1427 = vmatpush1.xpose.msra.mxu0 0.0
        %1428 = vmatprep.subr.mxu0 0.0
        %1429 = vmatpush1.xpose.msra.mxu0 0.0
        %1430 = vmatprep.subr.mxu0 0.0
        %1431 = vmatpush1.xpose.msra.mxu0 0.0
        %1432 = vmatprep.subr.mxu0 0.0
        %1433 = vmatpush1.xpose.msra.mxu0 0.0
        %1434 = vmatprep.subr.mxu0 0.0
        %1435 = vmatpush1.xpose.msra.mxu0 0.0
        %1436 = vmatprep.subr.mxu0 0.0
        %1437 = vmatpush1.xpose.msra.mxu0 0.0
        %1438 = vmatprep.subr.mxu0 0.0
        %1439 = vmatpush1.xpose.msra.mxu0 0.0
        %1440 = vmatprep.subr.mxu0 0.0
        %1441 = vmatpush1.xpose.msra.mxu0 0.0
        %1442 = vmatprep.subr.mxu0 0.0
        %1443 = vmatpush1.xpose.msra.mxu0 0.0
        %1444 = vmatprep.subr.mxu0 0.0
        %1445 = vmatpush1.xpose.msra.mxu0 0.0
        %1446 = vmatprep.subr.mxu0 0.0
        %1447 = vmatpush1.xpose.msra.mxu0 0.0
        %1448 = vmatprep.subr.mxu0 0.0
        %1449 = vmatpush1.xpose.msra.mxu0 0.0
        %1450 = vmatprep.subr.mxu0 0.0
        %1451 = vmatpush1.xpose.msra.mxu0 0.0
        %1452 = vmatprep.subr.mxu0 0.0
        %1453 = vmatpush1.xpose.msra.mxu0 0.0
        %1454 = vmatprep.mubr.f32.mxu0 0.0
        %1455 = vmatmul.mubr.f32.gmra.mrb[0].mxu0 %v1386
        %v1456 = vpop.f32.mrb[0].mxu0
        %v1457 = vadd.f32 0.0, %v1456
        %v1458 = vpop.f32.mrb[0].mxu0
        %1459 = vdwg.mxu0
        %v1460 = vmul.f32 %v1457, 0.35355338
        %v1461 = vadd.f32 %v1460, %v737
        %v1462 = vsel %vm656, %v1461, -inf
        %1463 = vmax.xlane.f32.xlu0 %v1462
        %v1464 = vpop.xlane.xlu0 %1463
        %v1465 = vsub.f32 %v1461, %v1464
        %v1466 = vmul.f32 %v1465, 1.442695
        %v1467 = vpow.pop %v1466
        %v1468 = vsel %vm656, %v1467, 0.0
        %1469 = vadd.xlane.f32.xlu0 %v1468
        %v1470 = vpop.xlane.xlu0 %1469
        %v1471 = vrcp.pop %v1470
        %v1472 = vmul.f32 %v1467, %v1471
        %1473 = vrot.lane.b32.xlu0 %v652, 40
        %v1474 = vpop.permute.xlu0 %1473
        %v1477 = vsel %vm656, %v1472, 0
        %1479 = vmatprep.subr.mxu0 0.0
        %1480 = vmatpush1.msra.mxu0 %v1474
        %1481 = vmatprep.subr.mxu0 0.0
        %1482 = vmatpush1.msra.mxu0 0.0
        %1483 = vmatprep.subr.mxu0 0.0
        %1484 = vmatpush1.msra.mxu0 0.0
        %1485 = vmatprep.subr.mxu0 0.0
        %1486 = vmatpush1.msra.mxu0 0.0
        %1487 = vmatprep.subr.mxu0 0.0
        %1488 = vmatpush1.msra.mxu0 0.0
        %1489 = vmatprep.subr.mxu0 0.0
        %1490 = vmatpush1.msra.mxu0 0.0
        %1491 = vmatprep.subr.mxu0 0.0
        %1492 = vmatpush1.msra.mxu0 0.0
        %1493 = vmatprep.subr.mxu0 0.0
        %1494 = vmatpush1.msra.mxu0 0.0
        %1495 = vmatprep.subr.mxu0 0.0
        %1496 = vmatpush1.msra.mxu0 0.0
        %1497 = vmatprep.subr.mxu0 0.0
        %1498 = vmatpush1.msra.mxu0 0.0
        %1499 = vmatprep.subr.mxu0 0.0
        %1500 = vmatpush1.msra.mxu0 0.0
        %1501 = vmatprep.subr.mxu0 0.0
        %1502 = vmatpush1.msra.mxu0 0.0
        %1503 = vmatprep.subr.mxu0 0.0
        %1504 = vmatpush1.msra.mxu0 0.0
        %1505 = vmatprep.subr.mxu0 0.0
        %1506 = vmatpush1.msra.mxu0 0.0
        %1507 = vmatprep.subr.mxu0 0.0
        %1508 = vmatpush1.msra.mxu0 0.0
        %1509 = vmatprep.subr.mxu0 0.0
        %1510 = vmatpush1.msra.mxu0 0.0
        %1511 = vmatprep.subr.mxu0 0.0
        %1512 = vmatpush1.msra.mxu0 0.0
        %1513 = vmatprep.subr.mxu0 0.0
        %1514 = vmatpush1.msra.mxu0 0.0
        %1515 = vmatprep.subr.mxu0 0.0
        %1516 = vmatpush1.msra.mxu0 0.0
        %1517 = vmatprep.subr.mxu0 0.0
        %1518 = vmatpush1.msra.mxu0 0.0
        %1519 = vmatprep.subr.mxu0 0.0
        %1520 = vmatpush1.msra.mxu0 0.0
        %1521 = vmatprep.subr.mxu0 0.0
        %1522 = vmatpush1.msra.mxu0 0.0
        %1523 = vmatprep.subr.mxu0 0.0
        %1524 = vmatpush1.msra.mxu0 0.0
        %1525 = vmatprep.subr.mxu0 0.0
        %1526 = vmatpush1.msra.mxu0 0.0
        %1527 = vmatprep.subr.mxu0 0.0
        %1528 = vmatpush1.msra.mxu0 0.0
        %1529 = vmatprep.subr.mxu0 0.0
        %1530 = vmatpush1.msra.mxu0 0.0
        %1531 = vmatprep.subr.mxu0 0.0
        %1532 = vmatpush1.msra.mxu0 0.0
        %1533 = vmatprep.subr.mxu0 0.0
        %1534 = vmatpush1.msra.mxu0 0.0
        %1535 = vmatprep.subr.mxu0 0.0
        %1536 = vmatpush1.msra.mxu0 0.0
        %1537 = vmatprep.subr.mxu0 0.0
        %1538 = vmatpush1.msra.mxu0 0.0
        %1539 = vmatprep.subr.mxu0 0.0
        %1540 = vmatpush1.msra.mxu0 0.0
        %1541 = vmatprep.subr.mxu0 0.0
        %1542 = vmatpush1.msra.mxu0 0.0
        %1543 = vmatprep.mubr.f32.mxu0 0.0
        %1544 = vmatmul.mubr.f32.gmra.mrb[0].mxu0 %v1477
        %v1545 = vpop.f32.mrb[0].mxu0
        %v1546 = vadd.f32 0.0, %v1545
        %v1547 = vpop.f32.mrb[0].mxu0
        %1548 = vdwg.mxu0
        %v1550 = vsel %vm656, %v1546, 0
        %1552 = vmatprep.subr.mxu0 0.0
        %1553 = vmatpush1.msra.mxu0 %v541
        %1554 = vmatprep.subr.mxu0 0.0
        %1555 = vmatpush1.msra.mxu0 0.0
        %1556 = vmatprep.subr.mxu0 0.0
        %1557 = vmatpush1.msra.mxu0 0.0
        %1558 = vmatprep.subr.mxu0 0.0
        %1559 = vmatpush1.msra.mxu0 0.0
        %1560 = vmatprep.subr.mxu0 0.0
        %1561 = vmatpush1.msra.mxu0 0.0
        %1562 = vmatprep.subr.mxu0 0.0
        %1563 = vmatpush1.msra.mxu0 0.0
        %1564 = vmatprep.subr.mxu0 0.0
        %1565 = vmatpush1.msra.mxu0 0.0
        %1566 = vmatprep.subr.mxu0 0.0
        %1567 = vmatpush1.msra.mxu0 0.0
        %1568 = vmatprep.subr.mxu0 0.0
        %1569 = vmatpush1.msra.mxu0 0.0
        %1570 = vmatprep.subr.mxu0 0.0
        %1571 = vmatpush1.msra.mxu0 0.0
        %1572 = vmatprep.subr.mxu0 0.0
        %1573 = vmatpush1.msra.mxu0 0.0
        %1574 = vmatprep.subr.mxu0 0.0
        %1575 = vmatpush1.msra.mxu0 0.0
        %1576 = vmatprep.subr.mxu0 0.0
        %1577 = vmatpush1.msra.mxu0 0.0
        %1578 = vmatprep.subr.mxu0 0.0
        %1579 = vmatpush1.msra.mxu0 0.0
        %1580 = vmatprep.subr.mxu0 0.0
        %1581 = vmatpush1.msra.mxu0 0.0
        %1582 = vmatprep.subr.mxu0 0.0
        %1583 = vmatpush1.msra.mxu0 0.0
        %1584 = vmatprep.subr.mxu0 0.0
        %1585 = vmatpush1.msra.mxu0 0.0
        %1586 = vmatprep.subr.mxu0 0.0
        %1587 = vmatpush1.msra.mxu0 0.0
        %1588 = vmatprep.subr.mxu0 0.0
        %1589 = vmatpush1.msra.mxu0 0.0
        %1590 = vmatprep.subr.mxu0 0.0
        %1591 = vmatpush1.msra.mxu0 0.0
        %1592 = vmatprep.subr.mxu0 0.0
        %1593 = vmatpush1.msra.mxu0 0.0
        %1594 = vmatprep.subr.mxu0 0.0
        %1595 = vmatpush1.msra.mxu0 0.0
        %1596 = vmatprep.subr.mxu0 0.0
        %1597 = vmatpush1.msra.mxu0 0.0
        %1598 = vmatprep.subr.mxu0 0.0
        %1599 = vmatpush1.msra.mxu0 0.0
        %1600 = vmatprep.subr.mxu0 0.0
        %1601 = vmatpush1.msra.mxu0 0.0
        %1602 = vmatprep.subr.mxu0 0.0
        %1603 = vmatpush1.msra.mxu0 0.0
        %1604 = vmatprep.subr.mxu0 0.0
        %1605 = vmatpush1.msra.mxu0 0.0
        %1606 = vmatprep.subr.mxu0 0.0
        %1607 = vmatpush1.msra.mxu0 0.0
        %1608 = vmatprep.subr.mxu0 0.0
        %1609 = vmatpush1.msra.mxu0 0.0
        %1610 = vmatprep.subr.mxu0 0.0
        %1611 = vmatpush1.msra.mxu0 0.0
        %1612 = vmatprep.subr.mxu0 0.0
        %1613 = vmatpush1.msra.mxu0 0.0
        %1614 = vmatprep.subr.mxu0 0.0
        %1615 = vmatpush1.msra.mxu0 0.0
        %1616 = vmatprep.mubr.f32.mxu0 0.0
        %1617 = vmatmul.mubr.f32.gmra.mrb[0].mxu0 %v1550
        %v1618 = vpop.f32.mrb[0].mxu0
        %v1619 = vadd.f32 0.0, %v1618
        %v1620 = vpop.f32.mrb[0].mxu0
        %1621 = vdwg.mxu0
        %v1622 = vadd.f32 %v1381, %v1619
        %v1623 = vlaneseq
        %v1624 = vshrl.u32 %v1623, 7
        %v1625 = vsub.s32 3, %v1624
        %v1626 = vrot.slane %v554, %v1625
        %v1627 = vadd.f32 %v1622, %v1626
        %v1628 = vadd.f32 %v530, %v1627
        %v1629 = vsel %vm556, %v1628, 0.0
        %1630 = vadd.xlane.f32.xlu0 %v1629
        %v1631 = vpop.xlane.xlu0 %1630
        %v1632 = vrcp.pop 32.0
        %v1633 = vmul.f32 %v1631, %v1632
        %v1634 = vsub.f32 %v1628, %v1633
        %v1635 = vmul.f32 %v1634, %v1634
        %v1636 = vsel %vm556, %v1635, 0.0
        %1637 = vadd.xlane.f32.xlu0 %v1636
        %v1638 = vpop.xlane.xlu0 %1637
        %v1639 = vmul.f32 %v1638, %v1632
        %v1640 = vadd.f32 %v1639, 1e-05
        %v1641 = vrsqrt.pop %v1640
        %v1642 = vmul.f32 %v1634, %v1641
        %v1643 = vlaneseq
        %v1644 = vshrl.u32 %v1643, 7
        %v1645 = vsub.s32 4, %v1644
        %v1646 = vrot.slane %v554, %v1645
        %v1647 = vmul.f32 %v1642, %v1646
        %v1648 = vlaneseq
        %v1649 = vshrl.u32 %v1648, 7
        %v1650 = vsub.s32 5, %v1649
        %v1651 = vrot.slane %v554, %v1650
        %v1652 = vadd.f32 %v1647, %v1651
        %v1653 = vlaneseq
        %v1654 = vshrl.u32 %v1653, 7
        %v1655 = vsub.s32 6, %v1654
        %v1656 = vrot.slane %v554, %v1655
        %v1658 = vsel %vm556, %v1652, 0
        %1660 = vmatprep.subr.mxu0 0.0
        %1661 = vmatpush1.msra.mxu0 %v542
        %1662 = vmatprep.subr.mxu0 0.0
        %1663 = vmatpush1.msra.mxu0 %v543
        %1664 = vmatprep.subr.mxu0 0.0
        %1665 = vmatpush1.msra.mxu0 %v544
        %1666 = vmatprep.subr.mxu0 0.0
        %1667 = vmatpush1.msra.mxu0 %v545
        %1668 = vmatprep.subr.mxu0 0.0
        %1669 = vmatpush1.msra.mxu0 0.0
        %1670 = vmatprep.subr.mxu0 0.0
        %1671 = vmatpush1.msra.mxu0 0.0
        %1672 = vmatprep.subr.mxu0 0.0
        %1673 = vmatpush1.msra.mxu0 0.0
        %1674 = vmatprep.subr.mxu0 0.0
        %1675 = vmatpush1.msra.mxu0 0.0
        %1676 = vmatprep.subr.mxu0 0.0
        %1677 = vmatpush1.msra.mxu0 0.0
        %1678 = vmatprep.subr.mxu0 0.0
        %1679 = vmatpush1.msra.mxu0 0.0
        %1680 = vmatprep.subr.mxu0 0.0
        %1681 = vmatpush1.msra.mxu0 0.0
        %1682 = vmatprep.subr.mxu0 0.0
        %1683 = vmatpush1.msra.mxu0 0.0
        %1684 = vmatprep.subr.mxu0 0.0
        %1685 = vmatpush1.msra.mxu0 0.0
        %1686 = vmatprep.subr.mxu0 0.0
        %1687 = vmatpush1.msra.mxu0 0.0
        %1688 = vmatprep.subr.mxu0 0.0
        %1689 = vmatpush1.msra.mxu0 0.0
        %1690 = vmatprep.subr.mxu0 0.0
        %1691 = vmatpush1.msra.mxu0 0.0
        %1692 = vmatprep.subr.mxu0 0.0
        %1693 = vmatpush1.msra.mxu0 0.0
        %1694 = vmatprep.subr.mxu0 0.0
        %1695 = vmatpush1.msra.mxu0 0.0
        %1696 = vmatprep.subr.mxu0 0.0
        %1697 = vmatpush1.msra.mxu0 0.0
        %1698 = vmatprep.subr.mxu0 0.0
        %1699 = vmatpush1.msra.mxu0 0.0
        %1700 = vmatprep.subr.mxu0 0.0
        %1701 = vmatpush1.msra.mxu0 0.0
        %1702 = vmatprep.subr.mxu0 0.0
        %1703 = vmatpush1.msra.mxu0 0.0
        %1704 = vmatprep.subr.mxu0 0.0
        %1705 = vmatpush1.msra.mxu0 0.0
        %1706 = vmatprep.subr.mxu0 0.0
        %1707 = vmatpush1.msra.mxu0 0.0
        %1708 = vmatprep.subr.mxu0 0.0
        %1709 = vmatpush1.msra.mxu0 0.0
        %1710 = vmatprep.subr.mxu0 0.0
        %1711 = vmatpush1.msra.mxu0 0.0
        %1712 = vmatprep.subr.mxu0 0.0
        %1713 = vmatpush1.msra.mxu0 0.0
        %1714 = vmatprep.subr.mxu0 0.0
        %1715 = vmatpush1.msra.mxu0 0.0
        %1716 = vmatprep.subr.mxu0 0.0
        %1717 = vmatpush1.msra.mxu0 0.0
        %1718 = vmatprep.subr.mxu0 0.0
        %1719 = vmatpush1.msra.mxu0 0.0
        %1720 = vmatprep.subr.mxu0 0.0
        %1721 = vmatpush1.msra.mxu0 0.0
        %1722 = vmatprep.subr.mxu0 0.0
        %1723 = vmatpush1.msra.mxu0 0.0
        %1724 = vmatprep.mubr.f32.mxu0 0.0
        %1725 = vmatmul.mubr.f32.gmra.mrb[0].mxu0 %v1658
        %v1726 = vpop.f32.mrb[0].mxu0
        %v1727 = vadd.f32 %v1656, %v1726
        %v1728 = vpop.f32.mrb[0].mxu0
        %1729 = vdwg.mxu0
        %v1730 = vmul.f32 %v1727, 0.5
        %v1731 = vmul.f32 %v1727, 0.044715
        %v1732 = vmul.f32 %v1731, %v1727
        %v1733 = vmul.f32 %v1732, %v1727
        %v1734 = vadd.f32 %v1727, %v1733
        %v1735 = vmul.f32 %v1734, 0.7978846
        %v1736 = vtanh.pop %v1735
        %v1737 = vadd.f32 %v1736, 1.0
        %v1738 = vmul.f32 %v1730, %v1737
        %v1739 = vlaneseq
        %v1740 = vshrl.u32 %v1739, 7
        %v1741 = vsub.s32 7, %v1740
        %v1742 = vrot.slane %v554, %v1741
        %vm1743 = vcmask 523264
        %v1745 = vsel %vm1743, %v1738, 0
        %1747 = vmatprep.subr.mxu0 0.0
        %1748 = vmatpush1.msra.mxu0 %v546
        %1749 = vmatprep.subr.mxu0 0.0
        %1750 = vmatpush1.msra.mxu0 %v547
        %1751 = vmatprep.subr.mxu0 0.0
        %1752 = vmatpush1.msra.mxu0 %v548
        %1753 = vmatprep.subr.mxu0 0.0
        %1754 = vmatpush1.msra.mxu0 %v549
        %1755 = vmatprep.subr.mxu0 0.0
        %1756 = vmatpush1.msra.mxu0 %v550
        %1757 = vmatprep.subr.mxu0 0.0
        %1758 = vmatpush1.msra.mxu0 %v551
        %1759 = vmatprep.subr.mxu0 0.0
        %1760 = vmatpush1.msra.mxu0 %v552
        %1761 = vmatprep.subr.mxu0 0.0
        %1762 = vmatpush1.msra.mxu0 %v553
        %1763 = vmatprep.subr.mxu0 0.0
        %1764 = vmatpush1.msra.mxu0 0.0
        %1765 = vmatprep.subr.mxu0 0.0
        %1766 = vmatpush1.msra.mxu0 0.0
        %1767 = vmatprep.subr.mxu0 0.0
        %1768 = vmatpush1.msra.mxu0 0.0
        %1769 = vmatprep.subr.mxu0 0.0
        %1770 = vmatpush1.msra.mxu0 0.0
        %1771 = vmatprep.subr.mxu0 0.0
        %1772 = vmatpush1.msra.mxu0 0.0
        %1773 = vmatprep.subr.mxu0 0.0
        %1774 = vmatpush1.msra.mxu0 0.0
        %1775 = vmatprep.subr.mxu0 0.0
        %1776 = vmatpush1.msra.mxu0 0.0
        %1777 = vmatprep.subr.mxu0 0.0
        %1778 = vmatpush1.msra.mxu0 0.0
        %1779 = vmatprep.subr.mxu0 0.0
        %1780 = vmatpush1.msra.mxu0 0.0
        %1781 = vmatprep.subr.mxu0 0.0
        %1782 = vmatpush1.msra.mxu0 0.0
        %1783 = vmatprep.subr.mxu0 0.0
        %1784 = vmatpush1.msra.mxu0 0.0
        %1785 = vmatprep.subr.mxu0 0.0
        %1786 = vmatpush1.msra.mxu0 0.0
        %1787 = vmatprep.subr.mxu0 0.0
        %1788 = vmatpush1.msra.mxu0 0.0
        %1789 = vmatprep.subr.mxu0 0.0
        %1790 = vmatpush1.msra.mxu0 0.0
        %1791 = vmatprep.subr.mxu0 0.0
        %1792 = vmatpush1.msra.mxu0 0.0
        %1793 = vmatprep.subr.mxu0 0.0
        %1794 = vmatpush1.msra.mxu0 0.0
        %1795 = vmatprep.subr.mxu0 0.0
        %1796 = vmatpush1.msra.mxu0 0.0
        %1797 = vmatprep.subr.mxu0 0.0
        %1798 = vmatpush1.msra.mxu0 0.0
        %1799 = vmatprep.subr.mxu0 0.0
        %1800 = vmatpush1.msra.mxu0 0.0
        %1801 = vmatprep.subr.mxu0 0.0
        %1802 = vmatpush1.msra.mxu0 0.0
        %1803 = vmatprep.subr.mxu0 0.0
        %1804 = vmatpush1.msra.mxu0 0.0
        %1805 = vmatprep.subr.mxu0 0.0
        %1806 = vmatpush1.msra.mxu0 0.0
        %1807 = vmatprep.subr.mxu0 0.0
        %1808 = vmatpush1.msra.mxu0 0.0
        %1809 = vmatprep.subr.mxu0 0.0
        %1810 = vmatpush1.msra.mxu0 0.0
        %1811 = vmatprep.mubr.f32.mxu0 0.0
        %1812 = vmatmul.mubr.f32.gmra.mrb[0].mxu0 %v1745
        %v1813 = vpop.f32.mrb[0].mxu0
        %v1814 = vadd.f32 %v1742, %v1813
        %v1815 = vpop.f32.mrb[0].mxu0
        %1816 = vdwg.mxu0
        %v1817 = vadd.f32 %v1652, %v1814
        %v1818 = vsel %vm556, %v1817, 0.0
        %1819 = vadd.xlane.f32.xlu0 %v1818
        %v1820 = vpop.xlane.xlu0 %1819
        %v1821 = vmul.f32 %v1820, %v1632
        %v1822 = vsub.f32 %v1817, %v1821
        %v1823 = vmul.f32 %v1822, %v1822
        %v1824 = vsel %vm556, %v1823, 0.0
        %1825 = vadd.xlane.f32.xlu0 %v1824
        %v1826 = vpop.xlane.xlu0 %1825
        %v1827 = vmul.f32 %v1826, %v1632
        %v1828 = vadd.f32 %v1827, 1e-05
        %v1829 = vrsqrt.pop %v1828
        %v1830 = vmul.f32 %v1822, %v1829
        %v1831 = vlaneseq
        %v1832 = vshrl.u32 %v1831, 7
        %v1833 = vsub.s32 0, %v1832
        %v1834 = vrot.slane %v555, %v1833
        %v1835 = vmul.f32 %v1830, %v1834
        %v1836 = vlaneseq
        %v1837 = vshrl.u32 %v1836, 7
        %v1838 = vsub.s32 1, %v1837
        %v1839 = vrot.slane %v555, %v1838
        %v1840 = vadd.f32 %v1835, %v1839
        %s1841 = scalar_lea.vmem %s3, 32
        %v1842 = vld [vmem:[%s1841] sm:$0xff]
        %v1843 = vld [vmem:[%s1841 + $0x8] sm:$0xff]
        %v1844 = vld [vmem:[%s1841 + $0x10] sm:$0xff]
        %v1845 = vld [vmem:[%s1841 + $0x18] sm:$0xff]
        %s1846 = scalar_lea.vmem %s4, 32
        %v1847 = vld [vmem:[%s1846] sm:$0xff]
        %v1848 = vld [vmem:[%s1846 + $0x8] sm:$0xff]
        %v1849 = vld [vmem:[%s1846 + $0x10] sm:$0xff]
        %v1850 = vld [vmem:[%s1846 + $0x18] sm:$0xff]
        %s1851 = scalar_lea.vmem %s5, 32
        %v1852 = vld [vmem:[%s1851] sm:$0xff]
        %v1853 = vld [vmem:[%s1851 + $0x8] sm:$0xff]
        %v1854 = vld [vmem:[%s1851 + $0x10] sm:$0xff]
        %v1855 = vld [vmem:[%s1851 + $0x18] sm:$0xff]
        %s1856 = scalar_lea.vmem %s6, 64
        %v1857 = vld [vmem:[%s1856] sm:$0xff]
        %v1858 = vld [vmem:[%s1856 + $0x8] sm:$0xff]
        %v1859 = vld [vmem:[%s1856 + $0x10] sm:$0xff]
        %v1860 = vld [vmem:[%s1856 + $0x18] sm:$0xff]
        %v1861 = vld [vmem:[%s1856 + $0x20] sm:$0xff]
        %v1862 = vld [vmem:[%s1856 + $0x28] sm:$0xff]
        %v1863 = vld [vmem:[%s1856 + $0x30] sm:$0xff]
        %v1864 = vld [vmem:[%s1856 + $0x38] sm:$0xff]
        %s1865 = scalar_lea.vmem %s7, 16
        %v1866 = vld [vmem:[%s1865] sm:$0xff]
        %v1867 = vld [vmem:[%s1865 + $0x8] sm:$0x3]
        %v1869 = vsel %vm556, %v1840, 0
        %1871 = vmatprep.subr.mxu0 0.0
        %1872 = vmatpush1.msra.mxu0 %v1842
        %1873 = vmatprep.subr.mxu0 0.0
        %1874 = vmatpush1.msra.mxu0 %v1843
        %1875 = vmatprep.subr.mxu0 0.0
        %1876 = vmatpush1.msra.mxu0 %v1844
        %1877 = vmatprep.subr.mxu0 0.0
        %1878 = vmatpush1.msra.mxu0 %v1845
        %1879 = vmatprep.subr.mxu0 0.0
        %1880 = vmatpush1.msra.mxu0 0.0
        %1881 = vmatprep.subr.mxu0 0.0
        %1882 = vmatpush1.msra.mxu0 0.0
        %1883 = vmatprep.subr.mxu0 0.0
        %1884 = vmatpush1.msra.mxu0 0.0
        %1885 = vmatprep.subr.mxu0 0.0
        %1886 = vmatpush1.msra.mxu0 0.0
        %1887 = vmatprep.subr.mxu0 0.0
        %1888 = vmatpush1.msra.mxu0 0.0
        %1889 = vmatprep.subr.mxu0 0.0
        %1890 = vmatpush1.msra.mxu0 0.0
        %1891 = vmatprep.subr.mxu0 0.0
        %1892 = vmatpush1.msra.mxu0 0.0
        %1893 = vmatprep.subr.mxu0 0.0
        %1894 = vmatpush1.msra.mxu0 0.0
        %1895 = vmatprep.subr.mxu0 0.0
        %1896 = vmatpush1.msra.mxu0 0.0
        %1897 = vmatprep.subr.mxu0 0.0
        %1898 = vmatpush1.msra.mxu0 0.0
        %1899 = vmatprep.subr.mxu0 0.0
        %1900 = vmatpush1.msra.mxu0 0.0
        %1901 = vmatprep.subr.mxu0 0.0
        %1902 = vmatpush1.msra.mxu0 0.0
        %1903 = vmatprep.subr.mxu0 0.0
        %1904 = vmatpush1.msra.mxu0 0.0
        %1905 = vmatprep.subr.mxu0 0.0
        %1906 = vmatpush1.msra.mxu0 0.0
        %1907 = vmatprep.subr.mxu0 0.0
        %1908 = vmatpush1.msra.mxu0 0.0
        %1909 = vmatprep.subr.mxu0 0.0
        %1910 = vmatpush1.msra.mxu0 0.0
        %1911 = vmatprep.subr.mxu0 0.0
        %1912 = vmatpush1.msra.mxu0 0.0
        %1913 = vmatprep.subr.mxu0 0.0
        %1914 = vmatpush1.msra.mxu0 0.0
        %1915 = vmatprep.subr.mxu0 0.0
        %1916 = vmatpush1.msra.mxu0 0.0
        %1917 = vmatprep.subr.mxu0 0.0
        %1918 = vmatpush1.msra.mxu0 0.0
        %1919 = vmatprep.subr.mxu0 0.0
        %1920 = vmatpush1.msra.mxu0 0.0
        %1921 = vmatprep.subr.mxu0 0.0
        %1922 = vmatpush1.msra.mxu0 0.0
        %1923 = vmatprep.subr.mxu0 0.0
        %1924 = vmatpush1.msra.mxu0 0.0
        %1925 = vmatprep.subr.mxu0 0.0
        %1926 = vmatpush1.msra.mxu0 0.0
        %1927 = vmatprep.subr.mxu0 0.0
        %1928 = vmatpush1.msra.mxu0 0.0
        %1929 = vmatprep.subr.mxu0 0.0
        %1930 = vmatpush1.msra.mxu0 0.0
        %1931 = vmatprep.subr.mxu0 0.0
        %1932 = vmatpush1.msra.mxu0 0.0
        %1933 = vmatprep.subr.mxu0 0.0
        %1934 = vmatpush1.msra.mxu0 0.0
        %1935 = vmatprep.mubr.f32.mxu0 0.0
        %1936 = vmatmul.mubr.f32.gmra.mrb[0].mxu0 %v1869
        %v1937 = vpop.f32.mrb[0].mxu0
        %v1938 = vadd.f32 0.0, %v1937
        %v1939 = vpop.f32.mrb[0].mxu0
        %1940 = vdwg.mxu0
        %v1941 = vlaneseq
        %v1942 = vshrl.u32 %v1941, 7
        %v1943 = vsub.s32 0, %v1942
        %v1944 = vrot.slane %v1866, %v1943
        %v1945 = vadd.f32 %v1938, %v1944
        %v1946 = vlaneseq
        %v1947 = vshrl.u32 %v1946, 7
        %v1948 = vsub.s32 1, %v1947
        %v1949 = vrot.slane %v1866, %v1948
        %1951 = vrot.lane.b32.xlu0 %v1949, 32
        %v1952 = vpop.permute.xlu0 %1951
        %v1954 = vadd.f32 %v1938, %v1952
        %v1955 = vlaneseq
        %v1956 = vshrl.u32 %v1955, 7
        %v1957 = vsub.s32 2, %v1956
        %v1958 = vrot.slane %v1866, %v1957
        %1960 = vrot.lane.b32.xlu0 %v1958, 64
        %v1961 = vpop.permute.xlu0 %1960
        %v1963 = vadd.f32 %v1938, %v1961
        %1965 = vrot.lane.b32.xlu0 %v1954, 96
        %v1966 = vpop.permute.xlu0 %1965
        %v1968 = vsel %vm656, %v1945, 0
        %v1970 = vsel %vm656, %v1966, 0
        %1972 = vmatprep.subr.mxu0 0.0
        %1973 = vmatpush1.xpose.msra.mxu0 %v1970
        %1974 = vmatprep.subr.mxu0 0.0
        %1975 = vmatpush1.xpose.msra.mxu0 0.0
        %1976 = vmatprep.subr.mxu0 0.0
        %1977 = vmatpush1.xpose.msra.mxu0 0.0
        %1978 = vmatprep.subr.mxu0 0.0
        %1979 = vmatpush1.xpose.msra.mxu0 0.0
        %1980 = vmatprep.subr.mxu0 0.0
        %1981 = vmatpush1.xpose.msra.mxu0 0.0
        %1982 = vmatprep.subr.mxu0 0.0
        %1983 = vmatpush1.xpose.msra.mxu0 0.0
        %1984 = vmatprep.subr.mxu0 0.0
        %1985 = vmatpush1.xpose.msra.mxu0 0.0
        %1986 = vmatprep.subr.mxu0 0.0
        %1987 = vmatpush1.xpose.msra.mxu0 0.0
        %1988 = vmatprep.subr.mxu0 0.0
        %1989 = vmatpush1.xpose.msra.mxu0 0.0
        %1990 = vmatprep.subr.mxu0 0.0
        %1991 = vmatpush1.xpose.msra.mxu0 0.0
        %1992 = vmatprep.subr.mxu0 0.0
        %1993 = vmatpush1.xpose.msra.mxu0 0.0
        %1994 = vmatprep.subr.mxu0 0.0
        %1995 = vmatpush1.xpose.msra.mxu0 0.0
        %1996 = vmatprep.subr.mxu0 0.0
        %1997 = vmatpush1.xpose.msra.mxu0 0.0
        %1998 = vmatprep.subr.mxu0 0.0
        %1999 = vmatpush1.xpose.msra.mxu0 0.0
        %2000 = vmatprep.subr.mxu0 0.0
        %2001 = vmatpush1.xpose.msra.mxu0 0.0
        %2002 = vmatprep.subr.mxu0 0.0
        %2003 = vmatpush1.xpose.msra.mxu0 0.0
        %2004 = vmatprep.subr.mxu0 0.0
        %2005 = vmatpush1.xpose.msra.mxu0 0.0
        %2006 = vmatprep.subr.mxu0 0.0
        %2007 = vmatpush1.xpose.msra.mxu0 0.0
        %2008 = vmatprep.subr.mxu0 0.0
        %2009 = vmatpush1.xpose.msra.mxu0 0.0
        %2010 = vmatprep.subr.mxu0 0.0
        %2011 = vmatpush1.xpose.msra.mxu0 0.0
        %2012 = vmatprep.subr.mxu0 0.0
        %2013 = vmatpush1.xpose.msra.mxu0 0.0
        %2014 = vmatprep.subr.mxu0 0.0
        %2015 = vmatpush1.xpose.msra.mxu0 0.0
        %2016 = vmatprep.subr.mxu0 0.0
        %2017 = vmatpush1.xpose.msra.mxu0 0.0
        %2018 = vmatprep.subr.mxu0 0.0
        %2019 = vmatpush1.xpose.msra.mxu0 0.0
        %2020 = vmatprep.subr.mxu0 0.0
        %2021 = vmatpush1.xpose.msra.mxu0 0.0
        %2022 = vmatprep.subr.mxu0 0.0
        %2023 = vmatpush1.xpose.msra.mxu0 0.0
        %2024 = vmatprep.subr.mxu0 0.0
        %2025 = vmatpush1.xpose.msra.mxu0 0.0
        %2026 = vmatprep.subr.mxu0 0.0
        %2027 = vmatpush1.xpose.msra.mxu0 0.0
        %2028 = vmatprep.subr.mxu0 0.0
        %2029 = vmatpush1.xpose.msra.mxu0 0.0
        %2030 = vmatprep.subr.mxu0 0.0
        %2031 = vmatpush1.xpose.msra.mxu0 0.0
        %2032 = vmatprep.subr.mxu0 0.0
        %2033 = vmatpush1.xpose.msra.mxu0 0.0
        %2034 = vmatprep.subr.mxu0 0.0
        %2035 = vmatpush1.xpose.msra.mxu0 0.0
        %2036 = vmatprep.mubr.f32.mxu0 0.0
        %2037 = vmatmul.mubr.f32.gmra.mrb[0].mxu0 %v1968
        %v2038 = vpop.f32.mrb[0].mxu0
        %v2039 = vadd.f32 0.0, %v2038
        %v2040 = vpop.f32.mrb[0].mxu0
        %2041 = vdwg.mxu0
        %v2042 = vmul.f32 %v2039, 0.35355338
        %v2043 = vadd.f32 %v2042, %v737
        %v2044 = vsel %vm656, %v2043, -inf
        %2045 = vmax.xlane.f32.xlu0 %v2044
        %v2046 = vpop.xlane.xlu0 %2045
        %v2047 = vsub.f32 %v2043, %v2046
        %v2048 = vmul.f32 %v2047, 1.442695
        %v2049 = vpow.pop %v2048
        %v2050 = vsel %vm656, %v2049, 0.0
        %2051 = vadd.xlane.f32.xlu0 %v2050
        %v2052 = vpop.xlane.xlu0 %2051
        %v2053 = vrcp.pop %v2052
        %v2054 = vmul.f32 %v2049, %v2053
        %2056 = vrot.lane.b32.xlu0 %v1963, 64
        %v2057 = vpop.permute.xlu0 %2056
        %v2060 = vsel %vm656, %v2054, 0
        %2062 = vmatprep.subr.mxu0 0.0
        %2063 = vmatpush1.msra.mxu0 %v2057
        %2064 = vmatprep.subr.mxu0 0.0
        %2065 = vmatpush1.msra.mxu0 0.0
        %2066 = vmatprep.subr.mxu0 0.0
        %2067 = vmatpush1.msra.mxu0 0.0
        %2068 = vmatprep.subr.mxu0 0.0
        %2069 = vmatpush1.msra.mxu0 0.0
        %2070 = vmatprep.subr.mxu0 0.0
        %2071 = vmatpush1.msra.mxu0 0.0
        %2072 = vmatprep.subr.mxu0 0.0
        %2073 = vmatpush1.msra.mxu0 0.0
        %2074 = vmatprep.subr.mxu0 0.0
        %2075 = vmatpush1.msra.mxu0 0.0
        %2076 = vmatprep.subr.mxu0 0.0
        %2077 = vmatpush1.msra.mxu0 0.0
        %2078 = vmatprep.subr.mxu0 0.0
        %2079 = vmatpush1.msra.mxu0 0.0
        %2080 = vmatprep.subr.mxu0 0.0
        %2081 = vmatpush1.msra.mxu0 0.0
        %2082 = vmatprep.subr.mxu0 0.0
        %2083 = vmatpush1.msra.mxu0 0.0
        %2084 = vmatprep.subr.mxu0 0.0
        %2085 = vmatpush1.msra.mxu0 0.0
        %2086 = vmatprep.subr.mxu0 0.0
        %2087 = vmatpush1.msra.mxu0 0.0
        %2088 = vmatprep.subr.mxu0 0.0
        %2089 = vmatpush1.msra.mxu0 0.0
        %2090 = vmatprep.subr.mxu0 0.0
        %2091 = vmatpush1.msra.mxu0 0.0
        %2092 = vmatprep.subr.mxu0 0.0
        %2093 = vmatpush1.msra.mxu0 0.0
        %2094 = vmatprep.subr.mxu0 0.0
        %2095 = vmatpush1.msra.mxu0 0.0
        %2096 = vmatprep.subr.mxu0 0.0
        %2097 = vmatpush1.msra.mxu0 0.0
        %2098 = vmatprep.subr.mxu0 0.0
        %2099 = vmatpush1.msra.mxu0 0.0
        %2100 = vmatprep.subr.mxu0 0.0
        %2101 = vmatpush1.msra.mxu0 0.0
        %2102 = vmatprep.subr.mxu0 0.0
        %2103 = vmatpush1.msra.mxu0 0.0
        %2104 = vmatprep.subr.mxu0 0.0
        %2105 = vmatpush1.msra.mxu0 0.0
        %2106 = vmatprep.subr.mxu0 0.0
        %2107 = vmatpush1.msra.mxu0 0.0
        %2108 = vmatprep.subr.mxu0 0.0
        %2109 = vmatpush1.msra.mxu0 0.0
        %2110 = vmatprep.subr.mxu0 0.0
        %2111 = vmatpush1.msra.mxu0 0.0
        %2112 = vmatprep.subr.mxu0 0.0
        %2113 = vmatpush1.msra.mxu0 0.0
        %2114 = vmatprep.subr.mxu0 0.0
        %2115 = vmatpush1.msra.mxu0 0.0
        %2116 = vmatprep.subr.mxu0 0.0
        %2117 = vmatpush1.msra.mxu0 0.0
        %2118 = vmatprep.subr.mxu0 0.0
        %2119 = vmatpush1.msra.mxu0 0.0
        %2120 = vmatprep.subr.mxu0 0.0
        %2121 = vmatpush1.msra.mxu0 0.0
        %2122 = vmatprep.subr.mxu0 0.0
        %2123 = vmatpush1.msra.mxu0 0.0
        %2124 = vmatprep.subr.mxu0 0.0
        %2125 = vmatpush1.msra.mxu0 0.0
        %2126 = vmatprep.mubr.f32.mxu0 0.0
        %2127 = vmatmul.mubr.f32.gmra.mrb[0].mxu0 %v2060
        %v2128 = vpop.f32.mrb[0].mxu0
        %v2129 = vadd.f32 0.0, %v2128
        %v2130 = vpop.f32.mrb[0].mxu0
        %2131 = vdwg.mxu0
        %2132 = vrot.lane.b32.xlu0 %v1945, 120
        %v2133 = vpop.permute.xlu0 %2132
        %2134 = vrot.lane.b32.xlu0 %v1954, 88
        %v2135 = vpop.permute.xlu0 %2134
        %v2136 = vsel %vm656, %v2133, 0
        %v2138 = vsel %vm656, %v2135, 0
        %2140 = vmatprep.subr.mxu0 0.0
        %2141 = vmatpush1.xpose.msra.mxu0 %v2138
        %2142 = vmatprep.subr.mxu0 0.0
        %2143 = vmatpush1.xpose.msra.mxu0 0.0
        %2144 = vmatprep.subr.mxu0 0.0
        %2145 = vmatpush1.xpose.msra.mxu0 0.0
        %2146 = vmatprep.subr.mxu0 0.0
        %2147 = vmatpush1.xpose.msra.mxu0 0.0
        %2148 = vmatprep.subr.mxu0 0.0
        %2149 = vmatpush1.xpose.msra.mxu0 0.0
        %2150 = vmatprep.subr.mxu0 0.0
        %2151 = vmatpush1.xpose.msra.mxu0 0.0
        %2152 = vmatprep.subr.mxu0 0.0
        %2153 = vmatpush1.xpose.msra.mxu0 0.0
        %2154 = vmatprep.subr.mxu0 0.0
        %2155 = vmatpush1.xpose.msra.mxu0 0.0
        %2156 = vmatprep.subr.mxu0 0.0
        %2157 = vmatpush1.xpose.msra.mxu0 0.0
        %2158 = vmatprep.subr.mxu0 0.0
        %2159 = vmatpush1.xpose.msra.mxu0 0.0
        %2160 = vmatprep.subr.mxu0 0.0
        %2161 = vmatpush1.xpose.msra.mxu0 0.0
        %2162 = vmatprep.subr.mxu0 0.0
        %2163 = vmatpush1.xpose.msra.mxu0 0.0
        %2164 = vmatprep.subr.mxu0 0.0
        %2165 = vmatpush1.xpose.msra.mxu0 0.0
        %2166 = vmatprep.subr.mxu0 0.0
        %2167 = vmatpush1.xpose.msra.mxu0 0.0
        %2168 = vmatprep.subr.mxu0 0.0
        %2169 = vmatpush1.xpose.msra.mxu0 0.0
        %2170 = vmatprep.subr.mxu0 0.0
        %2171 = vmatpush1.xpose.msra.mxu0 0.0
        %2172 = vmatprep.subr.mxu0 0.0
        %2173 = vmatpush1.xpose.msra.mxu0 0.0
        %2174 = vmatprep.subr.mxu0 0.0
        %2175 = vmatpush1.xpose.msra.mxu0 0.0
        %2176 = vmatprep.subr.mxu0 0.0
        %2177 = vmatpush1.xpose.msra.mxu0 0.0
        %2178 = vmatprep.subr.mxu0 0.0
        %2179 = vmatpush1.xpose.msra.mxu0 0.0
        %2180 = vmatprep.subr.mxu0 0.0
        %2181 = vmatpush1.xpose.msra.mxu0 0.0
        %2182 = vmatprep.subr.mxu0 0.0
        %2183 = vmatpush1.xpose.msra.mxu0 0.0
        %2184 = vmatprep.subr.mxu0 0.0
        %2185 = vmatpush1.xpose.msra.mxu0 0.0
        %2186 = vmatprep.subr.mxu0 0.0
        %2187 = vmatpush1.xpose.msra.mxu0 0.0
        %2188 = vmatprep.subr.mxu0 0.0
        %2189 = vmatpush1.xpose.msra.mxu0 0.0
        %2190 = vmatprep.subr.mxu0 0.0
        %2191 = vmatpush1.xpose.msra.mxu0 0.0
        %2192 = vmatprep.subr.mxu0 0.0
        %2193 = vmatpush1.xpose.msra.mxu0 0.0
        %2194 = vmatprep.subr.mxu0 0.0
        %2195 = vmatpush1.xpose.msra.mxu0 0.0
        %2196 = vmatprep.subr.mxu0 0.0
        %2197 = vmatpush1.xpose.msra.mxu0 0.0
        %2198 = vmatprep.subr.mxu0 0.0
        %2199 = vmatpush1.xpose.msra.mxu0 0.0
        %2200 = vmatprep.subr.mxu0 0.0
        %2201 = vmatpush1.xpose.msra.mxu0 0.0
        %2202 = vmatprep.subr.mxu0 0.0
        %2203 = vmatpush1.xpose.msra.mxu0 0.0
        %2204 = vmatprep.mubr.f32.mxu0 0.0
        %2205 = vmatmul.mubr.f32.gmra.mrb[0].mxu0 %v2136
        %v2206 = vpop.f32.mrb[0].mxu0
        %v2207 = vadd.f32 0.0, %v2206
        %v2208 = vpop.f32.mrb[0].mxu0
        %2209 = vdwg.mxu0
        %v2210 = vmul.f32 %v2207, 0.35355338
        %v2211 = vadd.f32 %v2210, %v737
        %v2212 = vsel %vm656, %v2211, -inf
        %2213 = vmax.xlane.f32.xlu0 %v2212
        %v2214 = vpop.xlane.xlu0 %2213
        %v2215 = vsub.f32 %v2211, %v2214
        %v2216 = vmul.f32 %v2215, 1.442695
        %v2217 = vpow.pop %v2216
        %v2218 = vsel %vm656, %v2217, 0.0
        %2219 = vadd.xlane.f32.xlu0 %v2218
        %v2220 = vpop.xlane.xlu0 %2219
        %v2221 = vrcp.pop %v2220
        %v2222 = vmul.f32 %v2217, %v2221
        %2223 = vrot.lane.b32.xlu0 %v1963, 56
        %v2224 = vpop.permute.xlu0 %2223
        %v2227 = vsel %vm656, %v2222, 0
        %2229 = vmatprep.subr.mxu0 0.0
        %2230 = vmatpush1.msra.mxu0 %v2224
        %2231 = vmatprep.subr.mxu0 0.0
        %2232 = vmatpush1.msra.mxu0 0.0
        %2233 = vmatprep.subr.mxu0 0.0
        %2234 = vmatpush1.msra.mxu0 0.0
        %2235 = vmatprep.subr.mxu0 0.0
        %2236 = vmatpush1.msra.mxu0 0.0
        %2237 = vmatprep.subr.mxu0 0.0
        %2238 = vmatpush1.msra.mxu0 0.0
        %2239 = vmatprep.subr.mxu0 0.0
        %2240 = vmatpush1.msra.mxu0 0.0
        %2241 = vmatprep.subr.mxu0 0.0
        %2242 = vmatpush1.msra.mxu0 0.0
        %2243 = vmatprep.subr.mxu0 0.0
        %2244 = vmatpush1.msra.mxu0 0.0
        %2245 = vmatprep.subr.mxu0 0.0
        %2246 = vmatpush1.msra.mxu0 0.0
        %2247 = vmatprep.subr.mxu0 0.0
        %2248 = vmatpush1.msra.mxu0 0.0
        %2249 = vmatprep.subr.mxu0 0.0
        %2250 = vmatpush1.msra.mxu0 0.0
        %2251 = vmatprep.subr.mxu0 0.0
        %2252 = vmatpush1.msra.mxu0 0.0
        %2253 = vmatprep.subr.mxu0 0.0
        %2254 = vmatpush1.msra.mxu0 0.0
        %2255 = vmatprep.subr.mxu0 0.0
        %2256 = vmatpush1.msra.mxu0 0.0
        %2257 = vmatprep.subr.mxu0 0.0
        %2258 = vmatpush1.msra.mxu0 0.0
        %2259 = vmatprep.subr.mxu0 0.0
        %2260 = vmatpush1.msra.mxu0 0.0
        %2261 = vmatprep.subr.mxu0 0.0
        %2262 = vmatpush1.msra.mxu0 0.0
        %2263 = vmatprep.subr.mxu0 0.0
        %2264 = vmatpush1.msra.mxu0 0.0
        %2265 = vmatprep.subr.mxu0 0.0
        %2266 = vmatpush1.msra.mxu0 0.0
        %2267 = vmatprep.subr.mxu0 0.0
        %2268 = vmatpush1.msra.mxu0 0.0
        %2269 = vmatprep.subr.mxu0 0.0
        %2270 = vmatpush1.msra.mxu0 0.0
        %2271 = vmatprep.subr.mxu0 0.0
        %2272 = vmatpush1.msra.mxu0 0.0
        %2273 = vmatprep.subr.mxu0 0.0
        %2274 = vmatpush1.msra.mxu0 0.0
        %2275 = vmatprep.subr.mxu0 0.0
        %2276 = vmatpush1.msra.mxu0 0.0
        %2277 = vmatprep.subr.mxu0 0.0
        %2278 = vmatpush1.msra.mxu0 0.0
        %2279 = vmatprep.subr.mxu0 0.0
        %2280 = vmatpush1.msra.mxu0 0.0
        %2281 = vmatprep.subr.mxu0 0.0
        %2282 = vmatpush1.msra.mxu0 0.0
        %2283 = vmatprep.subr.mxu0 0.0
        %2284 = vmatpush1.msra.mxu0 0.0
        %2285 = vmatprep.subr.mxu0 0.0
        %2286 = vmatpush1.msra.mxu0 0.0
        %2287 = vmatprep.subr.mxu0 0.0
        %2288 = vmatpush1.msra.mxu0 0.0
        %2289 = vmatprep.subr.mxu0 0.0
        %2290 = vmatpush1.msra.mxu0 0.0
        %2291 = vmatprep.subr.mxu0 0.0
        %2292 = vmatpush1.msra.mxu0 0.0
        %2293 = vmatprep.mubr.f32.mxu0 0.0
        %2294 = vmatmul.mubr.f32.gmra.mrb[0].mxu0 %v2227
        %v2295 = vpop.f32.mrb[0].mxu0
        %v2296 = vadd.f32 0.0, %v2295
        %v2297 = vpop.f32.mrb[0].mxu0
        %2298 = vdwg.mxu0
        %v2300 = vsel %vm656, %v2296, 0
        %2302 = vmatprep.subr.mxu0 0.0
        %2303 = vmatpush1.msra.mxu0 %v1848
        %2304 = vmatprep.subr.mxu0 0.0
        %2305 = vmatpush1.msra.mxu0 0.0
        %2306 = vmatprep.subr.mxu0 0.0
        %2307 = vmatpush1.msra.mxu0 0.0
        %2308 = vmatprep.subr.mxu0 0.0
        %2309 = vmatpush1.msra.mxu0 0.0
        %2310 = vmatprep.subr.mxu0 0.0
        %2311 = vmatpush1.msra.mxu0 0.0
        %2312 = vmatprep.subr.mxu0 0.0
        %2313 = vmatpush1.msra.mxu0 0.0
        %2314 = vmatprep.subr.mxu0 0.0
        %2315 = vmatpush1.msra.mxu0 0.0
        %2316 = vmatprep.subr.mxu0 0.0
        %2317 = vmatpush1.msra.mxu0 0.0
        %2318 = vmatprep.subr.mxu0 0.0
        %2319 = vmatpush1.msra.mxu0 0.0
        %2320 = vmatprep.subr.mxu0 0.0
        %2321 = vmatpush1.msra.mxu0 0.0
        %2322 = vmatprep.subr.mxu0 0.0
        %2323 = vmatpush1.msra.mxu0 0.0
        %2324 = vmatprep.subr.mxu0 0.0
        %2325 = vmatpush1.msra.mxu0 0.0
        %2326 = vmatprep.subr.mxu0 0.0
        %2327 = vmatpush1.msra.mxu0 0.0
        %2328 = vmatprep.subr.mxu0 0.0
        %2329 = vmatpush1.msra.mxu0 0.0
        %2330 = vmatprep.subr.mxu0 0.0
        %2331 = vmatpush1.msra.mxu0 0.0
        %2332 = vmatprep.subr.mxu0 0.0
        %2333 = vmatpush1.msra.mxu0 0.0
        %2334 = vmatprep.subr.mxu0 0.0
        %2335 = vmatpush1.msra.mxu0 0.0
        %2336 = vmatprep.subr.mxu0 0.0
        %2337 = vmatpush1.msra.mxu0 0.0
        %2338 = vmatprep.subr.mxu0 0.0
        %2339 = vmatpush1.msra.mxu0 0.0
        %2340 = vmatprep.subr.mxu0 0.0
        %2341 = vmatpush1.msra.mxu0 0.0
        %2342 = vmatprep.subr.mxu0 0.0
        %2343 = vmatpush1.msra.mxu0 0.0
        %2344 = vmatprep.subr.mxu0 0.0
        %2345 = vmatpush1.msra.mxu0 0.0
        %2346 = vmatprep.subr.mxu0 0.0
        %2347 = vmatpush1.msra.mxu0 0.0
        %2348 = vmatprep.subr.mxu0 0.0
        %2349 = vmatpush1.msra.mxu0 0.0
        %2350 = vmatprep.subr.mxu0 0.0
        %2351 = vmatpush1.msra.mxu0 0.0
        %2352 = vmatprep.subr.mxu0 0.0
        %2353 = vmatpush1.msra.mxu0 0.0
        %2354 = vmatprep.subr.mxu0 0.0
        %2355 = vmatpush1.msra.mxu0 0.0
        %2356 = vmatprep.subr.mxu0 0.0
        %2357 = vmatpush1.msra.mxu0 0.0
        %2358 = vmatprep.subr.mxu0 0.0
        %2359 = vmatpush1.msra.mxu0 0.0
        %2360 = vmatprep.subr.mxu0 0.0
        %2361 = vmatpush1.msra.mxu0 0.0
        %2362 = vmatprep.subr.mxu0 0.0
        %2363 = vmatpush1.msra.mxu0 0.0
        %2364 = vmatprep.subr.mxu0 0.0
        %2365 = vmatpush1.msra.mxu0 0.0
        %2366 = vmatprep.mubr.f32.mxu0 0.0
        %2367 = vmatmul.mubr.f32.gmra.mrb[0].mxu0 %v2300
        %v2368 = vpop.f32.mrb[0].mxu0
        %v2369 = vadd.f32 0.0, %v2368
        %v2370 = vpop.f32.mrb[0].mxu0
        %2371 = vdwg.mxu0
        %v2373 = vsel %vm656, %v2129, 0
        %2375 = vmatprep.subr.mxu0 0.0
        %2376 = vmatpush1.msra.mxu0 %v1847
        %2377 = vmatprep.subr.mxu0 0.0
        %2378 = vmatpush1.msra.mxu0 0.0
        %2379 = vmatprep.subr.mxu0 0.0
        %2380 = vmatpush1.msra.mxu0 0.0
        %2381 = vmatprep.subr.mxu0 0.0
        %2382 = vmatpush1.msra.mxu0 0.0
        %2383 = vmatprep.subr.mxu0 0.0
        %2384 = vmatpush1.msra.mxu0 0.0
        %2385 = vmatprep.subr.mxu0 0.0
        %2386 = vmatpush1.msra.mxu0 0.0
        %2387 = vmatprep.subr.mxu0 0.0
        %2388 = vmatpush1.msra.mxu0 0.0
        %2389 = vmatprep.subr.mxu0 0.0
        %2390 = vmatpush1.msra.mxu0 0.0
        %2391 = vmatprep.subr.mxu0 0.0
        %2392 = vmatpush1.msra.mxu0 0.0
        %2393 = vmatprep.subr.mxu0 0.0
        %2394 = vmatpush1.msra.mxu0 0.0
        %2395 = vmatprep.subr.mxu0 0.0
        %2396 = vmatpush1.msra.mxu0 0.0
        %2397 = vmatprep.subr.mxu0 0.0
        %2398 = vmatpush1.msra.mxu0 0.0
        %2399 = vmatprep.subr.mxu0 0.0
        %2400 = vmatpush1.msra.mxu0 0.0
        %2401 = vmatprep.subr.mxu0 0.0
        %2402 = vmatpush1.msra.mxu0 0.0
        %2403 = vmatprep.subr.mxu0 0.0
        %2404 = vmatpush1.msra.mxu0 0.0
        %2405 = vmatprep.subr.mxu0 0.0
        %2406 = vmatpush1.msra.mxu0 0.0
        %2407 = vmatprep.subr.mxu0 0.0
        %2408 = vmatpush1.msra.mxu0 0.0
        %2409 = vmatprep.subr.mxu0 0.0
        %2410 = vmatpush1.msra.mxu0 0.0
        %2411 = vmatprep.subr.mxu0 0.0
        %2412 = vmatpush1.msra.mxu0 0.0
        %2413 = vmatprep.subr.mxu0 0.0
        %2414 = vmatpush1.msra.mxu0 0.0
        %2415 = vmatprep.subr.mxu0 0.0
        %2416 = vmatpush1.msra.mxu0 0.0
        %2417 = vmatprep.subr.mxu0 0.0
        %2418 = vmatpush1.msra.mxu0 0.0
        %2419 = vmatprep.subr.mxu0 0.0
        %2420 = vmatpush1.msra.mxu0 0.0
        %2421 = vmatprep.subr.mxu0 0.0
        %2422 = vmatpush1.msra.mxu0 0.0
        %2423 = vmatprep.subr.mxu0 0.0
        %2424 = vmatpush1.msra.mxu0 0.0
        %2425 = vmatprep.subr.mxu0 0.0
        %2426 = vmatpush1.msra.mxu0 0.0
        %2427 = vmatprep.subr.mxu0 0.0
        %2428 = vmatpush1.msra.mxu0 0.0
        %2429 = vmatprep.subr.mxu0 0.0
        %2430 = vmatpush1.msra.mxu0 0.0
        %2431 = vmatprep.subr.mxu0 0.0
        %2432 = vmatpush1.msra.mxu0 0.0
        %2433 = vmatprep.subr.mxu0 0.0
        %2434 = vmatpush1.msra.mxu0 0.0
        %2435 = vmatprep.subr.mxu0 0.0
        %2436 = vmatpush1.msra.mxu0 0.0
        %2437 = vmatprep.subr.mxu0 0.0
        %2438 = vmatpush1.msra.mxu0 0.0
        %2439 = vmatprep.mubr.f32.mxu0 0.0
        %2440 = vmatmul.mubr.f32.gmra.mrb[0].mxu0 %v2373
        %v2441 = vpop.f32.mrb[0].mxu0
        %v2442 = vadd.f32 %v2369, %v2441
        %v2443 = vpop.f32.mrb[0].mxu0
        %2444 = vdwg.mxu0
        %2445 = vrot.lane.b32.xlu0 %v1945, 112
        %v2446 = vpop.permute.xlu0 %2445
        %2447 = vrot.lane.b32.xlu0 %v1954, 80
        %v2448 = vpop.permute.xlu0 %2447
        %v2449 = vsel %vm656, %v2446, 0
        %v2451 = vsel %vm656, %v2448, 0
        %2453 = vmatprep.subr.mxu0 0.0
        %2454 = vmatpush1.xpose.msra.mxu0 %v2451
        %2455 = vmatprep.subr.mxu0 0.0
        %2456 = vmatpush1.xpose.msra.mxu0 0.0
        %2457 = vmatprep.subr.mxu0 0.0
        %2458 = vmatpush1.xpose.msra.mxu0 0.0
        %2459 = vmatprep.subr.mxu0 0.0
        %2460 = vmatpush1.xpose.msra.mxu0 0.0
        %2461 = vmatprep.subr.mxu0 0.0
        %2462 = vmatpush1.xpose.msra.mxu0 0.0
        %2463 = vmatprep.subr.mxu0 0.0
        %2464 = vmatpush1.xpose.msra.mxu0 0.0
        %2465 = vmatprep.subr.mxu0 0.0
        %2466 = vmatpush1.xpose.msra.mxu0 0.0
        %2467 = vmatprep.subr.mxu0 0.0
        %2468 = vmatpush1.xpose.msra.mxu0 0.0
        %2469 = vmatprep.subr.mxu0 0.0
        %2470 = vmatpush1.xpose.msra.mxu0 0.0
        %2471 = vmatprep.subr.mxu0 0.0
        %2472 = vmatpush1.xpose.msra.mxu0 0.0
        %2473 = vmatprep.subr.mxu0 0.0
        %2474 = vmatpush1.xpose.msra.mxu0 0.0
        %2475 = vmatprep.subr.mxu0 0.0
        %2476 = vmatpush1.xpose.msra.mxu0 0.0
        %2477 = vmatprep.subr.mxu0 0.0
        %2478 = vmatpush1.xpose.msra.mxu0 0.0
        %2479 = vmatprep.subr.mxu0 0.0
        %2480 = vmatpush1.xpose.msra.mxu0 0.0
        %2481 = vmatprep.subr.mxu0 0.0
        %2482 = vmatpush1.xpose.msra.mxu0 0.0
        %2483 = vmatprep.subr.mxu0 0.0
        %2484 = vmatpush1.xpose.msra.mxu0 0.0
        %2485 = vmatprep.subr.mxu0 0.0
        %2486 = vmatpush1.xpose.msra.mxu0 0.0
        %2487 = vmatprep.subr.mxu0 0.0
        %2488 = vmatpush1.xpose.msra.mxu0 0.0
        %2489 = vmatprep.subr.mxu0 0.0
        %2490 = vmatpush1.xpose.msra.mxu0 0.0
        %2491 = vmatprep.subr.mxu0 0.0
        %2492 = vmatpush1.xpose.msra.mxu0 0.0
        %2493 = vmatprep.subr.mxu0 0.0
        %2494 = vmatpush1.xpose.msra.mxu0 0.0
        %2495 = vmatprep.subr.mxu0 0.0
        %2496 = vmatpush1.xpose.msra.mxu0 0.0
        %2497 = vmatprep.subr.mxu0 0.0
        %2498 = vmatpush1.xpose.msra.mxu0 0.0
        %2499 = vmatprep.subr.mxu0 0.0
        %2500 = vmatpush1.xpose.msra.mxu0 0.0
        %2501 = vmatprep.subr.mxu0 0.0
        %2502 = vmatpush1.xpose.msra.mxu0 0.0
        %2503 = vmatprep.subr.mxu0 0.0
        %2504 = vmatpush1.xpose.msra.mxu0 0.0
        %2505 = vmatprep.subr.mxu0 0.0
        %2506 = vmatpush1.xpose.msra.mxu0 0.0
        %2507 = vmatprep.subr.mxu0 0.0
        %2508 = vmatpush1.xpose.msra.mxu0 0.0
        %2509 = vmatprep.subr.mxu0 0.0
        %2510 = vmatpush1.xpose.msra.mxu0 0.0
        %2511 = vmatprep.subr.mxu0 0.0
        %2512 = vmatpush1.xpose.msra.mxu0 0.0
        %2513 = vmatprep.subr.mxu0 0.0
        %2514 = vmatpush1.xpose.msra.mxu0 0.0
        %2515 = vmatprep.subr.mxu0 0.0
        %2516 = vmatpush1.xpose.msra.mxu0 0.0
        %2517 = vmatprep.mubr.f32.mxu0 0.0
        %2518 = vmatmul.mubr.f32.gmra.mrb[0].mxu0 %v2449
        %v2519 = vpop.f32.mrb[0].mxu0
        %v2520 = vadd.f32 0.0, %v2519
        %v2521 = vpop.f32.mrb[0].mxu0
        %2522 = vdwg.mxu0
        %v2523 = vmul.f32 %v2520, 0.35355338
        %v2524 = vadd.f32 %v2523, %v737
        %v2525 = vsel %vm656, %v2524, -inf
        %2526 = vmax.xlane.f32.xlu0 %v2525
        %v2527 = vpop.xlane.xlu0 %2526
        %v2528 = vsub.f32 %v2524, %v2527
        %v2529 = vmul.f32 %v2528, 1.442695
        %v2530 = vpow.pop %v2529
        %v2531 = vsel %vm656, %v2530, 0.0
        %2532 = vadd.xlane.f32.xlu0 %v2531
        %v2533 = vpop.xlane.xlu0 %2532
        %v2534 = vrcp.pop %v2533
        %v2535 = vmul.f32 %v2530, %v2534
        %2536 = vrot.lane.b32.xlu0 %v1963, 48
        %v2537 = vpop.permute.xlu0 %2536
        %v2540 = vsel %vm656, %v2535, 0
        %2542 = vmatprep.subr.mxu0 0.0
        %2543 = vmatpush1.msra.mxu0 %v2537
        %2544 = vmatprep.subr.mxu0 0.0
        %2545 = vmatpush1.msra.mxu0 0.0
        %2546 = vmatprep.subr.mxu0 0.0
        %2547 = vmatpush1.msra.mxu0 0.0
        %2548 = vmatprep.subr.mxu0 0.0
        %2549 = vmatpush1.msra.mxu0 0.0
        %2550 = vmatprep.subr.mxu0 0.0
        %2551 = vmatpush1.msra.mxu0 0.0
        %2552 = vmatprep.subr.mxu0 0.0
        %2553 = vmatpush1.msra.mxu0 0.0
        %2554 = vmatprep.subr.mxu0 0.0
        %2555 = vmatpush1.msra.mxu0 0.0
        %2556 = vmatprep.subr.mxu0 0.0
        %2557 = vmatpush1.msra.mxu0 0.0
        %2558 = vmatprep.subr.mxu0 0.0
        %2559 = vmatpush1.msra.mxu0 0.0
        %2560 = vmatprep.subr.mxu0 0.0
        %2561 = vmatpush1.msra.mxu0 0.0
        %2562 = vmatprep.subr.mxu0 0.0
        %2563 = vmatpush1.msra.mxu0 0.0
        %2564 = vmatprep.subr.mxu0 0.0
        %2565 = vmatpush1.msra.mxu0 0.0
        %2566 = vmatprep.subr.mxu0 0.0
        %2567 = vmatpush1.msra.mxu0 0.0
        %2568 = vmatprep.subr.mxu0 0.0
        %2569 = vmatpush1.msra.mxu0 0.0
        %2570 = vmatprep.subr.mxu0 0.0
        %2571 = vmatpush1.msra.mxu0 0.0
        %2572 = vmatprep.subr.mxu0 0.0
        %2573 = vmatpush1.msra.mxu0 0.0
        %2574 = vmatprep.subr.mxu0 0.0
        %2575 = vmatpush1.msra.mxu0 0.0
        %2576 = vmatprep.subr.mxu0 0.0
        %2577 = vmatpush1.msra.mxu0 0.0
        %2578 = vmatprep.subr.mxu0 0.0
        %2579 = vmatpush1.msra.mxu0 0.0
        %2580 = vmatprep.subr.mxu0 0.0
        %2581 = vmatpush1.msra.mxu0 0.0
        %2582 = vmatprep.subr.mxu0 0.0
        %2583 = vmatpush1.msra.mxu0 0.0
        %2584 = vmatprep.subr.mxu0 0.0
        %2585 = vmatpush1.msra.mxu0 0.0
        %2586 = vmatprep.subr.mxu0 0.0
        %2587 = vmatpush1.msra.mxu0 0.0
        %2588 = vmatprep.subr.mxu0 0.0
        %2589 = vmatpush1.msra.mxu0 0.0
        %2590 = vmatprep.subr.mxu0 0.0
        %2591 = vmatpush1.msra.mxu0 0.0
        %2592 = vmatprep.subr.mxu0 0.0
        %2593 = vmatpush1.msra.mxu0 0.0
        %2594 = vmatprep.subr.mxu0 0.0
        %2595 = vmatpush1.msra.mxu0 0.0
        %2596 = vmatprep.subr.mxu0 0.0
        %2597 = vmatpush1.msra.mxu0 0.0
        %2598 = vmatprep.subr.mxu0 0.0
        %2599 = vmatpush1.msra.mxu0 0.0
        %2600 = vmatprep.subr.mxu0 0.0
        %2601 = vmatpush1.msra.mxu0 0.0
        %2602 = vmatprep.subr.mxu0 0.0
        %2603 = vmatpush1.msra.mxu0 0.0
        %2604 = vmatprep.subr.mxu0 0.0
        %2605 = vmatpush1.msra.mxu0 0.0
        %2606 = vmatprep.mubr.f32.mxu0 0.0
        %2607 = vmatmul.mubr.f32.gmra.mrb[0].mxu0 %v2540
        %v2608 = vpop.f32.mrb[0].mxu0
        %v2609 = vadd.f32 0.0, %v2608
        %v2610 = vpop.f32.mrb[0].mxu0
        %2611 = vdwg.mxu0
        %v2613 = vsel %vm656, %v2609, 0
        %2615 = vmatprep.subr.mxu0 0.0
        %2616 = vmatpush1.msra.mxu0 %v1849
        %2617 = vmatprep.subr.mxu0 0.0
        %2618 = vmatpush1.msra.mxu0 0.0
        %2619 = vmatprep.subr.mxu0 0.0
        %2620 = vmatpush1.msra.mxu0 0.0
        %2621 = vmatprep.subr.mxu0 0.0
        %2622 = vmatpush1.msra.mxu0 0.0
        %2623 = vmatprep.subr.mxu0 0.0
        %2624 = vmatpush1.msra.mxu0 0.0
        %2625 = vmatprep.subr.mxu0 0.0
        %2626 = vmatpush1.msra.mxu0 0.0
        %2627 = vmatprep.subr.mxu0 0.0
        %2628 = vmatpush1.msra.mxu0 0.0
        %2629 = vmatprep.subr.mxu0 0.0
        %2630 = vmatpush1.msra.mxu0 0.0
        %2631 = vmatprep.subr.mxu0 0.0
        %2632 = vmatpush1.msra.mxu0 0.0
        %2633 = vmatprep.subr.mxu0 0.0
        %2634 = vmatpush1.msra.mxu0 0.0
        %2635 = vmatprep.subr.mxu0 0.0
        %2636 = vmatpush1.msra.mxu0 0.0
        %2637 = vmatprep.subr.mxu0 0.0
        %2638 = vmatpush1.msra.mxu0 0.0
        %2639 = vmatprep.subr.mxu0 0.0
        %2640 = vmatpush1.msra.mxu0 0.0
        %2641 = vmatprep.subr.mxu0 0.0
        %2642 = vmatpush1.msra.mxu0 0.0
        %2643 = vmatprep.subr.mxu0 0.0
        %2644 = vmatpush1.msra.mxu0 0.0
        %2645 = vmatprep.subr.mxu0 0.0
        %2646 = vmatpush1.msra.mxu0 0.0
        %2647 = vmatprep.subr.mxu0 0.0
        %2648 = vmatpush1.msra.mxu0 0.0
        %2649 = vmatprep.subr.mxu0 0.0
        %2650 = vmatpush1.msra.mxu0 0.0
        %2651 = vmatprep.subr.mxu0 0.0
        %2652 = vmatpush1.msra.mxu0 0.0
        %2653 = vmatprep.subr.mxu0 0.0
        %2654 = vmatpush1.msra.mxu0 0.0
        %2655 = vmatprep.subr.mxu0 0.0
        %2656 = vmatpush1.msra.mxu0 0.0
        %2657 = vmatprep.subr.mxu0 0.0
        %2658 = vmatpush1.msra.mxu0 0.0
        %2659 = vmatprep.subr.mxu0 0.0
        %2660 = vmatpush1.msra.mxu0 0.0
        %2661 = vmatprep.subr.mxu0 0.0
        %2662 = vmatpush1.msra.mxu0 0.0
        %2663 = vmatprep.subr.mxu0 0.0
        %2664 = vmatpush1.msra.mxu0 0.0
        %2665 = vmatprep.subr.mxu0 0.0
        %2666 = vmatpush1.msra.mxu0 0.0
        %2667 = vmatprep.subr.mxu0 0.0
        %2668 = vmatpush1.msra.mxu0 0.0
        %2669 = vmatprep.subr.mxu0 0.0
        %2670 = vmatpush1.msra.mxu0 0.0
        %2671 = vmatprep.subr.mxu0 0.0
        %2672 = vmatpush1.msra.mxu0 0.0
        %2673 = vmatprep.subr.mxu0 0.0
        %2674 = vmatpush1.msra.mxu0 0.0
        %2675 = vmatprep.subr.mxu0 0.0
        %2676 = vmatpush1.msra.mxu0 0.0
        %2677 = vmatprep.subr.mxu0 0.0
        %2678 = vmatpush1.msra.mxu0 0.0
        %2679 = vmatprep.mubr.f32.mxu0 0.0
        %2680 = vmatmul.mubr.f32.gmra.mrb[0].mxu0 %v2613
        %v2681 = vpop.f32.mrb[0].mxu0
        %v2682 = vadd.f32 0.0, %v2681
        %v2683 = vpop.f32.mrb[0].mxu0
        %2684 = vdwg.mxu0
        %v2685 = vadd.f32 %v2442, %v2682
        %2686 = vrot.lane.b32.xlu0 %v1945, 104
        %v2687 = vpop.permute.xlu0 %2686
        %2688 = vrot.lane.b32.xlu0 %v1954, 72
        %v2689 = vpop.permute.xlu0 %2688
        %v2690 = vsel %vm656, %v2687, 0
        %v2692 = vsel %vm656, %v2689, 0
        %2694 = vmatprep.subr.mxu0 0.0
        %2695 = vmatpush1.xpose.msra.mxu0 %v2692
        %2696 = vmatprep.subr.mxu0 0.0
        %2697 = vmatpush1.xpose.msra.mxu0 0.0
        %2698 = vmatprep.subr.mxu0 0.0
        %2699 = vmatpush1.xpose.msra.mxu0 0.0
        %2700 = vmatprep.subr.mxu0 0.0
        %2701 = vmatpush1.xpose.msra.mxu0 0.0
        %2702 = vmatprep.subr.mxu0 0.0
        %2703 = vmatpush1.xpose.msra.mxu0 0.0
        %2704 = vmatprep.subr.mxu0 0.0
        %2705 = vmatpush1.xpose.msra.mxu0 0.0
        %2706 = vmatprep.subr.mxu0 0.0
        %2707 = vmatpush1.xpose.msra.mxu0 0.0
        %2708 = vmatprep.subr.mxu0 0.0
        %2709 = vmatpush1.xpose.msra.mxu0 0.0
        %2710 = vmatprep.subr.mxu0 0.0
        %2711 = vmatpush1.xpose.msra.mxu0 0.0
        %2712 = vmatprep.subr.mxu0 0.0
        %2713 = vmatpush1.xpose.msra.mxu0 0.0
        %2714 = vmatprep.subr.mxu0 0.0
        %2715 = vmatpush1.xpose.msra.mxu0 0.0
        %2716 = vmatprep.subr.mxu0 0.0
        %2717 = vmatpush1.xpose.msra.mxu0 0.0
        %2718 = vmatprep.subr.mxu0 0.0
        %2719 = vmatpush1.xpose.msra.mxu0 0.0
        %2720 = vmatprep.subr.mxu0 0.0
        %2721 = vmatpush1.xpose.msra.mxu0 0.0
        %2722 = vmatprep.subr.mxu0 0.0
        %2723 = vmatpush1.xpose.msra.mxu0 0.0
        %2724 = vmatprep.subr.mxu0 0.0
        %2725 = vmatpush1.xpose.msra.mxu0 0.0
        %2726 = vmatprep.subr.mxu0 0.0
        %2727 = vmatpush1.xpose.msra.mxu0 0.0
        %2728 = vmatprep.subr.mxu0 0.0
        %2729 = vmatpush1.xpose.msra.mxu0 0.0
        %2730 = vmatprep.subr.mxu0 0.0
        %2731 = vmatpush1.xpose.msra.mxu0 0.0
        %2732 = vmatprep.subr.mxu0 0.0
        %2733 = vmatpush1.xpose.msra.mxu0 0.0
        %2734 = vmatprep.subr.mxu0 0.0
        %2735 = vmatpush1.xpose.msra.mxu0 0.0
        %2736 = vmatprep.subr.mxu0 0.0
        %2737 = vmatpush1.xpose.msra.mxu0 0.0
        %2738 = vmatprep.subr.mxu0 0.0
        %2739 = vmatpush1.xpose.msra.mxu0 0.0
        %2740 = vmatprep.subr.mxu0 0.0
        %2741 = vmatpush1.xpose.msra.mxu0 0.0
        %2742 = vmatprep.subr.mxu0 0.0
        %2743 = vmatpush1.xpose.msra.mxu0 0.0
        %2744 = vmatprep.subr.mxu0 0.0
        %2745 = vmatpush1.xpose.msra.mxu0 0.0
        %2746 = vmatprep.subr.mxu0 0.0
        %2747 = vmatpush1.xpose.msra.mxu0 0.0
        %2748 = vmatprep.subr.mxu0 0.0
        %2749 = vmatpush1.xpose.msra.mxu0 0.0
        %2750 = vmatprep.subr.mxu0 0.0
        %2751 = vmatpush1.xpose.msra.mxu0 0.0
        %2752 = vmatprep.subr.mxu0 0.0
        %2753 = vmatpush1.xpose.msra.mxu0 0.0
        %2754 = vmatprep.subr.mxu0 0.0
        %2755 = vmatpush1.xpose.msra.mxu0 0.0
        %2756 = vmatprep.subr.mxu0 0.0
        %2757 = vmatpush1.xpose.msra.mxu0 0.0
        %2758 = vmatprep.mubr.f32.mxu0 0.0
        %2759 = vmatmul.mubr.f32.gmra.mrb[0].mxu0 %v2690
        %v2760 = vpop.f32.mrb[0].mxu0
        %v2761 = vadd.f32 0.0, %v2760
        %v2762 = vpop.f32.mrb[0].mxu0
        %2763 = vdwg.mxu0
        %v2764 = vmul.f32 %v2761, 0.35355338
        %v2765 = vadd.f32 %v2764, %v737
        %v2766 = vsel %vm656, %v2765, -inf
        %2767 = vmax.xlane.f32.xlu0 %v2766
        %v2768 = vpop.xlane.xlu0 %2767
        %v2769 = vsub.f32 %v2765, %v2768
        %v2770 = vmul.f32 %v2769, 1.442695
        %v2771 = vpow.pop %v2770
        %v2772 = vsel %vm656, %v2771, 0.0
        %2773 = vadd.xlane.f32.xlu0 %v2772
        %v2774 = vpop.xlane.xlu0 %2773
        %v2775 = vrcp.pop %v2774
        %v2776 = vmul.f32 %v2771, %v2775
        %2777 = vrot.lane.b32.xlu0 %v1963, 40
        %v2778 = vpop.permute.xlu0 %2777
        %v2781 = vsel %vm656, %v2776, 0
        %2783 = vmatprep.subr.mxu0 0.0
        %2784 = vmatpush1.msra.mxu0 %v2778
        %2785 = vmatprep.subr.mxu0 0.0
        %2786 = vmatpush1.msra.mxu0 0.0
        %2787 = vmatprep.subr.mxu0 0.0
        %2788 = vmatpush1.msra.mxu0 0.0
        %2789 = vmatprep.subr.mxu0 0.0
        %2790 = vmatpush1.msra.mxu0 0.0
        %2791 = vmatprep.subr.mxu0 0.0
        %2792 = vmatpush1.msra.mxu0 0.0
        %2793 = vmatprep.subr.mxu0 0.0
        %2794 = vmatpush1.msra.mxu0 0.0
        %2795 = vmatprep.subr.mxu0 0.0
        %2796 = vmatpush1.msra.mxu0 0.0
        %2797 = vmatprep.subr.mxu0 0.0
        %2798 = vmatpush1.msra.mxu0 0.0
        %2799 = vmatprep.subr.mxu0 0.0
        %2800 = vmatpush1.msra.mxu0 0.0
        %2801 = vmatprep.subr.mxu0 0.0
        %2802 = vmatpush1.msra.mxu0 0.0
        %2803 = vmatprep.subr.mxu0 0.0
        %2804 = vmatpush1.msra.mxu0 0.0
        %2805 = vmatprep.subr.mxu0 0.0
        %2806 = vmatpush1.msra.mxu0 0.0
        %2807 = vmatprep.subr.mxu0 0.0
        %2808 = vmatpush1.msra.mxu0 0.0
        %2809 = vmatprep.subr.mxu0 0.0
        %2810 = vmatpush1.msra.mxu0 0.0
        %2811 = vmatprep.subr.mxu0 0.0
        %2812 = vmatpush1.msra.mxu0 0.0
        %2813 = vmatprep.subr.mxu0 0.0
        %2814 = vmatpush1.msra.mxu0 0.0
        %2815 = vmatprep.subr.mxu0 0.0
        %2816 = vmatpush1.msra.mxu0 0.0
        %2817 = vmatprep.subr.mxu0 0.0
        %2818 = vmatpush1.msra.mxu0 0.0
        %2819 = vmatprep.subr.mxu0 0.0
        %2820 = vmatpush1.msra.mxu0 0.0
        %2821 = vmatprep.subr.mxu0 0.0
        %2822 = vmatpush1.msra.mxu0 0.0
        %2823 = vmatprep.subr.mxu0 0.0
        %2824 = vmatpush1.msra.mxu0 0.0
        %2825 = vmatprep.subr.mxu0 0.0
        %2826 = vmatpush1.msra.mxu0 0.0
        %2827 = vmatprep.subr.mxu0 0.0
        %2828 = vmatpush1.msra.mxu0 0.0
        %2829 = vmatprep.subr.mxu0 0.0
        %2830 = vmatpush1.msra.mxu0 0.0
        %2831 = vmatprep.subr.mxu0 0.0
        %2832 = vmatpush1.msra.mxu0 0.0
        %2833 = vmatprep.subr.mxu0 0.0
        %2834 = vmatpush1.msra.mxu0 0.0
        %2835 = vmatprep.subr.mxu0 0.0
        %2836 = vmatpush1.msra.mxu0 0.0
        %2837 = vmatprep.subr.mxu0 0.0
        %2838 = vmatpush1.msra.mxu0 0.0
        %2839 = vmatprep.subr.mxu0 0.0
        %2840 = vmatpush1.msra.mxu0 0.0
        %2841 = vmatprep.subr.mxu0 0.0
        %2842 = vmatpush1.msra.mxu0 0.0
        %2843 = vmatprep.subr.mxu0 0.0
        %2844 = vmatpush1.msra.mxu0 0.0
        %2845 = vmatprep.subr.mxu0 0.0
        %2846 = vmatpush1.msra.mxu0 0.0
        %2847 = vmatprep.mubr.f32.mxu0 0.0
        %2848 = vmatmul.mubr.f32.gmra.mrb[0].mxu0 %v2781
        %v2849 = vpop.f32.mrb[0].mxu0
        %v2850 = vadd.f32 0.0, %v2849
        %v2851 = vpop.f32.mrb[0].mxu0
        %2852 = vdwg.mxu0
        %v2854 = vsel %vm656, %v2850, 0
        %2856 = vmatprep.subr.mxu0 0.0
        %2857 = vmatpush1.msra.mxu0 %v1850
        %2858 = vmatprep.subr.mxu0 0.0
        %2859 = vmatpush1.msra.mxu0 0.0
        %2860 = vmatprep.subr.mxu0 0.0
        %2861 = vmatpush1.msra.mxu0 0.0
        %2862 = vmatprep.subr.mxu0 0.0
        %2863 = vmatpush1.msra.mxu0 0.0
        %2864 = vmatprep.subr.mxu0 0.0
        %2865 = vmatpush1.msra.mxu0 0.0
        %2866 = vmatprep.subr.mxu0 0.0
        %2867 = vmatpush1.msra.mxu0 0.0
        %2868 = vmatprep.subr.mxu0 0.0
        %2869 = vmatpush1.msra.mxu0 0.0
        %2870 = vmatprep.subr.mxu0 0.0
        %2871 = vmatpush1.msra.mxu0 0.0
        %2872 = vmatprep.subr.mxu0 0.0
        %2873 = vmatpush1.msra.mxu0 0.0
        %2874 = vmatprep.subr.mxu0 0.0
        %2875 = vmatpush1.msra.mxu0 0.0
        %2876 = vmatprep.subr.mxu0 0.0
        %2877 = vmatpush1.msra.mxu0 0.0
        %2878 = vmatprep.subr.mxu0 0.0
        %2879 = vmatpush1.msra.mxu0 0.0
        %2880 = vmatprep.subr.mxu0 0.0
        %2881 = vmatpush1.msra.mxu0 0.0
        %2882 = vmatprep.subr.mxu0 0.0
        %2883 = vmatpush1.msra.mxu0 0.0
        %2884 = vmatprep.subr.mxu0 0.0
        %2885 = vmatpush1.msra.mxu0 0.0
        %2886 = vmatprep.subr.mxu0 0.0
        %2887 = vmatpush1.msra.mxu0 0.0
        %2888 = vmatprep.subr.mxu0 0.0
        %2889 = vmatpush1.msra.mxu0 0.0
        %2890 = vmatprep.subr.mxu0 0.0
        %2891 = vmatpush1.msra.mxu0 0.0
        %2892 = vmatprep.subr.mxu0 0.0
        %2893 = vmatpush1.msra.mxu0 0.0
        %2894 = vmatprep.subr.mxu0 0.0
        %2895 = vmatpush1.msra.mxu0 0.0
        %2896 = vmatprep.subr.mxu0 0.0
        %2897 = vmatpush1.msra.mxu0 0.0
        %2898 = vmatprep.subr.mxu0 0.0
        %2899 = vmatpush1.msra.mxu0 0.0
        %2900 = vmatprep.subr.mxu0 0.0
        %2901 = vmatpush1.msra.mxu0 0.0
        %2902 = vmatprep.subr.mxu0 0.0
        %2903 = vmatpush1.msra.mxu0 0.0
        %2904 = vmatprep.subr.mxu0 0.0
        %2905 = vmatpush1.msra.mxu0 0.0
        %2906 = vmatprep.subr.mxu0 0.0
        %2907 = vmatpush1.msra.mxu0 0.0
        %2908 = vmatprep.subr.mxu0 0.0
        %2909 = vmatpush1.msra.mxu0 0.0
        %2910 = vmatprep.subr.mxu0 0.0
        %2911 = vmatpush1.msra.mxu0 0.0
        %2912 = vmatprep.subr.mxu0 0.0
        %2913 = vmatpush1.msra.mxu0 0.0
        %2914 = vmatprep.subr.mxu0 0.0
        %2915 = vmatpush1.msra.mxu0 0.0
        %2916 = vmatprep.subr.mxu0 0.0
        %2917 = vmatpush1.msra.mxu0 0.0
        %2918 = vmatprep.subr.mxu0 0.0
        %2919 = vmatpush1.msra.mxu0 0.0
        %2920 = vmatprep.mubr.f32.mxu0 0.0
        %2921 = vmatmul.mubr.f32.gmra.mrb[0].mxu0 %v2854
        %v2922 = vpop.f32.mrb[0].mxu0
        %v2923 = vadd.f32 0.0, %v2922
        %v2924 = vpop.f32.mrb[0].mxu0
        %2925 = vdwg.mxu0
        %v2926 = vadd.f32 %v2685, %v2923
        %v2927 = vlaneseq
        %v2928 = vshrl.u32 %v2927, 7
        %v2929 = vsub.s32 3, %v2928
        %v2930 = vrot.slane %v1866, %v2929
        %v2931 = vadd.f32 %v2926, %v2930
        %v2932 = vadd.f32 %v1840, %v2931
        %v2933 = vsel %vm556, %v2932, 0.0
        %2934 = vadd.xlane.f32.xlu0 %v2933
        %v2935 = vpop.xlane.xlu0 %2934
        %v2936 = vmul.f32 %v2935, %v1632
        %v2937 = vsub.f32 %v2932, %v2936
        %v2938 = vmul.f32 %v2937, %v2937
        %v2939 = vsel %vm556, %v2938, 0.0
        %2940 = vadd.xlane.f32.xlu0 %v2939
        %v2941 = vpop.xlane.xlu0 %2940
        %v2942 = vmul.f32 %v2941, %v1632
        %v2943 = vadd.f32 %v2942, 1e-05
        %v2944 = vrsqrt.pop %v2943
        %v2945 = vmul.f32 %v2937, %v2944
        %v2946 = vlaneseq
        %v2947 = vshrl.u32 %v2946, 7
        %v2948 = vsub.s32 4, %v2947
        %v2949 = vrot.slane %v1866, %v2948
        %v2950 = vmul.f32 %v2945, %v2949
        %v2951 = vlaneseq
        %v2952 = vshrl.u32 %v2951, 7
        %v2953 = vsub.s32 5, %v2952
        %v2954 = vrot.slane %v1866, %v2953
        %v2955 = vadd.f32 %v2950, %v2954
        %v2956 = vlaneseq
        %v2957 = vshrl.u32 %v2956, 7
        %v2958 = vsub.s32 6, %v2957
        %v2959 = vrot.slane %v1866, %v2958
        %v2961 = vsel %vm556, %v2955, 0
        %2963 = vmatprep.subr.mxu0 0.0
        %2964 = vmatpush1.msra.mxu0 %v1852
        %2965 = vmatprep.subr.mxu0 0.0
        %2966 = vmatpush1.msra.mxu0 %v1853
        %2967 = vmatprep.subr.mxu0 0.0
        %2968 = vmatpush1.msra.mxu0 %v1854
        %2969 = vmatprep.subr.mxu0 0.0
        %2970 = vmatpush1.msra.mxu0 %v1855
        %2971 = vmatprep.subr.mxu0 0.0
        %2972 = vmatpush1.msra.mxu0 0.0
        %2973 = vmatprep.subr.mxu0 0.0
        %2974 = vmatpush1.msra.mxu0 0.0
        %2975 = vmatprep.subr.mxu0 0.0
        %2976 = vmatpush1.msra.mxu0 0.0
        %2977 = vmatprep.subr.mxu0 0.0
        %2978 = vmatpush1.msra.mxu0 0.0
        %2979 = vmatprep.subr.mxu0 0.0
        %2980 = vmatpush1.msra.mxu0 0.0
        %2981 = vmatprep.subr.mxu0 0.0
        %2982 = vmatpush1.msra.mxu0 0.0
        %2983 = vmatprep.subr.mxu0 0.0
        %2984 = vmatpush1.msra.mxu0 0.0
        %2985 = vmatprep.subr.mxu0 0.0
        %2986 = vmatpush1.msra.mxu0 0.0
        %2987 = vmatprep.subr.mxu0 0.0
        %2988 = vmatpush1.msra.mxu0 0.0
        %2989 = vmatprep.subr.mxu0 0.0
        %2990 = vmatpush1.msra.mxu0 0.0
        %2991 = vmatprep.subr.mxu0 0.0
        %2992 = vmatpush1.msra.mxu0 0.0
        %2993 = vmatprep.subr.mxu0 0.0
        %2994 = vmatpush1.msra.mxu0 0.0
        %2995 = vmatprep.subr.mxu0 0.0
        %2996 = vmatpush1.msra.mxu0 0.0
        %2997 = vmatprep.subr.mxu0 0.0
        %2998 = vmatpush1.msra.mxu0 0.0
        %2999 = vmatprep.subr.mxu0 0.0
        %3000 = vmatpush1.msra.mxu0 0.0
        %3001 = vmatprep.subr.mxu0 0.0
        %3002 = vmatpush1.msra.mxu0 0.0
        %3003 = vmatprep.subr.mxu0 0.0
        %3004 = vmatpush1.msra.mxu0 0.0
        %3005 = vmatprep.subr.mxu0 0.0
        %3006 = vmatpush1.msra.mxu0 0.0
        %3007 = vmatprep.subr.mxu0 0.0
        %3008 = vmatpush1.msra.mxu0 0.0
        %3009 = vmatprep.subr.mxu0 0.0
        %3010 = vmatpush1.msra.mxu0 0.0
        %3011 = vmatprep.subr.mxu0 0.0
        %3012 = vmatpush1.msra.mxu0 0.0
        %3013 = vmatprep.subr.mxu0 0.0
        %3014 = vmatpush1.msra.mxu0 0.0
        %3015 = vmatprep.subr.mxu0 0.0
        %3016 = vmatpush1.msra.mxu0 0.0
        %3017 = vmatprep.subr.mxu0 0.0
        %3018 = vmatpush1.msra.mxu0 0.0
        %3019 = vmatprep.subr.mxu0 0.0
        %3020 = vmatpush1.msra.mxu0 0.0
        %3021 = vmatprep.subr.mxu0 0.0
        %3022 = vmatpush1.msra.mxu0 0.0
        %3023 = vmatprep.subr.mxu0 0.0
        %3024 = vmatpush1.msra.mxu0 0.0
        %3025 = vmatprep.subr.mxu0 0.0
        %3026 = vmatpush1.msra.mxu0 0.0
        %3027 = vmatprep.mubr.f32.mxu0 0.0
        %3028 = vmatmul.mubr.f32.gmra.mrb[0].mxu0 %v2961
        %v3029 = vpop.f32.mrb[0].mxu0
        %v3030 = vadd.f32 %v2959, %v3029
        %v3031 = vpop.f32.mrb[0].mxu0
        %3032 = vdwg.mxu0
        %v3033 = vmul.f32 %v3030, 0.5
        %v3034 = vmul.f32 %v3030, 0.044715
        %v3035 = vmul.f32 %v3034, %v3030
        %v3036 = vmul.f32 %v3035, %v3030
        %v3037 = vadd.f32 %v3030, %v3036
        %v3038 = vmul.f32 %v3037, 0.7978846
        %v3039 = vtanh.pop %v3038
        %v3040 = vadd.f32 %v3039, 1.0
        %v3041 = vmul.f32 %v3033, %v3040
        %v3042 = vlaneseq
        %v3043 = vshrl.u32 %v3042, 7
        %v3044 = vsub.s32 7, %v3043
        %v3045 = vrot.slane %v1866, %v3044
        %v3047 = vsel %vm1743, %v3041, 0
        %3049 = vmatprep.subr.mxu0 0.0
        %3050 = vmatpush1.msra.mxu0 %v1857
        %3051 = vmatprep.subr.mxu0 0.0
        %3052 = vmatpush1.msra.mxu0 %v1858
        %3053 = vmatprep.subr.mxu0 0.0
        %3054 = vmatpush1.msra.mxu0 %v1859
        %3055 = vmatprep.subr.mxu0 0.0
        %3056 = vmatpush1.msra.mxu0 %v1860
        %3057 = vmatprep.subr.mxu0 0.0
        %3058 = vmatpush1.msra.mxu0 %v1861
        %3059 = vmatprep.subr.mxu0 0.0
        %3060 = vmatpush1.msra.mxu0 %v1862
        %3061 = vmatprep.subr.mxu0 0.0
        %3062 = vmatpush1.msra.mxu0 %v1863
        %3063 = vmatprep.subr.mxu0 0.0
        %3064 = vmatpush1.msra.mxu0 %v1864
        %3065 = vmatprep.subr.mxu0 0.0
        %3066 = vmatpush1.msra.mxu0 0.0
        %3067 = vmatprep.subr.mxu0 0.0
        %3068 = vmatpush1.msra.mxu0 0.0
        %3069 = vmatprep.subr.mxu0 0.0
        %3070 = vmatpush1.msra.mxu0 0.0
        %3071 = vmatprep.subr.mxu0 0.0
        %3072 = vmatpush1.msra.mxu0 0.0
        %3073 = vmatprep.subr.mxu0 0.0
        %3074 = vmatpush1.msra.mxu0 0.0
        %3075 = vmatprep.subr.mxu0 0.0
        %3076 = vmatpush1.msra.mxu0 0.0
        %3077 = vmatprep.subr.mxu0 0.0
        %3078 = vmatpush1.msra.mxu0 0.0
        %3079 = vmatprep.subr.mxu0 0.0
        %3080 = vmatpush1.msra.mxu0 0.0
        %3081 = vmatprep.subr.mxu0 0.0
        %3082 = vmatpush1.msra.mxu0 0.0
        %3083 = vmatprep.subr.mxu0 0.0
        %3084 = vmatpush1.msra.mxu0 0.0
        %3085 = vmatprep.subr.mxu0 0.0
        %3086 = vmatpush1.msra.mxu0 0.0
        %3087 = vmatprep.subr.mxu0 0.0
        %3088 = vmatpush1.msra.mxu0 0.0
        %3089 = vmatprep.subr.mxu0 0.0
        %3090 = vmatpush1.msra.mxu0 0.0
        %3091 = vmatprep.subr.mxu0 0.0
        %3092 = vmatpush1.msra.mxu0 0.0
        %3093 = vmatprep.subr.mxu0 0.0
        %3094 = vmatpush1.msra.mxu0 0.0
        %3095 = vmatprep.subr.mxu0 0.0
        %3096 = vmatpush1.msra.mxu0 0.0
        %3097 = vmatprep.subr.mxu0 0.0
        %3098 = vmatpush1.msra.mxu0 0.0
        %3099 = vmatprep.subr.mxu0 0.0
        %3100 = vmatpush1.msra.mxu0 0.0
        %3101 = vmatprep.subr.mxu0 0.0
        %3102 = vmatpush1.msra.mxu0 0.0
        %3103 = vmatprep.subr.mxu0 0.0
        %3104 = vmatpush1.msra.mxu0 0.0
        %3105 = vmatprep.subr.mxu0 0.0
        %3106 = vmatpush1.msra.mxu0 0.0
        %3107 = vmatprep.subr.mxu0 0.0
        %3108 = vmatpush1.msra.mxu0 0.0
        %3109 = vmatprep.subr.mxu0 0.0
        %3110 = vmatpush1.msra.mxu0 0.0
        %3111 = vmatprep.subr.mxu0 0.0
        %3112 = vmatpush1.msra.mxu0 0.0
        %3113 = vmatprep.mubr.f32.mxu0 0.0
        %3114 = vmatmul.mubr.f32.gmra.mrb[0].mxu0 %v3047
        %v3115 = vpop.f32.mrb[0].mxu0
        %v3116 = vadd.f32 %v3045, %v3115
        %v3117 = vpop.f32.mrb[0].mxu0
        %3118 = vdwg.mxu0
        %v3119 = vadd.f32 %v2955, %v3116
        %v3120 = vsel %vm556, %v3119, 0.0
        %3121 = vadd.xlane.f32.xlu0 %v3120
        %v3122 = vpop.xlane.xlu0 %3121
        %v3123 = vmul.f32 %v3122, %v1632
        %v3124 = vsub.f32 %v3119, %v3123
        %v3125 = vmul.f32 %v3124, %v3124
        %v3126 = vsel %vm556, %v3125, 0.0
        %3127 = vadd.xlane.f32.xlu0 %v3126
        %v3128 = vpop.xlane.xlu0 %3127
        %v3129 = vmul.f32 %v3128, %v1632
        %v3130 = vadd.f32 %v3129, 1e-05
        %v3131 = vrsqrt.pop %v3130
        %v3132 = vmul.f32 %v3124, %v3131
        %v3133 = vlaneseq
        %v3134 = vshrl.u32 %v3133, 7
        %v3135 = vsub.s32 0, %v3134
        %v3136 = vrot.slane %v1867, %v3135
        %v3137 = vmul.f32 %v3132, %v3136
        %v3138 = vlaneseq
        %v3139 = vshrl.u32 %v3138, 7
        %v3140 = vsub.s32 1, %v3139
        %v3141 = vrot.slane %v1867, %v3140
        %v3142 = vadd.f32 %v3137, %v3141
        %v3143 = vld [vmem:[%s10] sm:$0x1]
        %v3144 = vld [vmem:[%s10 + $0x1] sm:$0x1]
        %v3145 = vld [vmem:[%s10 + $0x2] sm:$0x1]
        %v3146 = vld [vmem:[%s10 + $0x3] sm:$0x1]
        %v3147 = vsel %vm556, %v3142, 0.0
        %3148 = vadd.xlane.f32.xlu0 %v3147
        %v3149 = vpop.xlane.xlu0 %3148
        %v3150 = vmul.f32 %v3149, %v1632
        %v3151 = vsub.f32 %v3142, %v3150
        %v3152 = vmul.f32 %v3151, %v3151
        %v3153 = vsel %vm556, %v3152, 0.0
        %3154 = vadd.xlane.f32.xlu0 %v3153
        %v3155 = vpop.xlane.xlu0 %3154
        %v3156 = vmul.f32 %v3155, %v1632
        %v3157 = vadd.f32 %v3156, 1e-05
        %v3158 = vrsqrt.pop %v3157
        %v3159 = vmul.f32 %v3151, %v3158
        %v3160 = vlaneseq
        %v3161 = vshrl.u32 %v3160, 7
        %v3162 = vsub.s32 0, %v3161
        %v3163 = vrot.slane %v3143, %v3162
        %v3164 = vmul.f32 %v3159, %v3163
        %v3165 = vlaneseq
        %v3166 = vshrl.u32 %v3165, 7
        %v3167 = vsub.s32 0, %v3166
        %v3168 = vrot.slane %v3144, %v3167
        %v3169 = vadd.f32 %v3164, %v3168
        %v3170 = vld [vmem:[%s8] sm:$0xff]
        %v3171 = vld [vmem:[%s8 + $0x8] sm:$0xff]
        %v3172 = vld [vmem:[%s8 + $0x10] sm:$0xff]
        %v3173 = vld [vmem:[%s8 + $0x18] sm:$0xff]
        %v3174 = vlaneseq
        %v3175 = vshrl.u32 %v3174, 7
        %v3176 = vsub.s32 0, %v3175
        %v3177 = vrot.slane %v3145, %v3176
        %v3179 = vsel %vm556, %v3169, 0
        %3181 = vmatprep.subr.mxu0 0.0
        %3182 = vmatpush1.msra.mxu0 %v3170
        %3183 = vmatprep.subr.mxu0 0.0
        %3184 = vmatpush1.msra.mxu0 %v3171
        %3185 = vmatprep.subr.mxu0 0.0
        %3186 = vmatpush1.msra.mxu0 %v3172
        %3187 = vmatprep.subr.mxu0 0.0
        %3188 = vmatpush1.msra.mxu0 %v3173
        %3189 = vmatprep.subr.mxu0 0.0
        %3190 = vmatpush1.msra.mxu0 0.0
        %3191 = vmatprep.subr.mxu0 0.0
        %3192 = vmatpush1.msra.mxu0 0.0
        %3193 = vmatprep.subr.mxu0 0.0
        %3194 = vmatpush1.msra.mxu0 0.0
        %3195 = vmatprep.subr.mxu0 0.0
        %3196 = vmatpush1.msra.mxu0 0.0
        %3197 = vmatprep.subr.mxu0 0.0
        %3198 = vmatpush1.msra.mxu0 0.0
        %3199 = vmatprep.subr.mxu0 0.0
        %3200 = vmatpush1.msra.mxu0 0.0
        %3201 = vmatprep.subr.mxu0 0.0
        %3202 = vmatpush1.msra.mxu0 0.0
        %3203 = vmatprep.subr.mxu0 0.0
        %3204 = vmatpush1.msra.mxu0 0.0
        %3205 = vmatprep.subr.mxu0 0.0
        %3206 = vmatpush1.msra.mxu0 0.0
        %3207 = vmatprep.subr.mxu0 0.0
        %3208 = vmatpush1.msra.mxu0 0.0
        %3209 = vmatprep.subr.mxu0 0.0
        %3210 = vmatpush1.msra.mxu0 0.0
        %3211 = vmatprep.subr.mxu0 0.0
        %3212 = vmatpush1.msra.mxu0 0.0
        %3213 = vmatprep.subr.mxu0 0.0
        %3214 = vmatpush1.msra.mxu0 0.0
        %3215 = vmatprep.subr.mxu0 0.0
        %3216 = vmatpush1.msra.mxu0 0.0
        %3217 = vmatprep.subr.mxu0 0.0
        %3218 = vmatpush1.msra.mxu0 0.0
        %3219 = vmatprep.subr.mxu0 0.0
        %3220 = vmatpush1.msra.mxu0 0.0
        %3221 = vmatprep.subr.mxu0 0.0
        %3222 = vmatpush1.msra.mxu0 0.0
        %3223 = vmatprep.subr.mxu0 0.0
        %3224 = vmatpush1.msra.mxu0 0.0
        %3225 = vmatprep.subr.mxu0 0.0
        %3226 = vmatpush1.msra.mxu0 0.0
        %3227 = vmatprep.subr.mxu0 0.0
        %3228 = vmatpush1.msra.mxu0 0.0
        %3229 = vmatprep.subr.mxu0 0.0
        %3230 = vmatpush1.msra.mxu0 0.0
        %3231 = vmatprep.subr.mxu0 0.0
        %3232 = vmatpush1.msra.mxu0 0.0
        %3233 = vmatprep.subr.mxu0 0.0
        %3234 = vmatpush1.msra.mxu0 0.0
        %3235 = vmatprep.subr.mxu0 0.0
        %3236 = vmatpush1.msra.mxu0 0.0
        %3237 = vmatprep.subr.mxu0 0.0
        %3238 = vmatpush1.msra.mxu0 0.0
        %3239 = vmatprep.subr.mxu0 0.0
        %3240 = vmatpush1.msra.mxu0 0.0
        %3241 = vmatprep.subr.mxu0 0.0
        %3242 = vmatpush1.msra.mxu0 0.0
        %3243 = vmatprep.subr.mxu0 0.0
        %3244 = vmatpush1.msra.mxu0 0.0
        %3245 = vmatprep.mubr.f32.mxu0 0.0
        %3246 = vmatmul.mubr.f32.gmra.mrb[0].mxu0 %v3179
        %v3247 = vpop.f32.mrb[0].mxu0
        %v3248 = vadd.f32 %v3177, %v3247
        %v3249 = vpop.f32.mrb[0].mxu0
        %3250 = vdwg.mxu0
        %v3251 = vmul.f32 %v3248, 0.5
        %v3252 = vmul.f32 %v3248, 0.044715
        %v3253 = vmul.f32 %v3252, %v3248
        %v3254 = vmul.f32 %v3253, %v3248
        %v3255 = vadd.f32 %v3248, %v3254
        %v3256 = vmul.f32 %v3255, 0.7978846
        %v3257 = vtanh.pop %v3256
        %v3258 = vadd.f32 %v3257, 1.0
        %v3259 = vmul.f32 %v3251, %v3258
        %v3260 = vld [vmem:[%s9] sm:$0xff]
        %v3261 = vld [vmem:[%s9 + $0x8] sm:$0xff]
        %v3262 = vld [vmem:[%s9 + $0x10] sm:$0xff]
        %v3263 = vld [vmem:[%s9 + $0x18] sm:$0xff]
        %v3264 = vlaneseq
        %v3265 = vshrl.u32 %v3264, 7
        %v3266 = vsub.s32 0, %v3265
        %v3267 = vrot.slane %v3146, %v3266
        %v3269 = vsel %vm556, %v3259, 0
        %3271 = vmatprep.subr.mxu0 0.0
        %3272 = vmatpush1.msra.mxu0 %v3260
        %3273 = vmatprep.subr.mxu0 0.0
        %3274 = vmatpush1.msra.mxu0 %v3261
        %3275 = vmatprep.subr.mxu0 0.0
        %3276 = vmatpush1.msra.mxu0 %v3262
        %3277 = vmatprep.subr.mxu0 0.0
        %3278 = vmatpush1.msra.mxu0 %v3263
        %3279 = vmatprep.subr.mxu0 0.0
        %3280 = vmatpush1.msra.mxu0 0.0
        %3281 = vmatprep.subr.mxu0 0.0
        %3282 = vmatpush1.msra.mxu0 0.0
        %3283 = vmatprep.subr.mxu0 0.0
        %3284 = vmatpush1.msra.mxu0 0.0
        %3285 = vmatprep.subr.mxu0 0.0
        %3286 = vmatpush1.msra.mxu0 0.0
        %3287 = vmatprep.subr.mxu0 0.0
        %3288 = vmatpush1.msra.mxu0 0.0
        %3289 = vmatprep.subr.mxu0 0.0
        %3290 = vmatpush1.msra.mxu0 0.0
        %3291 = vmatprep.subr.mxu0 0.0
        %3292 = vmatpush1.msra.mxu0 0.0
        %3293 = vmatprep.subr.mxu0 0.0
        %3294 = vmatpush1.msra.mxu0 0.0
        %3295 = vmatprep.subr.mxu0 0.0
        %3296 = vmatpush1.msra.mxu0 0.0
        %3297 = vmatprep.subr.mxu0 0.0
        %3298 = vmatpush1.msra.mxu0 0.0
        %3299 = vmatprep.subr.mxu0 0.0
        %3300 = vmatpush1.msra.mxu0 0.0
        %3301 = vmatprep.subr.mxu0 0.0
        %3302 = vmatpush1.msra.mxu0 0.0
        %3303 = vmatprep.subr.mxu0 0.0
        %3304 = vmatpush1.msra.mxu0 0.0
        %3305 = vmatprep.subr.mxu0 0.0
        %3306 = vmatpush1.msra.mxu0 0.0
        %3307 = vmatprep.subr.mxu0 0.0
        %3308 = vmatpush1.msra.mxu0 0.0
        %3309 = vmatprep.subr.mxu0 0.0
        %3310 = vmatpush1.msra.mxu0 0.0
        %3311 = vmatprep.subr.mxu0 0.0
        %3312 = vmatpush1.msra.mxu0 0.0
        %3313 = vmatprep.subr.mxu0 0.0
        %3314 = vmatpush1.msra.mxu0 0.0
        %3315 = vmatprep.subr.mxu0 0.0
        %3316 = vmatpush1.msra.mxu0 0.0
        %3317 = vmatprep.subr.mxu0 0.0
        %3318 = vmatpush1.msra.mxu0 0.0
        %3319 = vmatprep.subr.mxu0 0.0
        %3320 = vmatpush1.msra.mxu0 0.0
        %3321 = vmatprep.subr.mxu0 0.0
        %3322 = vmatpush1.msra.mxu0 0.0
        %3323 = vmatprep.subr.mxu0 0.0
        %3324 = vmatpush1.msra.mxu0 0.0
        %3325 = vmatprep.subr.mxu0 0.0
        %3326 = vmatpush1.msra.mxu0 0.0
        %3327 = vmatprep.subr.mxu0 0.0
        %3328 = vmatpush1.msra.mxu0 0.0
        %3329 = vmatprep.subr.mxu0 0.0
        %3330 = vmatpush1.msra.mxu0 0.0
        %3331 = vmatprep.subr.mxu0 0.0
        %3332 = vmatpush1.msra.mxu0 0.0
        %3333 = vmatprep.subr.mxu0 0.0
        %3334 = vmatpush1.msra.mxu0 0.0
        %3335 = vmatprep.mubr.f32.mxu0 0.0
        %3336 = vmatmul.mubr.f32.gmra.mrb[0].mxu0 %v3269
        %v3337 = vpop.f32.mrb[0].mxu0
        %v3338 = vadd.f32 %v3267, %v3337
        %v3339 = vpop.f32.mrb[0].mxu0
        %3340 = vdwg.mxu0
        %3341 = vst.msk [vmem:[%s427] sm:$0xff] %vm432, %v3338
        %s3342 = sand.u32 %s278, 1
        %s3343 = scalar_lea.sflag [#allocation4], %s3342
        %s3344 = sand.u32 %s278, 1
        %s3345 = smul.addr %s3344, 8
        %s3346 = scalar_lea.vmem [#allocation7], %s3345
        // Predicated region
        $region73: #{tpu_custom_call.1} parent=63 // pred_check
          %p3347 = pneg %p288
        $region74: #{tpu_custom_call.1} parent=63 // pred_check_branch
          %3349 = sbr.rel (%p3347) target = $region76
        $region75: #{tpu_custom_call.1} parent=63 // pred_region
          %s3351 = ssub.s32 128, 128
          %3352 = vsyncadd %s3343, %s3351
          %s3353 = smul.addr %s29, 128
          %s3354 = scalar_lea.hbm %s11, %s3353
          %s3356 = sshll.u32 %s3346, 4
          %s3357 = int_to_ptr.vmem [resolvable:$true] %s3356
          %3359 = dma.vmem_to_hbm [thread:$0]  %s3357, 128, %s3354, %s3343
        $region76: #{tpu_custom_call.1} parent=63 // pred_fallthru
          _
      $region64: #{tpu_custom_call.1} parent=5 // pred_fallthru
        _
      %p3360 = scmp.le.s32.totalorder 2, %s24
      // Predicated region
      $region77: #{tpu_custom_call.1} parent=5 // pred_check
        %p3361 = pneg %p3360
      $region78: #{tpu_custom_call.1} parent=5 // pred_check_branch
        %3363 = sbr.rel (%p3361) target = $region80
      $region79: #{tpu_custom_call.1} parent=5 // pred_region
        %s3364 = ssub.s32 %s24, 2
        // Predicated region
        $region81: #{tpu_custom_call.1} parent=79 // pred_check
          %p3365 = pneg %p294
        $region82: #{tpu_custom_call.1} parent=79 // pred_check_branch
          %3367 = sbr.rel (%p3365) target = $region84
        $region83: #{tpu_custom_call.1} parent=79 // pred_region
          %s3368 = sand.u32 %s279, 1
          %s3369 = scalar_lea.sflag [#allocation4], %s3368
          %s3370 = sand.u32 %s279, 1
          %s3371 = smul.addr %s3370, 8
          %s3372 = scalar_lea.vmem [#allocation7], %s3371
          %3373 = dma.done %s3369, 128
        $region84: #{tpu_custom_call.1} parent=79 // pred_fallthru
          _
      $region80: #{tpu_custom_call.1} parent=5 // pred_fallthru
        _
    $region6: #{tpu_custom_call.1} parent=1 // loop_footer
      %s28 = sadd.s32 1, %s24
    $region7: #{tpu_custom_call.1} parent=1 // loop_footer_branch
      %23 = sbr.rel target = $region3
    $region8: #{tpu_custom_call.1} parent=1 // loop_exit
      _
    %3374 = vsyncpa [#allocation3], 1
    %s3375 = scalar_lea.sflag [#allocation3], 1
    %3376 = vsyncpa %s3375, 1
    %3377 = vsyncpa [#allocation6], 1
    %3378 = vsyncpa [#allocation4], 1
    %s3379 = scalar_lea.sflag [#allocation4], 1
    %3380 = vsyncpa %s3379, 1

</llo_original>
